<compile_context>
chip_gen: v7x
topology: tpu7x:2x2x1
jax: 0.10.0
libtpu: 0.0.40
codegen_flags: <defaults>
</compile_context>

<pallas_src>
import functools

import jax
import jax.numpy as jnp
from jax.experimental import pallas as pl
from jax.experimental.pallas import tpu as pltpu

K = 25            # conv kernel size (both convs)
PAD = 12          # conv "same" padding
C_IN = 20         # input channels
C_MID = 80        # conv1 output channels
C_OUT = 32        # conv2 output channels
LANES = 128       # TPU lane width; channel dims are zero-padded to this
LN_EPS = 1e-5


def fused_kernel(y_ref, tap1_ref, b1_ref, g1_ref, bt1_ref,
                 w2_ref, b2_ref, g2_ref, bt2_ref,
                 out_ref, x_ref, *, true_len):
    """One batch element: conv1+LN1+relu+pool -> conv2+LN2+sigmoid -> concat."""
    Lc = out_ref.shape[1]          # compute length (true_len rounded up to 8)
    Lext = Lc + 2 * PAD            # stage-1 rows including the halo conv2 needs

    yrep = y_ref[0]                # (Lc + 4*PAD, 128): channel-replicated, zero-padded

    # ---- conv1: depthwise (groups=20) as 25 VPU FMAs over shifted windows ----
    tap1 = tap1_ref[...]           # (25, 128); lanes >= 80 are zero
    acc1 = jnp.zeros((Lext, LANES), jnp.float32)
    for k in range(K):             # unrolled; windows are value slices (vregs/VMEM)
        acc1 = acc1 + yrep[k:k + Lext, :] * tap1[k:k + 1, :]
    acc1 = acc1 + b1_ref[...]      # zero-padded bias (hoisted, broadcast once)

    # ---- LayerNorm(80) over the first 80 lanes (padded lanes are exactly 0) ----
    lane = jax.lax.broadcasted_iota(jnp.int32, (1, LANES), 1)
    cmask = (lane < C_MID).astype(jnp.float32)                      # (1, 128)
    mean1 = jnp.sum(acc1, axis=-1, keepdims=True) * (1.0 / C_MID)
    cen1 = (acc1 - mean1) * cmask
    var1 = jnp.sum(cen1 * cen1, axis=-1, keepdims=True) * (1.0 / C_MID)
    h1 = cen1 * jax.lax.rsqrt(var1 + LN_EPS) * g1_ref[...] + bt1_ref[...]
    h1 = jnp.maximum(h1, 0.0)                                       # ReLU

    # ---- avg_pool1d(k=3, s=1, p=1) along the feature axis via lane rolls ----
    left = pltpu.roll(h1, shift=1, axis=1)           # h1[:, c-1] (c=0 sees lane 127 == 0)
    right = pltpu.roll(h1, shift=LANES - 1, axis=1)  # h1[:, c+1] (c=79 sees lane 80 == 0)
    h1p = (h1 + left + right) * (cmask * (1.0 / 3.0))

    # ---- zero halo / padded rows: this is conv2's implicit zero padding of h1 ----
    row = jax.lax.broadcasted_iota(jnp.int32, (Lext, 1), 0)
    rmask = jnp.logical_and(row >= PAD, row < true_len + PAD).astype(jnp.float32)
    h1ext = h1p * rmask                                             # (Lext, 128)

    # ---- conv2 (80 -> 32, k=25) as ONE deep-K matmul over an im2col slab ----
    for k in range(K):             # lane-aligned, full-128-lane stores into the slab
        x_ref[:, k * LANES:(k + 1) * LANES] = h1ext[k:k + Lc, :]
    # NOTE(v5e): casting x_ref / w2 to bf16 (f32 accumulation) roughly doubles MXU
    # throughput if the accuracy budget allows; kept f32 to match the f32 reference.
    acc2 = jnp.dot(x_ref[...], w2_ref[...],
                   preferred_element_type=jnp.float32)              # (Lc, 32)
    acc2 = acc2 + b2_ref[...]

    # ---- LayerNorm(32) + sigmoid (all 32 lanes are real channels) ----
    mean2 = jnp.mean(acc2, axis=-1, keepdims=True)
    cen2 = acc2 - mean2
    var2 = jnp.mean(cen2 * cen2, axis=-1, keepdims=True)
    h2 = jax.nn.sigmoid(cen2 * jax.lax.rsqrt(var2 + LN_EPS) * g2_ref[...]
                        + bt2_ref[...])

    # ---- fused concat: lanes [0,80)=pooled h1, [80,112)=h2, [112,128)=0 ----
    out_ref[0] = jnp.concatenate(
        [h1ext[PAD:PAD + Lc, :C_MID], h2,
         jnp.zeros((Lc, LANES - C_MID - C_OUT), jnp.float32)], axis=-1)


def init_params(key):
    ks = jax.random.split(key, 8)
    # conv1: PyTorch weight shape (80, 1, 25), groups=20 (4 out channels / group)
    w1 = jax.random.normal(ks[0], (C_MID, 1, K), jnp.float32) * 0.1
    b1 = jax.random.normal(ks[1], (C_MID,), jnp.float32) * 0.1
    g1 = 1.0 + jax.random.normal(ks[2], (C_MID,), jnp.float32) * 0.05
    bt1 = jax.random.normal(ks[3], (C_MID,), jnp.float32) * 0.05
    # conv2: PyTorch weight shape (32, 80, 25)
    w2 = jax.random.normal(ks[4], (C_OUT, C_MID, K), jnp.float32) * 0.05
    b2 = jax.random.normal(ks[5], (C_OUT,), jnp.float32) * 0.1
    g2 = 1.0 + jax.random.normal(ks[6], (C_OUT,), jnp.float32) * 0.05
    bt2 = jax.random.normal(ks[7], (C_OUT,), jnp.float32) * 0.05
    return dict(w1=w1, b1=b1, g1=g1, bt1=bt1, w2=w2, b2=b2, g2=g2, bt2=bt2)


def prepare_kernel_params(p):
    pad_c = LANES - C_MID
    # output channel o of the grouped conv reads input channel o // 4
    group = jnp.arange(C_MID) // (C_MID // C_IN)                    # (80,)
    # depthwise tap table: tap1[k, o] = w1[o, 0, k] (lanes >= 80 zero)
    tap1 = jnp.pad(p["w1"][:, 0, :].T, ((0, 0), (0, pad_c)))        # (25, 128)
    b1 = jnp.pad(p["b1"], (0, pad_c)).reshape(1, LANES)
    g1 = jnp.pad(p["g1"], (0, pad_c)).reshape(1, LANES)
    bt1 = jnp.pad(p["bt1"], (0, pad_c)).reshape(1, LANES)
    # conv2 weight repacked for the im2col matmul: w2col[128*k + ci, co] = w2[co, ci, k]
    w2r = jnp.transpose(p["w2"], (2, 1, 0))                         # (25, 80, 32)
    w2col = jnp.pad(w2r, ((0, 0), (0, pad_c), (0, 0))).reshape(K * LANES, C_OUT)
    return dict(group=group, tap1=tap1, b1=b1, g1=g1, bt1=bt1,
                w2=w2col, b2=p["b2"].reshape(1, C_OUT),
                g2=p["g2"].reshape(1, C_OUT), bt2=p["bt2"].reshape(1, C_OUT))


@jax.jit
def pose_encoder_no_pool(y, kp):
    """Returns (concat([pooled_h1, h2], -1), h2) — matches the PyTorch module."""
    B, L, _ = y.shape
    Lc = ((L + 7) // 8) * 8                      # rows rounded up to a sublane multiple
    Lin = Lc + 4 * PAD                           # conv1 halo (12) + conv2 halo (12) per side

    # Layout plumbing (lane-dense input): replicate input channel c to the 4
    # output lanes it drives (depthwise conv1 becomes pure VPU FMAs), pad lanes
    # to 128 and the sequence by 24 rows on each side (+ Lc-L rows at the end).
    ygrp = jnp.take(y, kp["group"], axis=2)                          # (B, L, 80)
    ypad = jnp.pad(ygrp, ((0, 0), (2 * PAD, 2 * PAD + Lc - L), (0, LANES - C_MID)))

    out = pl.pallas_call(
        functools.partial(fused_kernel, true_len=L),
        out_shape=jax.ShapeDtypeStruct((B, Lc, LANES), jnp.float32),
        grid_spec=pltpu.PrefetchScalarGridSpec(
            num_scalar_prefetch=0,
            grid=(B,),
            in_specs=[
                pl.BlockSpec((1, Lin, LANES), lambda b: (b, 0, 0)),   # replicated + padded y
                pl.BlockSpec((K, LANES), lambda b: (0, 0)),           # conv1 taps
                pl.BlockSpec((1, LANES), lambda b: (0, 0)),           # b1
                pl.BlockSpec((1, LANES), lambda b: (0, 0)),           # gamma1
                pl.BlockSpec((1, LANES), lambda b: (0, 0)),           # beta1
                pl.BlockSpec((K * LANES, C_OUT), lambda b: (0, 0)),   # conv2 im2col weight
                pl.BlockSpec((1, C_OUT), lambda b: (0, 0)),           # b2
                pl.BlockSpec((1, C_OUT), lambda b: (0, 0)),           # gamma2
                pl.BlockSpec((1, C_OUT), lambda b: (0, 0)),           # beta2
            ],
            out_specs=pl.BlockSpec((1, Lc, LANES), lambda b: (b, 0, 0)),
            scratch_shapes=[pltpu.VMEM((Lc, K * LANES), jnp.float32)],  # im2col slab
        ),
        compiler_params=pltpu.CompilerParams(
            dimension_semantics=("parallel",)),                      # megacore over batch
    )(ypad, kp["tap1"], kp["b1"], kp["g1"], kp["bt1"],
      kp["w2"], kp["b2"], kp["g2"], kp["bt2"])

    cat = out[:, :L, :C_MID + C_OUT]
    h2 = out[:, :L, C_MID:C_MID + C_OUT]
    return cat, h2


# ------------------------- pure-JAX reference (verification) -------------------------
def _ref_layernorm(x, g, b):
    m = jnp.mean(x, axis=-1, keepdims=True)
    v = jnp.mean((x - m) ** 2, axis=-1, keepdims=True)
    return (x - m) * jax.lax.rsqrt(v + LN_EPS) * g + b


def reference_forward(y, p):
    B, L, _ = y.shape
    group = jnp.arange(C_MID) // (C_MID // C_IN)
    ypad = jnp.pad(y, ((0, 0), (PAD, PAD), (0, 0)))[:, :, group]     # (B, L+24, 80)
    w1 = p["w1"][:, 0, :]                                             # (80, 25)
    h1 = jnp.broadcast_to(p["b1"], (B, L, C_MID))
    for k in range(K):
        h1 = h1 + ypad[:, k:k + L, :] * w1[None, None, :, k]
    h1 = jnp.maximum(_ref_layernorm(h1, p["g1"], p["bt1"]), 0.0)
    hp = jnp.pad(h1, ((0, 0), (0, 0), (1, 1)))                        # feature-axis avg pool
    h1 = (hp[:, :, 0:C_MID] + hp[:, :, 1:C_MID + 1] + hp[:, :, 2:C_MID + 2]) / 3.0
    h1pad = jnp.pad(h1, ((0, 0), (PAD, PAD), (0, 0)))
    h2 = jnp.broadcast_to(p["b2"], (B, L, C_OUT))
    for k in range(K):
        h2 = h2 + jnp.einsum("blc,oc->blo", h1pad[:, k:k + L, :], p["w2"][:, :, k])
    h2 = jax.nn.sigmoid(_ref_layernorm(h2, p["g2"], p["bt2"]))
    return jnp.concatenate([h1, h2], axis=2), h2


if __name__ == "__main__":
    key = jax.random.PRNGKey(0)
    k_param, k_in = jax.random.split(key)

    B, L = 2, 16
    y = jax.random.normal(k_in, (B, L, C_IN), jnp.float32)

    params = init_params(k_param)
    kparams = prepare_kernel_params(params)

    cat_out, h2_out = pose_encoder_no_pool(y, kparams)
    jax.block_until_ready((cat_out, h2_out))

    assert cat_out.shape == (B, L, C_MID + C_OUT)
    assert h2_out.shape == (B, L, C_OUT)

    cat_ref, h2_ref = reference_forward(y, params)
    assert jnp.allclose(cat_out, cat_ref, atol=5e-3, rtol=5e-3), \
        float(jnp.max(jnp.abs(cat_out - cat_ref)))
    assert jnp.allclose(h2_out, h2_ref, atol=5e-3, rtol=5e-3), \
        float(jnp.max(jnp.abs(h2_out - h2_ref)))

    print("KERNEL_OK")
</pallas_src>

<mosaic_0001>
module attributes {stable_mosaic.version = 11 : i64} {
  func.func @fused_kernel(%arg0: i32, %arg1: memref<1x64x128xf32, #tpu.memory_space<vmem>>, %arg2: memref<25x128xf32, #tpu.memory_space<vmem>>, %arg3: memref<1x128xf32, #tpu.memory_space<vmem>>, %arg4: memref<1x128xf32, #tpu.memory_space<vmem>>, %arg5: memref<1x128xf32, #tpu.memory_space<vmem>>, %arg6: memref<3200x32xf32, #tpu.memory_space<vmem>>, %arg7: memref<1x32xf32, #tpu.memory_space<vmem>>, %arg8: memref<1x32xf32, #tpu.memory_space<vmem>>, %arg9: memref<1x32xf32, #tpu.memory_space<vmem>>, %arg10: memref<1x16x128xf32, #tpu.memory_space<vmem>>, %arg11: memref<16x3200xf32, #tpu.memory_space<vmem>>) attributes {dimension_semantics = [#tpu.dimension_semantics<parallel>], iteration_bounds = array<i64: 2>, scalar_prefetch = 0 : i64, scratch_operands = 1 : i64, tpu.core_type = #tpu.core_type<tc>, window_params = [{transform_indices = @transform_0, window_bounds = array<i64: 1, 64, 128>}, {pipeline_mode = #tpu.pipeline_mode<synchronous>, transform_indices = @transform_1, window_bounds = array<i64: 25, 128>}, {pipeline_mode = #tpu.pipeline_mode<synchronous>, transform_indices = @transform_2, window_bounds = array<i64: 1, 128>}, {pipeline_mode = #tpu.pipeline_mode<synchronous>, transform_indices = @transform_3, window_bounds = array<i64: 1, 128>}, {pipeline_mode = #tpu.pipeline_mode<synchronous>, transform_indices = @transform_4, window_bounds = array<i64: 1, 128>}, {pipeline_mode = #tpu.pipeline_mode<synchronous>, transform_indices = @transform_5, window_bounds = array<i64: 3200, 32>}, {pipeline_mode = #tpu.pipeline_mode<synchronous>, transform_indices = @transform_6, window_bounds = array<i64: 1, 32>}, {pipeline_mode = #tpu.pipeline_mode<synchronous>, transform_indices = @transform_7, window_bounds = array<i64: 1, 32>}, {pipeline_mode = #tpu.pipeline_mode<synchronous>, transform_indices = @transform_8, window_bounds = array<i64: 1, 32>}, {transform_indices = @transform_9, window_bounds = array<i64: 1, 16, 128>}]} {
    %c0 = arith.constant 0 : index
    %c0_0 = arith.constant 0 : index
    %c0_1 = arith.constant 0 : index
    %0 = vector.load %arg1[%c0, %c0_0, %c0_1] : memref<1x64x128xf32, #tpu.memory_space<vmem>>, vector<1x64x128xf32>
    %1 = vector.shape_cast %0 : vector<1x64x128xf32> to vector<64x128xf32>
    %c0_2 = arith.constant 0 : index
    %c0_3 = arith.constant 0 : index
    %2 = vector.load %arg2[%c0_2, %c0_3] : memref<25x128xf32, #tpu.memory_space<vmem>>, vector<25x128xf32>
    %cst = arith.constant 0.000000e+00 : f32
    %3 = vector.broadcast %cst : f32 to vector<40x128xf32>
    %4 = vector.extract_strided_slice %1 {offsets = [0, 0], sizes = [40, 128], strides = [1, 1]} : vector<64x128xf32> to vector<40x128xf32>
    %5 = vector.extract_strided_slice %2 {offsets = [0, 0], sizes = [1, 128], strides = [1, 1]} : vector<25x128xf32> to vector<1x128xf32>
    %6 = vector.broadcast %5 : vector<1x128xf32> to vector<40x128xf32>
    %7 = arith.mulf %4, %6 : vector<40x128xf32>
    %8 = arith.addf %3, %7 : vector<40x128xf32>
    %9 = vector.extract_strided_slice %1 {offsets = [1, 0], sizes = [40, 128], strides = [1, 1]} : vector<64x128xf32> to vector<40x128xf32>
    %10 = vector.extract_strided_slice %2 {offsets = [1, 0], sizes = [1, 128], strides = [1, 1]} : vector<25x128xf32> to vector<1x128xf32>
    %11 = vector.broadcast %10 : vector<1x128xf32> to vector<40x128xf32>
    %12 = arith.mulf %9, %11 : vector<40x128xf32>
    %13 = arith.addf %8, %12 : vector<40x128xf32>
    %14 = vector.extract_strided_slice %1 {offsets = [2, 0], sizes = [40, 128], strides = [1, 1]} : vector<64x128xf32> to vector<40x128xf32>
    %15 = vector.extract_strided_slice %2 {offsets = [2, 0], sizes = [1, 128], strides = [1, 1]} : vector<25x128xf32> to vector<1x128xf32>
    %16 = vector.broadcast %15 : vector<1x128xf32> to vector<40x128xf32>
    %17 = arith.mulf %14, %16 : vector<40x128xf32>
    %18 = arith.addf %13, %17 : vector<40x128xf32>
    %19 = vector.extract_strided_slice %1 {offsets = [3, 0], sizes = [40, 128], strides = [1, 1]} : vector<64x128xf32> to vector<40x128xf32>
    %20 = vector.extract_strided_slice %2 {offsets = [3, 0], sizes = [1, 128], strides = [1, 1]} : vector<25x128xf32> to vector<1x128xf32>
    %21 = vector.broadcast %20 : vector<1x128xf32> to vector<40x128xf32>
    %22 = arith.mulf %19, %21 : vector<40x128xf32>
    %23 = arith.addf %18, %22 : vector<40x128xf32>
    %24 = vector.extract_strided_slice %1 {offsets = [4, 0], sizes = [40, 128], strides = [1, 1]} : vector<64x128xf32> to vector<40x128xf32>
    %25 = vector.extract_strided_slice %2 {offsets = [4, 0], sizes = [1, 128], strides = [1, 1]} : vector<25x128xf32> to vector<1x128xf32>
    %26 = vector.broadcast %25 : vector<1x128xf32> to vector<40x128xf32>
    %27 = arith.mulf %24, %26 : vector<40x128xf32>
    %28 = arith.addf %23, %27 : vector<40x128xf32>
    %29 = vector.extract_strided_slice %1 {offsets = [5, 0], sizes = [40, 128], strides = [1, 1]} : vector<64x128xf32> to vector<40x128xf32>
    %30 = vector.extract_strided_slice %2 {offsets = [5, 0], sizes = [1, 128], strides = [1, 1]} : vector<25x128xf32> to vector<1x128xf32>
    %31 = vector.broadcast %30 : vector<1x128xf32> to vector<40x128xf32>
    %32 = arith.mulf %29, %31 : vector<40x128xf32>
    %33 = arith.addf %28, %32 : vector<40x128xf32>
    %34 = vector.extract_strided_slice %1 {offsets = [6, 0], sizes = [40, 128], strides = [1, 1]} : vector<64x128xf32> to vector<40x128xf32>
    %35 = vector.extract_strided_slice %2 {offsets = [6, 0], sizes = [1, 128], strides = [1, 1]} : vector<25x128xf32> to vector<1x128xf32>
    %36 = vector.broadcast %35 : vector<1x128xf32> to vector<40x128xf32>
    %37 = arith.mulf %34, %36 : vector<40x128xf32>
    %38 = arith.addf %33, %37 : vector<40x128xf32>
    %39 = vector.extract_strided_slice %1 {offsets = [7, 0], sizes = [40, 128], strides = [1, 1]} : vector<64x128xf32> to vector<40x128xf32>
    %40 = vector.extract_strided_slice %2 {offsets = [7, 0], sizes = [1, 128], strides = [1, 1]} : vector<25x128xf32> to vector<1x128xf32>
    %41 = vector.broadcast %40 : vector<1x128xf32> to vector<40x128xf32>
    %42 = arith.mulf %39, %41 : vector<40x128xf32>
    %43 = arith.addf %38, %42 : vector<40x128xf32>
    %44 = vector.extract_strided_slice %1 {offsets = [8, 0], sizes = [40, 128], strides = [1, 1]} : vector<64x128xf32> to vector<40x128xf32>
    %45 = vector.extract_strided_slice %2 {offsets = [8, 0], sizes = [1, 128], strides = [1, 1]} : vector<25x128xf32> to vector<1x128xf32>
    %46 = vector.broadcast %45 : vector<1x128xf32> to vector<40x128xf32>
    %47 = arith.mulf %44, %46 : vector<40x128xf32>
    %48 = arith.addf %43, %47 : vector<40x128xf32>
    %49 = vector.extract_strided_slice %1 {offsets = [9, 0], sizes = [40, 128], strides = [1, 1]} : vector<64x128xf32> to vector<40x128xf32>
    %50 = vector.extract_strided_slice %2 {offsets = [9, 0], sizes = [1, 128], strides = [1, 1]} : vector<25x128xf32> to vector<1x128xf32>
    %51 = vector.broadcast %50 : vector<1x128xf32> to vector<40x128xf32>
    %52 = arith.mulf %49, %51 : vector<40x128xf32>
    %53 = arith.addf %48, %52 : vector<40x128xf32>
    %54 = vector.extract_strided_slice %1 {offsets = [10, 0], sizes = [40, 128], strides = [1, 1]} : vector<64x128xf32> to vector<40x128xf32>
    %55 = vector.extract_strided_slice %2 {offsets = [10, 0], sizes = [1, 128], strides = [1, 1]} : vector<25x128xf32> to vector<1x128xf32>
    %56 = vector.broadcast %55 : vector<1x128xf32> to vector<40x128xf32>
    %57 = arith.mulf %54, %56 : vector<40x128xf32>
    %58 = arith.addf %53, %57 : vector<40x128xf32>
    %59 = vector.extract_strided_slice %1 {offsets = [11, 0], sizes = [40, 128], strides = [1, 1]} : vector<64x128xf32> to vector<40x128xf32>
    %60 = vector.extract_strided_slice %2 {offsets = [11, 0], sizes = [1, 128], strides = [1, 1]} : vector<25x128xf32> to vector<1x128xf32>
    %61 = vector.broadcast %60 : vector<1x128xf32> to vector<40x128xf32>
    %62 = arith.mulf %59, %61 : vector<40x128xf32>
    %63 = arith.addf %58, %62 : vector<40x128xf32>
    %64 = vector.extract_strided_slice %1 {offsets = [12, 0], sizes = [40, 128], strides = [1, 1]} : vector<64x128xf32> to vector<40x128xf32>
    %65 = vector.extract_strided_slice %2 {offsets = [12, 0], sizes = [1, 128], strides = [1, 1]} : vector<25x128xf32> to vector<1x128xf32>
    %66 = vector.broadcast %65 : vector<1x128xf32> to vector<40x128xf32>
    %67 = arith.mulf %64, %66 : vector<40x128xf32>
    %68 = arith.addf %63, %67 : vector<40x128xf32>
    %69 = vector.extract_strided_slice %1 {offsets = [13, 0], sizes = [40, 128], strides = [1, 1]} : vector<64x128xf32> to vector<40x128xf32>
    %70 = vector.extract_strided_slice %2 {offsets = [13, 0], sizes = [1, 128], strides = [1, 1]} : vector<25x128xf32> to vector<1x128xf32>
    %71 = vector.broadcast %70 : vector<1x128xf32> to vector<40x128xf32>
    %72 = arith.mulf %69, %71 : vector<40x128xf32>
    %73 = arith.addf %68, %72 : vector<40x128xf32>
    %74 = vector.extract_strided_slice %1 {offsets = [14, 0], sizes = [40, 128], strides = [1, 1]} : vector<64x128xf32> to vector<40x128xf32>
    %75 = vector.extract_strided_slice %2 {offsets = [14, 0], sizes = [1, 128], strides = [1, 1]} : vector<25x128xf32> to vector<1x128xf32>
    %76 = vector.broadcast %75 : vector<1x128xf32> to vector<40x128xf32>
    %77 = arith.mulf %74, %76 : vector<40x128xf32>
    %78 = arith.addf %73, %77 : vector<40x128xf32>
    %79 = vector.extract_strided_slice %1 {offsets = [15, 0], sizes = [40, 128], strides = [1, 1]} : vector<64x128xf32> to vector<40x128xf32>
    %80 = vector.extract_strided_slice %2 {offsets = [15, 0], sizes = [1, 128], strides = [1, 1]} : vector<25x128xf32> to vector<1x128xf32>
    %81 = vector.broadcast %80 : vector<1x128xf32> to vector<40x128xf32>
    %82 = arith.mulf %79, %81 : vector<40x128xf32>
    %83 = arith.addf %78, %82 : vector<40x128xf32>
    %84 = vector.extract_strided_slice %1 {offsets = [16, 0], sizes = [40, 128], strides = [1, 1]} : vector<64x128xf32> to vector<40x128xf32>
    %85 = vector.extract_strided_slice %2 {offsets = [16, 0], sizes = [1, 128], strides = [1, 1]} : vector<25x128xf32> to vector<1x128xf32>
    %86 = vector.broadcast %85 : vector<1x128xf32> to vector<40x128xf32>
    %87 = arith.mulf %84, %86 : vector<40x128xf32>
    %88 = arith.addf %83, %87 : vector<40x128xf32>
    %89 = vector.extract_strided_slice %1 {offsets = [17, 0], sizes = [40, 128], strides = [1, 1]} : vector<64x128xf32> to vector<40x128xf32>
    %90 = vector.extract_strided_slice %2 {offsets = [17, 0], sizes = [1, 128], strides = [1, 1]} : vector<25x128xf32> to vector<1x128xf32>
    %91 = vector.broadcast %90 : vector<1x128xf32> to vector<40x128xf32>
    %92 = arith.mulf %89, %91 : vector<40x128xf32>
    %93 = arith.addf %88, %92 : vector<40x128xf32>
    %94 = vector.extract_strided_slice %1 {offsets = [18, 0], sizes = [40, 128], strides = [1, 1]} : vector<64x128xf32> to vector<40x128xf32>
    %95 = vector.extract_strided_slice %2 {offsets = [18, 0], sizes = [1, 128], strides = [1, 1]} : vector<25x128xf32> to vector<1x128xf32>
    %96 = vector.broadcast %95 : vector<1x128xf32> to vector<40x128xf32>
    %97 = arith.mulf %94, %96 : vector<40x128xf32>
    %98 = arith.addf %93, %97 : vector<40x128xf32>
    %99 = vector.extract_strided_slice %1 {offsets = [19, 0], sizes = [40, 128], strides = [1, 1]} : vector<64x128xf32> to vector<40x128xf32>
    %100 = vector.extract_strided_slice %2 {offsets = [19, 0], sizes = [1, 128], strides = [1, 1]} : vector<25x128xf32> to vector<1x128xf32>
    %101 = vector.broadcast %100 : vector<1x128xf32> to vector<40x128xf32>
    %102 = arith.mulf %99, %101 : vector<40x128xf32>
    %103 = arith.addf %98, %102 : vector<40x128xf32>
    %104 = vector.extract_strided_slice %1 {offsets = [20, 0], sizes = [40, 128], strides = [1, 1]} : vector<64x128xf32> to vector<40x128xf32>
    %105 = vector.extract_strided_slice %2 {offsets = [20, 0], sizes = [1, 128], strides = [1, 1]} : vector<25x128xf32> to vector<1x128xf32>
    %106 = vector.broadcast %105 : vector<1x128xf32> to vector<40x128xf32>
    %107 = arith.mulf %104, %106 : vector<40x128xf32>
    %108 = arith.addf %103, %107 : vector<40x128xf32>
    %109 = vector.extract_strided_slice %1 {offsets = [21, 0], sizes = [40, 128], strides = [1, 1]} : vector<64x128xf32> to vector<40x128xf32>
    %110 = vector.extract_strided_slice %2 {offsets = [21, 0], sizes = [1, 128], strides = [1, 1]} : vector<25x128xf32> to vector<1x128xf32>
    %111 = vector.broadcast %110 : vector<1x128xf32> to vector<40x128xf32>
    %112 = arith.mulf %109, %111 : vector<40x128xf32>
    %113 = arith.addf %108, %112 : vector<40x128xf32>
    %114 = vector.extract_strided_slice %1 {offsets = [22, 0], sizes = [40, 128], strides = [1, 1]} : vector<64x128xf32> to vector<40x128xf32>
    %115 = vector.extract_strided_slice %2 {offsets = [22, 0], sizes = [1, 128], strides = [1, 1]} : vector<25x128xf32> to vector<1x128xf32>
    %116 = vector.broadcast %115 : vector<1x128xf32> to vector<40x128xf32>
    %117 = arith.mulf %114, %116 : vector<40x128xf32>
    %118 = arith.addf %113, %117 : vector<40x128xf32>
    %119 = vector.extract_strided_slice %1 {offsets = [23, 0], sizes = [40, 128], strides = [1, 1]} : vector<64x128xf32> to vector<40x128xf32>
    %120 = vector.extract_strided_slice %2 {offsets = [23, 0], sizes = [1, 128], strides = [1, 1]} : vector<25x128xf32> to vector<1x128xf32>
    %121 = vector.broadcast %120 : vector<1x128xf32> to vector<40x128xf32>
    %122 = arith.mulf %119, %121 : vector<40x128xf32>
    %123 = arith.addf %118, %122 : vector<40x128xf32>
    %124 = vector.extract_strided_slice %1 {offsets = [24, 0], sizes = [40, 128], strides = [1, 1]} : vector<64x128xf32> to vector<40x128xf32>
    %125 = vector.extract_strided_slice %2 {offsets = [24, 0], sizes = [1, 128], strides = [1, 1]} : vector<25x128xf32> to vector<1x128xf32>
    %126 = vector.broadcast %125 : vector<1x128xf32> to vector<40x128xf32>
    %127 = arith.mulf %124, %126 : vector<40x128xf32>
    %128 = arith.addf %123, %127 : vector<40x128xf32>
    %c0_4 = arith.constant 0 : index
    %c0_5 = arith.constant 0 : index
    %129 = vector.load %arg3[%c0_4, %c0_5] : memref<1x128xf32, #tpu.memory_space<vmem>>, vector<1x128xf32>
    %130 = vector.broadcast %129 : vector<1x128xf32> to vector<40x128xf32>
    %131 = arith.addf %128, %130 : vector<40x128xf32>
    %132 = tpu.iota {dimensions = array<i32: 1>} : vector<1x128xi32>
    %c80_i32 = arith.constant 80 : i32
    %133 = vector.broadcast %c80_i32 : i32 to vector<1x128xi32>
    %134 = arith.cmpi slt, %132, %133 : vector<1x128xi32>
    %135 = arith.extui %134 : vector<1x128xi1> to vector<1x128xi32>
    %136 = arith.sitofp %135 : vector<1x128xi32> to vector<1x128xf32>
    %cst_6 = arith.constant dense<0.000000e+00> : vector<40xf32>
    %137 = vector.multi_reduction <add>, %131, %cst_6 [1] : vector<40x128xf32> to vector<40xf32>
    %138 = vector.shape_cast %137 : vector<40xf32> to vector<40x1xf32>
    %cst_7 = arith.constant 1.250000e-02 : f32
    %139 = vector.broadcast %cst_7 : f32 to vector<40x1xf32>
    %140 = arith.mulf %138, %139 : vector<40x1xf32>
    %141 = vector.broadcast %140 : vector<40x1xf32> to vector<40x128xf32>
    %142 = arith.subf %131, %141 : vector<40x128xf32>
    %143 = vector.broadcast %136 : vector<1x128xf32> to vector<40x128xf32>
    %144 = arith.mulf %142, %143 : vector<40x128xf32>
    %145 = arith.mulf %144, %144 : vector<40x128xf32>
    %cst_8 = arith.constant dense<0.000000e+00> : vector<40xf32>
    %146 = vector.multi_reduction <add>, %145, %cst_8 [1] : vector<40x128xf32> to vector<40xf32>
    %147 = vector.shape_cast %146 : vector<40xf32> to vector<40x1xf32>
    %cst_9 = arith.constant 1.250000e-02 : f32
    %148 = vector.broadcast %cst_9 : f32 to vector<40x1xf32>
    %149 = arith.mulf %147, %148 : vector<40x1xf32>
    %cst_10 = arith.constant 9.99999974E-6 : f32
    %150 = vector.broadcast %cst_10 : f32 to vector<40x1xf32>
    %151 = arith.addf %149, %150 : vector<40x1xf32>
    %152 = math.rsqrt %151 : vector<40x1xf32>
    %153 = vector.broadcast %152 : vector<40x1xf32> to vector<40x128xf32>
    %154 = arith.mulf %144, %153 : vector<40x128xf32>
    %c0_11 = arith.constant 0 : index
    %c0_12 = arith.constant 0 : index
    %155 = vector.load %arg4[%c0_11, %c0_12] : memref<1x128xf32, #tpu.memory_space<vmem>>, vector<1x128xf32>
    %156 = vector.broadcast %155 : vector<1x128xf32> to vector<40x128xf32>
    %157 = arith.mulf %154, %156 : vector<40x128xf32>
    %c0_13 = arith.constant 0 : index
    %c0_14 = arith.constant 0 : index
    %158 = vector.load %arg5[%c0_13, %c0_14] : memref<1x128xf32, #tpu.memory_space<vmem>>, vector<1x128xf32>
    %159 = vector.broadcast %158 : vector<1x128xf32> to vector<40x128xf32>
    %160 = arith.addf %157, %159 : vector<40x128xf32>
    %cst_15 = arith.constant 0.000000e+00 : f32
    %161 = vector.broadcast %cst_15 : f32 to vector<40x128xf32>
    %162 = arith.maximumf %160, %161 : vector<40x128xf32>
    %c1_i32 = arith.constant 1 : i32
    %163 = tpu.dynamic_rotate %162 by %c1_i32 dim 1 : vector<40x128xf32>, i32 -> vector<40x128xf32>
    %c127_i32 = arith.constant 127 : i32
    %164 = tpu.dynamic_rotate %162 by %c127_i32 dim 1 : vector<40x128xf32>, i32 -> vector<40x128xf32>
    %165 = arith.addf %162, %163 : vector<40x128xf32>
    %166 = arith.addf %165, %164 : vector<40x128xf32>
    %cst_16 = arith.constant 0.333333343 : f32
    %167 = vector.broadcast %cst_16 : f32 to vector<1x128xf32>
    %168 = arith.mulf %136, %167 : vector<1x128xf32>
    %169 = vector.broadcast %168 : vector<1x128xf32> to vector<40x128xf32>
    %170 = arith.mulf %166, %169 : vector<40x128xf32>
    %171 = tpu.iota {dimensions = array<i32: 0>} : vector<40x1xi32>
    %c12_i32 = arith.constant 12 : i32
    %172 = vector.broadcast %c12_i32 : i32 to vector<40x1xi32>
    %173 = arith.cmpi sge, %171, %172 : vector<40x1xi32>
    %c28_i32 = arith.constant 28 : i32
    %174 = vector.broadcast %c28_i32 : i32 to vector<40x1xi32>
    %175 = arith.cmpi slt, %171, %174 : vector<40x1xi32>
    %176 = arith.andi %173, %175 : vector<40x1xi1>
    %177 = arith.extui %176 : vector<40x1xi1> to vector<40x1xi32>
    %178 = arith.sitofp %177 : vector<40x1xi32> to vector<40x1xf32>
    %179 = vector.broadcast %178 : vector<40x1xf32> to vector<40x128xf32>
    %180 = arith.mulf %170, %179 : vector<40x128xf32>
    %181 = vector.extract_strided_slice %180 {offsets = [0, 0], sizes = [16, 128], strides = [1, 1]} : vector<40x128xf32> to vector<16x128xf32>
    %c0_17 = arith.constant 0 : index
    %c0_18 = arith.constant 0 : index
    %182 = vector.load %arg11[%c0_17, %c0_18] : memref<16x3200xf32, #tpu.memory_space<vmem>>, vector<16x128xf32>
    tpu.vector_store %arg11[%c0_17, %c0_18], %181 {strides = array<i32>} : memref<16x3200xf32, #tpu.memory_space<vmem>>, vector<16x128xf32>,
    %183 = vector.extract_strided_slice %180 {offsets = [1, 0], sizes = [16, 128], strides = [1, 1]} : vector<40x128xf32> to vector<16x128xf32>
    %c0_19 = arith.constant 0 : index
    %c128 = arith.constant 128 : index
    %184 = vector.load %arg11[%c0_19, %c128] : memref<16x3200xf32, #tpu.memory_space<vmem>>, vector<16x128xf32>
    tpu.vector_store %arg11[%c0_19, %c128], %183 {strides = array<i32>} : memref<16x3200xf32, #tpu.memory_space<vmem>>, vector<16x128xf32>,
    %185 = vector.extract_strided_slice %180 {offsets = [2, 0], sizes = [16, 128], strides = [1, 1]} : vector<40x128xf32> to vector<16x128xf32>
    %c0_20 = arith.constant 0 : index
    %c256 = arith.constant 256 : index
    %186 = vector.load %arg11[%c0_20, %c256] : memref<16x3200xf32, #tpu.memory_space<vmem>>, vector<16x128xf32>
    tpu.vector_store %arg11[%c0_20, %c256], %185 {strides = array<i32>} : memref<16x3200xf32, #tpu.memory_space<vmem>>, vector<16x128xf32>,
    %187 = vector.extract_strided_slice %180 {offsets = [3, 0], sizes = [16, 128], strides = [1, 1]} : vector<40x128xf32> to vector<16x128xf32>
    %c0_21 = arith.constant 0 : index
    %c384 = arith.constant 384 : index
    %188 = vector.load %arg11[%c0_21, %c384] : memref<16x3200xf32, #tpu.memory_space<vmem>>, vector<16x128xf32>
    tpu.vector_store %arg11[%c0_21, %c384], %187 {strides = array<i32>} : memref<16x3200xf32, #tpu.memory_space<vmem>>, vector<16x128xf32>,
    %189 = vector.extract_strided_slice %180 {offsets = [4, 0], sizes = [16, 128], strides = [1, 1]} : vector<40x128xf32> to vector<16x128xf32>
    %c0_22 = arith.constant 0 : index
    %c512 = arith.constant 512 : index
    %190 = vector.load %arg11[%c0_22, %c512] : memref<16x3200xf32, #tpu.memory_space<vmem>>, vector<16x128xf32>
    tpu.vector_store %arg11[%c0_22, %c512], %189 {strides = array<i32>} : memref<16x3200xf32, #tpu.memory_space<vmem>>, vector<16x128xf32>,
    %191 = vector.extract_strided_slice %180 {offsets = [5, 0], sizes = [16, 128], strides = [1, 1]} : vector<40x128xf32> to vector<16x128xf32>
    %c0_23 = arith.constant 0 : index
    %c640 = arith.constant 640 : index
    %192 = vector.load %arg11[%c0_23, %c640] : memref<16x3200xf32, #tpu.memory_space<vmem>>, vector<16x128xf32>
    tpu.vector_store %arg11[%c0_23, %c640], %191 {strides = array<i32>} : memref<16x3200xf32, #tpu.memory_space<vmem>>, vector<16x128xf32>,
    %193 = vector.extract_strided_slice %180 {offsets = [6, 0], sizes = [16, 128], strides = [1, 1]} : vector<40x128xf32> to vector<16x128xf32>
    %c0_24 = arith.constant 0 : index
    %c768 = arith.constant 768 : index
    %194 = vector.load %arg11[%c0_24, %c768] : memref<16x3200xf32, #tpu.memory_space<vmem>>, vector<16x128xf32>
    tpu.vector_store %arg11[%c0_24, %c768], %193 {strides = array<i32>} : memref<16x3200xf32, #tpu.memory_space<vmem>>, vector<16x128xf32>,
    %195 = vector.extract_strided_slice %180 {offsets = [7, 0], sizes = [16, 128], strides = [1, 1]} : vector<40x128xf32> to vector<16x128xf32>
    %c0_25 = arith.constant 0 : index
    %c896 = arith.constant 896 : index
    %196 = vector.load %arg11[%c0_25, %c896] : memref<16x3200xf32, #tpu.memory_space<vmem>>, vector<16x128xf32>
    tpu.vector_store %arg11[%c0_25, %c896], %195 {strides = array<i32>} : memref<16x3200xf32, #tpu.memory_space<vmem>>, vector<16x128xf32>,
    %197 = vector.extract_strided_slice %180 {offsets = [8, 0], sizes = [16, 128], strides = [1, 1]} : vector<40x128xf32> to vector<16x128xf32>
    %c0_26 = arith.constant 0 : index
    %c1024 = arith.constant 1024 : index
    %198 = vector.load %arg11[%c0_26, %c1024] : memref<16x3200xf32, #tpu.memory_space<vmem>>, vector<16x128xf32>
    tpu.vector_store %arg11[%c0_26, %c1024], %197 {strides = array<i32>} : memref<16x3200xf32, #tpu.memory_space<vmem>>, vector<16x128xf32>,
    %199 = vector.extract_strided_slice %180 {offsets = [9, 0], sizes = [16, 128], strides = [1, 1]} : vector<40x128xf32> to vector<16x128xf32>
    %c0_27 = arith.constant 0 : index
    %c1152 = arith.constant 1152 : index
    %200 = vector.load %arg11[%c0_27, %c1152] : memref<16x3200xf32, #tpu.memory_space<vmem>>, vector<16x128xf32>
    tpu.vector_store %arg11[%c0_27, %c1152], %199 {strides = array<i32>} : memref<16x3200xf32, #tpu.memory_space<vmem>>, vector<16x128xf32>,
    %201 = vector.extract_strided_slice %180 {offsets = [10, 0], sizes = [16, 128], strides = [1, 1]} : vector<40x128xf32> to vector<16x128xf32>
    %c0_28 = arith.constant 0 : index
    %c1280 = arith.constant 1280 : index
    %202 = vector.load %arg11[%c0_28, %c1280] : memref<16x3200xf32, #tpu.memory_space<vmem>>, vector<16x128xf32>
    tpu.vector_store %arg11[%c0_28, %c1280], %201 {strides = array<i32>} : memref<16x3200xf32, #tpu.memory_space<vmem>>, vector<16x128xf32>,
    %203 = vector.extract_strided_slice %180 {offsets = [11, 0], sizes = [16, 128], strides = [1, 1]} : vector<40x128xf32> to vector<16x128xf32>
    %c0_29 = arith.constant 0 : index
    %c1408 = arith.constant 1408 : index
    %204 = vector.load %arg11[%c0_29, %c1408] : memref<16x3200xf32, #tpu.memory_space<vmem>>, vector<16x128xf32>
    tpu.vector_store %arg11[%c0_29, %c1408], %203 {strides = array<i32>} : memref<16x3200xf32, #tpu.memory_space<vmem>>, vector<16x128xf32>,
    %205 = vector.extract_strided_slice %180 {offsets = [12, 0], sizes = [16, 128], strides = [1, 1]} : vector<40x128xf32> to vector<16x128xf32>
    %c0_30 = arith.constant 0 : index
    %c1536 = arith.constant 1536 : index
    %206 = vector.load %arg11[%c0_30, %c1536] : memref<16x3200xf32, #tpu.memory_space<vmem>>, vector<16x128xf32>
    tpu.vector_store %arg11[%c0_30, %c1536], %205 {strides = array<i32>} : memref<16x3200xf32, #tpu.memory_space<vmem>>, vector<16x128xf32>,
    %207 = vector.extract_strided_slice %180 {offsets = [13, 0], sizes = [16, 128], strides = [1, 1]} : vector<40x128xf32> to vector<16x128xf32>
    %c0_31 = arith.constant 0 : index
    %c1664 = arith.constant 1664 : index
    %208 = vector.load %arg11[%c0_31, %c1664] : memref<16x3200xf32, #tpu.memory_space<vmem>>, vector<16x128xf32>
    tpu.vector_store %arg11[%c0_31, %c1664], %207 {strides = array<i32>} : memref<16x3200xf32, #tpu.memory_space<vmem>>, vector<16x128xf32>,
    %209 = vector.extract_strided_slice %180 {offsets = [14, 0], sizes = [16, 128], strides = [1, 1]} : vector<40x128xf32> to vector<16x128xf32>
    %c0_32 = arith.constant 0 : index
    %c1792 = arith.constant 1792 : index
    %210 = vector.load %arg11[%c0_32, %c1792] : memref<16x3200xf32, #tpu.memory_space<vmem>>, vector<16x128xf32>
    tpu.vector_store %arg11[%c0_32, %c1792], %209 {strides = array<i32>} : memref<16x3200xf32, #tpu.memory_space<vmem>>, vector<16x128xf32>,
    %211 = vector.extract_strided_slice %180 {offsets = [15, 0], sizes = [16, 128], strides = [1, 1]} : vector<40x128xf32> to vector<16x128xf32>
    %c0_33 = arith.constant 0 : index
    %c1920 = arith.constant 1920 : index
    %212 = vector.load %arg11[%c0_33, %c1920] : memref<16x3200xf32, #tpu.memory_space<vmem>>, vector<16x128xf32>
    tpu.vector_store %arg11[%c0_33, %c1920], %211 {strides = array<i32>} : memref<16x3200xf32, #tpu.memory_space<vmem>>, vector<16x128xf32>,
    %213 = vector.extract_strided_slice %180 {offsets = [16, 0], sizes = [16, 128], strides = [1, 1]} : vector<40x128xf32> to vector<16x128xf32>
    %c0_34 = arith.constant 0 : index
    %c2048 = arith.constant 2048 : index
    %214 = vector.load %arg11[%c0_34, %c2048] : memref<16x3200xf32, #tpu.memory_space<vmem>>, vector<16x128xf32>
    tpu.vector_store %arg11[%c0_34, %c2048], %213 {strides = array<i32>} : memref<16x3200xf32, #tpu.memory_space<vmem>>, vector<16x128xf32>,
    %215 = vector.extract_strided_slice %180 {offsets = [17, 0], sizes = [16, 128], strides = [1, 1]} : vector<40x128xf32> to vector<16x128xf32>
    %c0_35 = arith.constant 0 : index
    %c2176 = arith.constant 2176 : index
    %216 = vector.load %arg11[%c0_35, %c2176] : memref<16x3200xf32, #tpu.memory_space<vmem>>, vector<16x128xf32>
    tpu.vector_store %arg11[%c0_35, %c2176], %215 {strides = array<i32>} : memref<16x3200xf32, #tpu.memory_space<vmem>>, vector<16x128xf32>,
    %217 = vector.extract_strided_slice %180 {offsets = [18, 0], sizes = [16, 128], strides = [1, 1]} : vector<40x128xf32> to vector<16x128xf32>
    %c0_36 = arith.constant 0 : index
    %c2304 = arith.constant 2304 : index
    %218 = vector.load %arg11[%c0_36, %c2304] : memref<16x3200xf32, #tpu.memory_space<vmem>>, vector<16x128xf32>
    tpu.vector_store %arg11[%c0_36, %c2304], %217 {strides = array<i32>} : memref<16x3200xf32, #tpu.memory_space<vmem>>, vector<16x128xf32>,
    %219 = vector.extract_strided_slice %180 {offsets = [19, 0], sizes = [16, 128], strides = [1, 1]} : vector<40x128xf32> to vector<16x128xf32>
    %c0_37 = arith.constant 0 : index
    %c2432 = arith.constant 2432 : index
    %220 = vector.load %arg11[%c0_37, %c2432] : memref<16x3200xf32, #tpu.memory_space<vmem>>, vector<16x128xf32>
    tpu.vector_store %arg11[%c0_37, %c2432], %219 {strides = array<i32>} : memref<16x3200xf32, #tpu.memory_space<vmem>>, vector<16x128xf32>,
    %221 = vector.extract_strided_slice %180 {offsets = [20, 0], sizes = [16, 128], strides = [1, 1]} : vector<40x128xf32> to vector<16x128xf32>
    %c0_38 = arith.constant 0 : index
    %c2560 = arith.constant 2560 : index
    %222 = vector.load %arg11[%c0_38, %c2560] : memref<16x3200xf32, #tpu.memory_space<vmem>>, vector<16x128xf32>
    tpu.vector_store %arg11[%c0_38, %c2560], %221 {strides = array<i32>} : memref<16x3200xf32, #tpu.memory_space<vmem>>, vector<16x128xf32>,
    %223 = vector.extract_strided_slice %180 {offsets = [21, 0], sizes = [16, 128], strides = [1, 1]} : vector<40x128xf32> to vector<16x128xf32>
    %c0_39 = arith.constant 0 : index
    %c2688 = arith.constant 2688 : index
    %224 = vector.load %arg11[%c0_39, %c2688] : memref<16x3200xf32, #tpu.memory_space<vmem>>, vector<16x128xf32>
    tpu.vector_store %arg11[%c0_39, %c2688], %223 {strides = array<i32>} : memref<16x3200xf32, #tpu.memory_space<vmem>>, vector<16x128xf32>,
    %225 = vector.extract_strided_slice %180 {offsets = [22, 0], sizes = [16, 128], strides = [1, 1]} : vector<40x128xf32> to vector<16x128xf32>
    %c0_40 = arith.constant 0 : index
    %c2816 = arith.constant 2816 : index
    %226 = vector.load %arg11[%c0_40, %c2816] : memref<16x3200xf32, #tpu.memory_space<vmem>>, vector<16x128xf32>
    tpu.vector_store %arg11[%c0_40, %c2816], %225 {strides = array<i32>} : memref<16x3200xf32, #tpu.memory_space<vmem>>, vector<16x128xf32>,
    %227 = vector.extract_strided_slice %180 {offsets = [23, 0], sizes = [16, 128], strides = [1, 1]} : vector<40x128xf32> to vector<16x128xf32>
    %c0_41 = arith.constant 0 : index
    %c2944 = arith.constant 2944 : index
    %228 = vector.load %arg11[%c0_41, %c2944] : memref<16x3200xf32, #tpu.memory_space<vmem>>, vector<16x128xf32>
    tpu.vector_store %arg11[%c0_41, %c2944], %227 {strides = array<i32>} : memref<16x3200xf32, #tpu.memory_space<vmem>>, vector<16x128xf32>,
    %229 = vector.extract_strided_slice %180 {offsets = [24, 0], sizes = [16, 128], strides = [1, 1]} : vector<40x128xf32> to vector<16x128xf32>
    %c0_42 = arith.constant 0 : index
    %c3072 = arith.constant 3072 : index
    %230 = vector.load %arg11[%c0_42, %c3072] : memref<16x3200xf32, #tpu.memory_space<vmem>>, vector<16x128xf32>
    tpu.vector_store %arg11[%c0_42, %c3072], %229 {strides = array<i32>} : memref<16x3200xf32, #tpu.memory_space<vmem>>, vector<16x128xf32>,
    %c0_43 = arith.constant 0 : index
    %c0_44 = arith.constant 0 : index
    %231 = vector.load %arg11[%c0_43, %c0_44] : memref<16x3200xf32, #tpu.memory_space<vmem>>, vector<16x3200xf32>
    %c0_45 = arith.constant 0 : index
    %c0_46 = arith.constant 0 : index
    %232 = vector.load %arg6[%c0_45, %c0_46] : memref<3200x32xf32, #tpu.memory_space<vmem>>, vector<3200x32xf32>
    %cst_47 = arith.constant dense<0.000000e+00> : vector<16x32xf32>
    %233 = tpu.matmul %231, %232, %cst_47 {dimension_numbers = #tpu.dot_dimension_numbers<[1], [0], [0], [1], [0, 0, 1, 1], [], []>} : vector<16x3200xf32>, vector<3200x32xf32>, vector<16x32xf32> -> vector<16x32xf32>
    %c0_48 = arith.constant 0 : index
    %c0_49 = arith.constant 0 : index
    %234 = vector.load %arg7[%c0_48, %c0_49] : memref<1x32xf32, #tpu.memory_space<vmem>>, vector<1x32xf32>
    %235 = vector.broadcast %234 : vector<1x32xf32> to vector<16x32xf32>
    %236 = arith.addf %233, %235 : vector<16x32xf32>
    %cst_50 = arith.constant dense<0.000000e+00> : vector<16xf32>
    %237 = vector.multi_reduction <add>, %236, %cst_50 [1] : vector<16x32xf32> to vector<16xf32>
    %238 = vector.shape_cast %237 : vector<16xf32> to vector<16x1xf32>
    %cst_51 = arith.constant 3.200000e+01 : f32
    %239 = vector.broadcast %cst_51 : f32 to vector<16x1xf32>
    %240 = arith.divf %238, %239 : vector<16x1xf32>
    %241 = vector.broadcast %240 : vector<16x1xf32> to vector<16x32xf32>
    %242 = arith.subf %236, %241 : vector<16x32xf32>
    %243 = arith.mulf %242, %242 : vector<16x32xf32>
    %cst_52 = arith.constant dense<0.000000e+00> : vector<16xf32>
    %244 = vector.multi_reduction <add>, %243, %cst_52 [1] : vector<16x32xf32> to vector<16xf32>
    %245 = vector.shape_cast %244 : vector<16xf32> to vector<16x1xf32>
    %cst_53 = arith.constant 3.200000e+01 : f32
    %246 = vector.broadcast %cst_53 : f32 to vector<16x1xf32>
    %247 = arith.divf %245, %246 : vector<16x1xf32>
    %cst_54 = arith.constant 9.99999974E-6 : f32
    %248 = vector.broadcast %cst_54 : f32 to vector<16x1xf32>
    %249 = arith.addf %247, %248 : vector<16x1xf32>
    %250 = math.rsqrt %249 : vector<16x1xf32>
    %251 = vector.broadcast %250 : vector<16x1xf32> to vector<16x32xf32>
    %252 = arith.mulf %242, %251 : vector<16x32xf32>
    %c0_55 = arith.constant 0 : index
    %c0_56 = arith.constant 0 : index
    %253 = vector.load %arg8[%c0_55, %c0_56] : memref<1x32xf32, #tpu.memory_space<vmem>>, vector<1x32xf32>
    %254 = vector.broadcast %253 : vector<1x32xf32> to vector<16x32xf32>
    %255 = arith.mulf %252, %254 : vector<16x32xf32>
    %c0_57 = arith.constant 0 : index
    %c0_58 = arith.constant 0 : index
    %256 = vector.load %arg9[%c0_57, %c0_58] : memref<1x32xf32, #tpu.memory_space<vmem>>, vector<1x32xf32>
    %257 = vector.broadcast %256 : vector<1x32xf32> to vector<16x32xf32>
    %258 = arith.addf %255, %257 : vector<16x32xf32>
    %259 = arith.negf %258 : vector<16x32xf32>
    %260 = math.exp %259 : vector<16x32xf32>
    %cst_59 = arith.constant 1.000000e+00 : f32
    %261 = vector.broadcast %cst_59 : f32 to vector<16x32xf32>
    %262 = arith.addf %261, %260 : vector<16x32xf32>
    %263 = arith.divf %261, %262 : vector<16x32xf32>
    %264 = vector.extract_strided_slice %180 {offsets = [12, 0], sizes = [16, 80], strides = [1, 1]} : vector<40x128xf32> to vector<16x80xf32>
    %cst_60 = arith.constant 0.000000e+00 : f32
    %265 = vector.broadcast %cst_60 : f32 to vector<16x16xf32>
    %266 = tpu.concatenate %264, %263, %265 in 1 : vector<16x80xf32>, vector<16x32xf32>, vector<16x16xf32> -> vector<16x128xf32>
    %c0_61 = arith.constant 0 : index
    %c0_62 = arith.constant 0 : index
    %c0_63 = arith.constant 0 : index
    %267 = vector.load %arg10[%c0_61, %c0_62, %c0_63] : memref<1x16x128xf32, #tpu.memory_space<vmem>>, vector<1x16x128xf32>
    %268 = vector.shape_cast %267 : vector<1x16x128xf32> to vector<16x128xf32>
    %269 = vector.shape_cast %266 : vector<16x128xf32> to vector<1x16x128xf32>
    tpu.vector_store %arg10[%c0_61, %c0_62, %c0_63], %269 {strides = array<i32>} : memref<1x16x128xf32, #tpu.memory_space<vmem>>, vector<1x16x128xf32>,
    return
  }
  func.func @transform_0(%arg0: i32) -> (i32, i32, i32) {
    %c0_i32 = arith.constant 0 : i32
    %c0_i32_0 = arith.constant 0 : i32
    %c0_i32_1 = arith.constant 0 : i32
    return %arg0, %c0_i32, %c0_i32_0 : i32, i32, i32
  }
  func.func @transform_1(%arg0: i32) -> (i32, i32) {
    %c0_i32 = arith.constant 0 : i32
    %c0_i32_0 = arith.constant 0 : i32
    %c0_i32_1 = arith.constant 0 : i32
    return %c0_i32, %c0_i32_0 : i32, i32
  }
  func.func @transform_2(%arg0: i32) -> (i32, i32) {
    %c0_i32 = arith.constant 0 : i32
    %c0_i32_0 = arith.constant 0 : i32
    %c0_i32_1 = arith.constant 0 : i32
    return %c0_i32, %c0_i32_0 : i32, i32
  }
  func.func @transform_3(%arg0: i32) -> (i32, i32) {
    %c0_i32 = arith.constant 0 : i32
    %c0_i32_0 = arith.constant 0 : i32
    %c0_i32_1 = arith.constant 0 : i32
    return %c0_i32, %c0_i32_0 : i32, i32
  }
  func.func @transform_4(%arg0: i32) -> (i32, i32) {
    %c0_i32 = arith.constant 0 : i32
    %c0_i32_0 = arith.constant 0 : i32
    %c0_i32_1 = arith.constant 0 : i32
    return %c0_i32, %c0_i32_0 : i32, i32
  }
  func.func @transform_5(%arg0: i32) -> (i32, i32) {
    %c0_i32 = arith.constant 0 : i32
    %c0_i32_0 = arith.constant 0 : i32
    %c0_i32_1 = arith.constant 0 : i32
    return %c0_i32, %c0_i32_0 : i32, i32
  }
  func.func @transform_6(%arg0: i32) -> (i32, i32) {
    %c0_i32 = arith.constant 0 : i32
    %c0_i32_0 = arith.constant 0 : i32
    %c0_i32_1 = arith.constant 0 : i32
    return %c0_i32, %c0_i32_0 : i32, i32
  }
  func.func @transform_7(%arg0: i32) -> (i32, i32) {
    %c0_i32 = arith.constant 0 : i32
    %c0_i32_0 = arith.constant 0 : i32
    %c0_i32_1 = arith.constant 0 : i32
    return %c0_i32, %c0_i32_0 : i32, i32
  }
  func.func @transform_8(%arg0: i32) -> (i32, i32) {
    %c0_i32 = arith.constant 0 : i32
    %c0_i32_0 = arith.constant 0 : i32
    %c0_i32_1 = arith.constant 0 : i32
    return %c0_i32, %c0_i32_0 : i32, i32
  }
  func.func @transform_9(%arg0: i32) -> (i32, i32, i32) {
    %c0_i32 = arith.constant 0 : i32
    %c0_i32_0 = arith.constant 0 : i32
    %c0_i32_1 = arith.constant 0 : i32
    return %arg0, %c0_i32, %c0_i32_0 : i32, i32, i32
  }
}

</mosaic_0001>

<llo_original>
// kernel: pose_encoder_no_pool.1
$region0: #{pose_encoder_no_pool.1}
  #allocation0 [shape = 'u32[]', space=smem, size = 0x4, offset = 0x4, fixed_abs, tag = 'smem constant byte address 0x4 - core index']
  #allocation1 [shape = 'u32[144,128]{1,0:T(1,128)}', space=vmem, size = 0x12000, scoped, tag = 'internal scratch']
  #allocation2 [shape = 'f32[16,3200]{1,0:T(8,128)}', space=vmem, size = 0x32000, scoped, tag = 'scratch operand']
  %s0 = inlined_call_operand.vmem [shape: f32[2,64,128], index: 0, kind: input, shape index: {}]
  %s1 = inlined_call_operand.vmem [shape: f32[25,128], index: 1, kind: input, shape index: {}]
  %s2 = inlined_call_operand.vmem [shape: f32[1,128], index: 2, kind: input, shape index: {}]
  %s3 = inlined_call_operand.vmem [shape: f32[1,128], index: 3, kind: input, shape index: {}]
  %s4 = inlined_call_operand.vmem [shape: f32[1,128], index: 4, kind: input, shape index: {}]
  %s5 = inlined_call_operand.vmem [shape: f32[3200,32], index: 5, kind: input, shape index: {}]
  %s6 = inlined_call_operand.vmem [shape: f32[1,32], index: 6, kind: input, shape index: {}]
  %s7 = inlined_call_operand.vmem [shape: f32[1,32], index: 7, kind: input, shape index: {}]
  %s8 = inlined_call_operand.vmem [shape: f32[1,32], index: 8, kind: input, shape index: {}]
  %s9 = inlined_call_operand.vmem [shape: f32[2,16,128], index: 9, kind: output, shape index: {}]
  %s10 = sld [smem:[#allocation0]]
  $region69: #{pose_encoder_no_pool.1} parent=0
    _
  %s12 = ssub.s32 1, %s10
  %s13 = scalar_select 0, %s12, %s10
  loop: start=0, step=1, limit=4
  $region2: #{pose_encoder_no_pool.1} parent=0 // loop_pre_header
    _
  $region3: #{pose_encoder_no_pool.1} parent=0 // loop_header
    %s15 = sphi 0, %s19
    %p16 = scmp.ge.s32.totalorder %s15, 4
    %s25 = sphi 0, %s27
    %s28 = sphi 0, %s25
    %s29 = sphi 0, %s28
    %s45 = sphi 0, %s29
    %s49 = sphi 0, %s49
    %s51 = sphi 0, %s49
    %s52 = sphi 0, %s51
    %s66 = sphi 0, %s52
    %s70 = sphi 0, %s70
    %s72 = sphi 0, %s70
    %s73 = sphi 0, %s72
    %s87 = sphi 0, %s73
    %s91 = sphi 0, %s91
    %s93 = sphi 0, %s91
    %s94 = sphi 0, %s93
    %s108 = sphi 0, %s94
    %s112 = sphi 0, %s112
    %s114 = sphi 0, %s112
    %s115 = sphi 0, %s114
    %s129 = sphi 0, %s115
    %s133 = sphi 0, %s133
    %s135 = sphi 0, %s133
    %s136 = sphi 0, %s135
    %s150 = sphi 0, %s136
    %s154 = sphi 0, %s154
    %s156 = sphi 0, %s154
    %s157 = sphi 0, %s156
    %s171 = sphi 0, %s157
    %s175 = sphi 0, %s175
    %s177 = sphi 0, %s175
    %s178 = sphi 0, %s177
    %s192 = sphi 0, %s178
    %s196 = sphi 0, %s196
    %s198 = sphi 0, %s196
    %s199 = sphi 0, %s198
    %s213 = sphi 0, %s199
    %s219 = sphi 0, %s221
    %s222 = sphi 0, %s219
    %s223 = sphi 0, %s222
    %s239 = sphi 0, %s223
  $region4: #{pose_encoder_no_pool.1} parent=0 // loop_header_branch
    %18 = sbr.rel (%p16) target = $region8
  $region5: #{pose_encoder_no_pool.1} parent=0 // loop_body
    %s20 = ssub.s32 %s15, 1
    %s21 = ssub.s32 %s15, 2
    %s22 = sadd.s32 %s15, 1
    %s23 = ssub.s32 %s15, %s22
    %p24 = scmp.eq.s32.totalorder %s23, 0
    %s26 = sadd.s32 %s25, 1
    %s27 = scalar_select %p24, %s25, %s26
    %p30 = pneg %p24
    %p31 = scmp.eq.s32.totalorder %s15, 1
    %p32 = por %p30, %p31
    %p33 = scmp.ne.s32.totalorder %s25, %s28
    %p34 = scmp.eq.s32.totalorder %s15, 0
    %p35 = por %p33, %p34
    %p36 = scmp.ne.s32.totalorder %s25, %s28
    %p37 = scmp.eq.s32.totalorder %s20, 1
    %p38 = por %p36, %p37
    %p39 = scmp.ne.s32.totalorder %s28, %s29
    %p40 = scmp.eq.s32.totalorder %s20, 0
    %p41 = por %p39, %p40
    %p42 = scmp.ne.s32.totalorder %s28, %s29
    %p43 = scmp.eq.s32.totalorder %s21, 1
    %p44 = por %p42, %p43
    %p46 = scmp.ne.s32.totalorder %s29, %s45
    %p47 = scmp.eq.s32.totalorder %s21, 0
    %p48 = por %p46, %p47
    %s50 = sadd.s32 %s49, 1
    %p53 = scmp.eq.s32.totalorder %s15, 1
    %p54 = scmp.ne.s32.totalorder %s49, %s51
    %p55 = scmp.eq.s32.totalorder %s15, 0
    %p56 = por %p54, %p55
    %p57 = scmp.ne.s32.totalorder %s49, %s51
    %p58 = scmp.eq.s32.totalorder %s20, 1
    %p59 = por %p57, %p58
    %p60 = scmp.ne.s32.totalorder %s51, %s52
    %p61 = scmp.eq.s32.totalorder %s20, 0
    %p62 = por %p60, %p61
    %p63 = scmp.ne.s32.totalorder %s51, %s52
    %p64 = scmp.eq.s32.totalorder %s21, 1
    %p65 = por %p63, %p64
    %p67 = scmp.ne.s32.totalorder %s52, %s66
    %p68 = scmp.eq.s32.totalorder %s21, 0
    %p69 = por %p67, %p68
    %s71 = sadd.s32 %s70, 1
    %p74 = scmp.eq.s32.totalorder %s15, 1
    %p75 = scmp.ne.s32.totalorder %s70, %s72
    %p76 = scmp.eq.s32.totalorder %s15, 0
    %p77 = por %p75, %p76
    %p78 = scmp.ne.s32.totalorder %s70, %s72
    %p79 = scmp.eq.s32.totalorder %s20, 1
    %p80 = por %p78, %p79
    %p81 = scmp.ne.s32.totalorder %s72, %s73
    %p82 = scmp.eq.s32.totalorder %s20, 0
    %p83 = por %p81, %p82
    %p84 = scmp.ne.s32.totalorder %s72, %s73
    %p85 = scmp.eq.s32.totalorder %s21, 1
    %p86 = por %p84, %p85
    %p88 = scmp.ne.s32.totalorder %s73, %s87
    %p89 = scmp.eq.s32.totalorder %s21, 0
    %p90 = por %p88, %p89
    %s92 = sadd.s32 %s91, 1
    %p95 = scmp.eq.s32.totalorder %s15, 1
    %p96 = scmp.ne.s32.totalorder %s91, %s93
    %p97 = scmp.eq.s32.totalorder %s15, 0
    %p98 = por %p96, %p97
    %p99 = scmp.ne.s32.totalorder %s91, %s93
    %p100 = scmp.eq.s32.totalorder %s20, 1
    %p101 = por %p99, %p100
    %p102 = scmp.ne.s32.totalorder %s93, %s94
    %p103 = scmp.eq.s32.totalorder %s20, 0
    %p104 = por %p102, %p103
    %p105 = scmp.ne.s32.totalorder %s93, %s94
    %p106 = scmp.eq.s32.totalorder %s21, 1
    %p107 = por %p105, %p106
    %p109 = scmp.ne.s32.totalorder %s94, %s108
    %p110 = scmp.eq.s32.totalorder %s21, 0
    %p111 = por %p109, %p110
    %s113 = sadd.s32 %s112, 1
    %p116 = scmp.eq.s32.totalorder %s15, 1
    %p117 = scmp.ne.s32.totalorder %s112, %s114
    %p118 = scmp.eq.s32.totalorder %s15, 0
    %p119 = por %p117, %p118
    %p120 = scmp.ne.s32.totalorder %s112, %s114
    %p121 = scmp.eq.s32.totalorder %s20, 1
    %p122 = por %p120, %p121
    %p123 = scmp.ne.s32.totalorder %s114, %s115
    %p124 = scmp.eq.s32.totalorder %s20, 0
    %p125 = por %p123, %p124
    %p126 = scmp.ne.s32.totalorder %s114, %s115
    %p127 = scmp.eq.s32.totalorder %s21, 1
    %p128 = por %p126, %p127
    %p130 = scmp.ne.s32.totalorder %s115, %s129
    %p131 = scmp.eq.s32.totalorder %s21, 0
    %p132 = por %p130, %p131
    %s134 = sadd.s32 %s133, 1
    %p137 = scmp.eq.s32.totalorder %s15, 1
    %p138 = scmp.ne.s32.totalorder %s133, %s135
    %p139 = scmp.eq.s32.totalorder %s15, 0
    %p140 = por %p138, %p139
    %p141 = scmp.ne.s32.totalorder %s133, %s135
    %p142 = scmp.eq.s32.totalorder %s20, 1
    %p143 = por %p141, %p142
    %p144 = scmp.ne.s32.totalorder %s135, %s136
    %p145 = scmp.eq.s32.totalorder %s20, 0
    %p146 = por %p144, %p145
    %p147 = scmp.ne.s32.totalorder %s135, %s136
    %p148 = scmp.eq.s32.totalorder %s21, 1
    %p149 = por %p147, %p148
    %p151 = scmp.ne.s32.totalorder %s136, %s150
    %p152 = scmp.eq.s32.totalorder %s21, 0
    %p153 = por %p151, %p152
    %s155 = sadd.s32 %s154, 1
    %p158 = scmp.eq.s32.totalorder %s15, 1
    %p159 = scmp.ne.s32.totalorder %s154, %s156
    %p160 = scmp.eq.s32.totalorder %s15, 0
    %p161 = por %p159, %p160
    %p162 = scmp.ne.s32.totalorder %s154, %s156
    %p163 = scmp.eq.s32.totalorder %s20, 1
    %p164 = por %p162, %p163
    %p165 = scmp.ne.s32.totalorder %s156, %s157
    %p166 = scmp.eq.s32.totalorder %s20, 0
    %p167 = por %p165, %p166
    %p168 = scmp.ne.s32.totalorder %s156, %s157
    %p169 = scmp.eq.s32.totalorder %s21, 1
    %p170 = por %p168, %p169
    %p172 = scmp.ne.s32.totalorder %s157, %s171
    %p173 = scmp.eq.s32.totalorder %s21, 0
    %p174 = por %p172, %p173
    %s176 = sadd.s32 %s175, 1
    %p179 = scmp.eq.s32.totalorder %s15, 1
    %p180 = scmp.ne.s32.totalorder %s175, %s177
    %p181 = scmp.eq.s32.totalorder %s15, 0
    %p182 = por %p180, %p181
    %p183 = scmp.ne.s32.totalorder %s175, %s177
    %p184 = scmp.eq.s32.totalorder %s20, 1
    %p185 = por %p183, %p184
    %p186 = scmp.ne.s32.totalorder %s177, %s178
    %p187 = scmp.eq.s32.totalorder %s20, 0
    %p188 = por %p186, %p187
    %p189 = scmp.ne.s32.totalorder %s177, %s178
    %p190 = scmp.eq.s32.totalorder %s21, 1
    %p191 = por %p189, %p190
    %p193 = scmp.ne.s32.totalorder %s178, %s192
    %p194 = scmp.eq.s32.totalorder %s21, 0
    %p195 = por %p193, %p194
    %s197 = sadd.s32 %s196, 1
    %p200 = scmp.eq.s32.totalorder %s15, 1
    %p201 = scmp.ne.s32.totalorder %s196, %s198
    %p202 = scmp.eq.s32.totalorder %s15, 0
    %p203 = por %p201, %p202
    %p204 = scmp.ne.s32.totalorder %s196, %s198
    %p205 = scmp.eq.s32.totalorder %s20, 1
    %p206 = por %p204, %p205
    %p207 = scmp.ne.s32.totalorder %s198, %s199
    %p208 = scmp.eq.s32.totalorder %s20, 0
    %p209 = por %p207, %p208
    %p210 = scmp.ne.s32.totalorder %s198, %s199
    %p211 = scmp.eq.s32.totalorder %s21, 1
    %p212 = por %p210, %p211
    %p214 = scmp.ne.s32.totalorder %s199, %s213
    %p215 = scmp.eq.s32.totalorder %s21, 0
    %p216 = por %p214, %p215
    %s217 = ssub.s32 %s15, %s22
    %p218 = scmp.eq.s32.totalorder %s217, 0
    %s220 = sadd.s32 %s219, 1
    %s221 = scalar_select %p218, %s219, %s220
    %p224 = pneg %p218
    %p225 = scmp.eq.s32.totalorder %s15, 1
    %p226 = por %p224, %p225
    %p227 = scmp.ne.s32.totalorder %s219, %s222
    %p228 = scmp.eq.s32.totalorder %s15, 0
    %p229 = por %p227, %p228
    %p230 = scmp.ne.s32.totalorder %s219, %s222
    %p231 = scmp.eq.s32.totalorder %s20, 1
    %p232 = por %p230, %p231
    %p233 = scmp.ne.s32.totalorder %s222, %s223
    %p234 = scmp.eq.s32.totalorder %s20, 0
    %p235 = por %p233, %p234
    %p236 = scmp.ne.s32.totalorder %s222, %s223
    %p237 = scmp.eq.s32.totalorder %s21, 1
    %p238 = por %p236, %p237
    %p240 = scmp.ne.s32.totalorder %s223, %s239
    %p241 = scmp.eq.s32.totalorder %s21, 0
    %p242 = por %p240, %p241
    %p243 = scmp.le.s32.totalorder 1, %s15
    %p244 = scmp.lt.s32.totalorder %s15, 3
    %p245 = pnand %p243, %p244
    %p246 = pneg %p245
    // Predicated region
    $region9: #{pose_encoder_no_pool.1} parent=5 // pred_check
      _
    $region10: #{pose_encoder_no_pool.1} parent=5 // pred_check_branch
      %248 = sbr.rel (%p245) target = $region12
    $region11: #{pose_encoder_no_pool.1} parent=5 // pred_region
      %s249 = ssub.s32 %s15, 1
      // Predicated region
      $region13: #{pose_encoder_no_pool.1} parent=11 // pred_check
        %p250 = pneg %p62
      $region14: #{pose_encoder_no_pool.1} parent=11 // pred_check_branch
        %252 = sbr.rel (%p250) target = $region16
      $region15: #{pose_encoder_no_pool.1} parent=11 // pred_region
        _
      $region16: #{pose_encoder_no_pool.1} parent=11 // pred_fallthru
        _
      // Predicated region
      $region17: #{pose_encoder_no_pool.1} parent=11 // pred_check
        %p253 = pneg %p83
      $region18: #{pose_encoder_no_pool.1} parent=11 // pred_check_branch
        %255 = sbr.rel (%p253) target = $region20
      $region19: #{pose_encoder_no_pool.1} parent=11 // pred_region
        _
      $region20: #{pose_encoder_no_pool.1} parent=11 // pred_fallthru
        _
      // Predicated region
      $region21: #{pose_encoder_no_pool.1} parent=11 // pred_check
        %p256 = pneg %p104
      $region22: #{pose_encoder_no_pool.1} parent=11 // pred_check_branch
        %258 = sbr.rel (%p256) target = $region24
      $region23: #{pose_encoder_no_pool.1} parent=11 // pred_region
        _
      $region24: #{pose_encoder_no_pool.1} parent=11 // pred_fallthru
        _
      // Predicated region
      $region25: #{pose_encoder_no_pool.1} parent=11 // pred_check
        %p259 = pneg %p125
      $region26: #{pose_encoder_no_pool.1} parent=11 // pred_check_branch
        %261 = sbr.rel (%p259) target = $region28
      $region27: #{pose_encoder_no_pool.1} parent=11 // pred_region
        _
      $region28: #{pose_encoder_no_pool.1} parent=11 // pred_fallthru
        _
      // Predicated region
      $region29: #{pose_encoder_no_pool.1} parent=11 // pred_check
        %p262 = pneg %p146
      $region30: #{pose_encoder_no_pool.1} parent=11 // pred_check_branch
        %264 = sbr.rel (%p262) target = $region32
      $region31: #{pose_encoder_no_pool.1} parent=11 // pred_region
        _
      $region32: #{pose_encoder_no_pool.1} parent=11 // pred_fallthru
        _
      // Predicated region
      $region33: #{pose_encoder_no_pool.1} parent=11 // pred_check
        %p265 = pneg %p167
      $region34: #{pose_encoder_no_pool.1} parent=11 // pred_check_branch
        %267 = sbr.rel (%p265) target = $region36
      $region35: #{pose_encoder_no_pool.1} parent=11 // pred_region
        _
      $region36: #{pose_encoder_no_pool.1} parent=11 // pred_fallthru
        _
      // Predicated region
      $region37: #{pose_encoder_no_pool.1} parent=11 // pred_check
        %p268 = pneg %p188
      $region38: #{pose_encoder_no_pool.1} parent=11 // pred_check_branch
        %270 = sbr.rel (%p268) target = $region40
      $region39: #{pose_encoder_no_pool.1} parent=11 // pred_region
        _
      $region40: #{pose_encoder_no_pool.1} parent=11 // pred_fallthru
        _
      // Predicated region
      $region41: #{pose_encoder_no_pool.1} parent=11 // pred_check
        %p271 = pneg %p209
      $region42: #{pose_encoder_no_pool.1} parent=11 // pred_check_branch
        %273 = sbr.rel (%p271) target = $region44
      $region43: #{pose_encoder_no_pool.1} parent=11 // pred_region
        _
      $region44: #{pose_encoder_no_pool.1} parent=11 // pred_fallthru
        _
    $region12: #{pose_encoder_no_pool.1} parent=5 // pred_fallthru
      _
    %p274 = scmp.lt.s32.totalorder %s15, 2
    // Predicated region
    $region45: #{pose_encoder_no_pool.1} parent=5 // pred_check
      %p275 = pneg %p274
    $region46: #{pose_encoder_no_pool.1} parent=5 // pred_check_branch
      %277 = sbr.rel (%p275) target = $region48
    $region47: #{pose_encoder_no_pool.1} parent=5 // pred_region
      // Predicated region
      $region49: #{pose_encoder_no_pool.1} parent=47 // pred_check
        %p278 = pneg %p35
      $region50: #{pose_encoder_no_pool.1} parent=47 // pred_check_branch
        %280 = sbr.rel (%p278) target = $region52
      $region51: #{pose_encoder_no_pool.1} parent=47 // pred_region
        %p281 = scmp.lt.s32.totalorder %s15, 1
        %s282 = scalar_select %p281, %s15, 1
        %s283 = smul.addr %s282, 8
        %s284 = smul.addr %s283, 8
        %s285 = scalar_lea.vmem %s0, %s284
      $region52: #{pose_encoder_no_pool.1} parent=47 // pred_fallthru
        _
    $region48: #{pose_encoder_no_pool.1} parent=5 // pred_fallthru
      _
    %p286 = scmp.le.s32.totalorder 1, %s15
    %p287 = scmp.lt.s32.totalorder %s15, 3
    %p288 = pnand %p286, %p287
    %p289 = pneg %p288
    // Predicated region
    $region53: #{pose_encoder_no_pool.1} parent=5 // pred_check
      _
    $region54: #{pose_encoder_no_pool.1} parent=5 // pred_check_branch
      %291 = sbr.rel (%p288) target = $region56
    $region55: #{pose_encoder_no_pool.1} parent=5 // pred_region
      %s292 = ssub.s32 %s15, 1
      %p293 = scmp.lt.s32.totalorder %s20, 1
      %s294 = scalar_select %p293, %s20, 1
      %s295 = smul.addr %s294, 8
      %s296 = smul.addr %s295, 8
      %s297 = scalar_lea.vmem %s0, %s296
      %p298 = pneg %p41
      %p299 = pneg %p38
      %p300 = pneg %p62
      %p301 = pneg %p59
      %p302 = pneg %p83
      %p303 = pneg %p80
      %p304 = pneg %p104
      %p305 = pneg %p101
      %p306 = pneg %p125
      %p307 = pneg %p122
      %p308 = pneg %p146
      %p309 = pneg %p143
      %p310 = pneg %p167
      %p311 = pneg %p164
      %p312 = pneg %p188
      %p313 = pneg %p185
      %p314 = pneg %p209
      %p315 = pneg %p206
      %p316 = pneg %p235
      %p317 = pneg %p232
      %p318 = scmp.lt.s32.totalorder %s20, 1
      %s319 = scalar_select %p318, %s20, 1
      %s320 = smul.addr %s319, 2
      %s321 = smul.addr %s320, 8
      %s322 = scalar_lea.vmem %s9, %s321
      %p323 = scmp.lt.s32.totalorder %s20, 1
      %s324 = scalar_select %p323, %s20, 1
      %s325 = smul.addr %s324, 8
      %s326 = smul.addr %s325, 8
      %s327 = scalar_lea.vmem %s0, %s326
      %p328 = scmp.lt.s32.totalorder %s20, 1
      %s329 = scalar_select %p328, %s20, 1
      %s330 = smul.addr %s329, 2
      %s331 = smul.addr %s330, 8
      %s332 = scalar_lea.vmem %s9, %s331
      %v333 = vld [vmem:[%s327] sm:$0xff]
      %v334 = vld [vmem:[%s327 + $0x8] sm:$0xff]
      %v335 = vld [vmem:[%s327 + $0x10] sm:$0xff]
      %v336 = vld [vmem:[%s327 + $0x18] sm:$0xff]
      %v337 = vld [vmem:[%s327 + $0x20] sm:$0xff]
      %v338 = vld [vmem:[%s327 + $0x28] sm:$0xff]
      %v339 = vld [vmem:[%s327 + $0x30] sm:$0xff]
      %v340 = vld [vmem:[%s327 + $0x38] sm:$0xff]
      %v341 = vld [vmem:[%s1] sm:$0xff]
      %v342 = vld [vmem:[%s1 + $0x8] sm:$0xff]
      %v343 = vld [vmem:[%s1 + $0x10] sm:$0xff]
      %v344 = vld [vmem:[%s1 + $0x18] sm:$0x1]
      %v345 = vlaneseq
      %v346 = vshrl.u32 %v345, 7
      %v347 = vsub.s32 0, %v346
      %v348 = vrot.slane %v341, %v347
      %v349 = vmul.f32 %v333, %v348
      %v350 = vmul.f32 %v334, %v348
      %v351 = vmul.f32 %v335, %v348
      %v352 = vmul.f32 %v336, %v348
      %v353 = vmul.f32 %v337, %v348
      %v354 = vadd.f32 %v349, 0.0
      %v355 = vadd.f32 %v350, 0.0
      %v356 = vadd.f32 %v351, 0.0
      %v357 = vadd.f32 %v352, 0.0
      %v358 = vadd.f32 %v353, 0.0
      %v359 = vlaneseq
      %v360 = vshrl.u32 %v359, 7
      %v361 = vsub.s32 1, %v360
      %v362 = vrot.slane %v341, %v361
      %v363 = vmul.f32 %v333, %v362
      %v364 = vmul.f32 %v334, %v362
      %v365 = vmul.f32 %v335, %v362
      %v366 = vmul.f32 %v336, %v362
      %v367 = vmul.f32 %v337, %v362
      %v368 = vmul.f32 %v338, %v362
      %vm375 = vcmask 1046528
      %v376 = vrot.slane %v363, 1
      %v377 = vrot.slane %v364, 1
      %v378 = vsel %vm375, %v376, %v377
      %v379 = vrot.slane %v365, 1
      %v380 = vsel %vm375, %v377, %v379
      %v381 = vrot.slane %v366, 1
      %v382 = vsel %vm375, %v379, %v381
      %v383 = vrot.slane %v367, 1
      %v384 = vsel %vm375, %v381, %v383
      %v385 = vrot.slane %v368, 1
      %v386 = vsel %vm375, %v383, %v385
      %v392 = vadd.f32 %v354, %v378
      %v393 = vadd.f32 %v355, %v380
      %v394 = vadd.f32 %v356, %v382
      %v395 = vadd.f32 %v357, %v384
      %v396 = vadd.f32 %v358, %v386
      %v397 = vlaneseq
      %v398 = vshrl.u32 %v397, 7
      %v399 = vsub.s32 2, %v398
      %v400 = vrot.slane %v341, %v399
      %v401 = vmul.f32 %v333, %v400
      %v402 = vmul.f32 %v334, %v400
      %v403 = vmul.f32 %v335, %v400
      %v404 = vmul.f32 %v336, %v400
      %v405 = vmul.f32 %v337, %v400
      %v406 = vmul.f32 %v338, %v400
      %vm413 = vcmask 1045504
      %v414 = vrot.slane %v401, 2
      %v415 = vrot.slane %v402, 2
      %v416 = vsel %vm413, %v414, %v415
      %v417 = vrot.slane %v403, 2
      %v418 = vsel %vm413, %v415, %v417
      %v419 = vrot.slane %v404, 2
      %v420 = vsel %vm413, %v417, %v419
      %v421 = vrot.slane %v405, 2
      %v422 = vsel %vm413, %v419, %v421
      %v423 = vrot.slane %v406, 2
      %v424 = vsel %vm413, %v421, %v423
      %v430 = vadd.f32 %v392, %v416
      %v431 = vadd.f32 %v393, %v418
      %v432 = vadd.f32 %v394, %v420
      %v433 = vadd.f32 %v395, %v422
      %v434 = vadd.f32 %v396, %v424
      %v435 = vlaneseq
      %v436 = vshrl.u32 %v435, 7
      %v437 = vsub.s32 3, %v436
      %v438 = vrot.slane %v341, %v437
      %v439 = vmul.f32 %v333, %v438
      %v440 = vmul.f32 %v334, %v438
      %v441 = vmul.f32 %v335, %v438
      %v442 = vmul.f32 %v336, %v438
      %v443 = vmul.f32 %v337, %v438
      %v444 = vmul.f32 %v338, %v438
      %vm451 = vcmask 1044480
      %v452 = vrot.slane %v439, 3
      %v453 = vrot.slane %v440, 3
      %v454 = vsel %vm451, %v452, %v453
      %v455 = vrot.slane %v441, 3
      %v456 = vsel %vm451, %v453, %v455
      %v457 = vrot.slane %v442, 3
      %v458 = vsel %vm451, %v455, %v457
      %v459 = vrot.slane %v443, 3
      %v460 = vsel %vm451, %v457, %v459
      %v461 = vrot.slane %v444, 3
      %v462 = vsel %vm451, %v459, %v461
      %v468 = vadd.f32 %v430, %v454
      %v469 = vadd.f32 %v431, %v456
      %v470 = vadd.f32 %v432, %v458
      %v471 = vadd.f32 %v433, %v460
      %v472 = vadd.f32 %v434, %v462
      %v473 = vlaneseq
      %v474 = vshrl.u32 %v473, 7
      %v475 = vsub.s32 4, %v474
      %v476 = vrot.slane %v341, %v475
      %v477 = vmul.f32 %v333, %v476
      %v478 = vmul.f32 %v334, %v476
      %v479 = vmul.f32 %v335, %v476
      %v480 = vmul.f32 %v336, %v476
      %v481 = vmul.f32 %v337, %v476
      %v482 = vmul.f32 %v338, %v476
      %vm489 = vcmask 1043456
      %v490 = vrot.slane %v477, 4
      %v491 = vrot.slane %v478, 4
      %v492 = vsel %vm489, %v490, %v491
      %v493 = vrot.slane %v479, 4
      %v494 = vsel %vm489, %v491, %v493
      %v495 = vrot.slane %v480, 4
      %v496 = vsel %vm489, %v493, %v495
      %v497 = vrot.slane %v481, 4
      %v498 = vsel %vm489, %v495, %v497
      %v499 = vrot.slane %v482, 4
      %v500 = vsel %vm489, %v497, %v499
      %v506 = vadd.f32 %v468, %v492
      %v507 = vadd.f32 %v469, %v494
      %v508 = vadd.f32 %v470, %v496
      %v509 = vadd.f32 %v471, %v498
      %v510 = vadd.f32 %v472, %v500
      %v511 = vlaneseq
      %v512 = vshrl.u32 %v511, 7
      %v513 = vsub.s32 5, %v512
      %v514 = vrot.slane %v341, %v513
      %v515 = vmul.f32 %v333, %v514
      %v516 = vmul.f32 %v334, %v514
      %v517 = vmul.f32 %v335, %v514
      %v518 = vmul.f32 %v336, %v514
      %v519 = vmul.f32 %v337, %v514
      %v520 = vmul.f32 %v338, %v514
      %vm527 = vcmask 1042432
      %v528 = vrot.slane %v515, 5
      %v529 = vrot.slane %v516, 5
      %v530 = vsel %vm527, %v528, %v529
      %v531 = vrot.slane %v517, 5
      %v532 = vsel %vm527, %v529, %v531
      %v533 = vrot.slane %v518, 5
      %v534 = vsel %vm527, %v531, %v533
      %v535 = vrot.slane %v519, 5
      %v536 = vsel %vm527, %v533, %v535
      %v537 = vrot.slane %v520, 5
      %v538 = vsel %vm527, %v535, %v537
      %v544 = vadd.f32 %v506, %v530
      %v545 = vadd.f32 %v507, %v532
      %v546 = vadd.f32 %v508, %v534
      %v547 = vadd.f32 %v509, %v536
      %v548 = vadd.f32 %v510, %v538
      %v549 = vlaneseq
      %v550 = vshrl.u32 %v549, 7
      %v551 = vsub.s32 6, %v550
      %v552 = vrot.slane %v341, %v551
      %v553 = vmul.f32 %v333, %v552
      %v554 = vmul.f32 %v334, %v552
      %v555 = vmul.f32 %v335, %v552
      %v556 = vmul.f32 %v336, %v552
      %v557 = vmul.f32 %v337, %v552
      %v558 = vmul.f32 %v338, %v552
      %vm565 = vcmask 1041408
      %v566 = vrot.slane %v553, 6
      %v567 = vrot.slane %v554, 6
      %v568 = vsel %vm565, %v566, %v567
      %v569 = vrot.slane %v555, 6
      %v570 = vsel %vm565, %v567, %v569
      %v571 = vrot.slane %v556, 6
      %v572 = vsel %vm565, %v569, %v571
      %v573 = vrot.slane %v557, 6
      %v574 = vsel %vm565, %v571, %v573
      %v575 = vrot.slane %v558, 6
      %v576 = vsel %vm565, %v573, %v575
      %v582 = vadd.f32 %v544, %v568
      %v583 = vadd.f32 %v545, %v570
      %v584 = vadd.f32 %v546, %v572
      %v585 = vadd.f32 %v547, %v574
      %v586 = vadd.f32 %v548, %v576
      %v587 = vlaneseq
      %v588 = vshrl.u32 %v587, 7
      %v589 = vsub.s32 7, %v588
      %v590 = vrot.slane %v341, %v589
      %v591 = vmul.f32 %v333, %v590
      %v592 = vmul.f32 %v334, %v590
      %v593 = vmul.f32 %v335, %v590
      %v594 = vmul.f32 %v336, %v590
      %v595 = vmul.f32 %v337, %v590
      %v596 = vmul.f32 %v338, %v590
      %vm603 = vcmask 1040384
      %v604 = vrot.slane %v591, 7
      %v605 = vrot.slane %v592, 7
      %v606 = vsel %vm603, %v604, %v605
      %v607 = vrot.slane %v593, 7
      %v608 = vsel %vm603, %v605, %v607
      %v609 = vrot.slane %v594, 7
      %v610 = vsel %vm603, %v607, %v609
      %v611 = vrot.slane %v595, 7
      %v612 = vsel %vm603, %v609, %v611
      %v613 = vrot.slane %v596, 7
      %v614 = vsel %vm603, %v611, %v613
      %v620 = vadd.f32 %v582, %v606
      %v621 = vadd.f32 %v583, %v608
      %v622 = vadd.f32 %v584, %v610
      %v623 = vadd.f32 %v585, %v612
      %v624 = vadd.f32 %v586, %v614
      %v625 = vlaneseq
      %v626 = vshrl.u32 %v625, 7
      %v627 = vsub.s32 0, %v626
      %v628 = vrot.slane %v342, %v627
      %v629 = vmul.f32 %v334, %v628
      %v630 = vmul.f32 %v335, %v628
      %v631 = vmul.f32 %v336, %v628
      %v632 = vmul.f32 %v337, %v628
      %v633 = vmul.f32 %v338, %v628
      %v634 = vadd.f32 %v620, %v629
      %v635 = vadd.f32 %v621, %v630
      %v636 = vadd.f32 %v622, %v631
      %v637 = vadd.f32 %v623, %v632
      %v638 = vadd.f32 %v624, %v633
      %v639 = vlaneseq
      %v640 = vshrl.u32 %v639, 7
      %v641 = vsub.s32 1, %v640
      %v642 = vrot.slane %v342, %v641
      %v643 = vmul.f32 %v334, %v642
      %v644 = vmul.f32 %v335, %v642
      %v645 = vmul.f32 %v336, %v642
      %v646 = vmul.f32 %v337, %v642
      %v647 = vmul.f32 %v338, %v642
      %v648 = vmul.f32 %v339, %v642
      %v655 = vrot.slane %v643, 1
      %v656 = vrot.slane %v644, 1
      %v657 = vsel %vm375, %v655, %v656
      %v658 = vrot.slane %v645, 1
      %v659 = vsel %vm375, %v656, %v658
      %v660 = vrot.slane %v646, 1
      %v661 = vsel %vm375, %v658, %v660
      %v662 = vrot.slane %v647, 1
      %v663 = vsel %vm375, %v660, %v662
      %v664 = vrot.slane %v648, 1
      %v665 = vsel %vm375, %v662, %v664
      %v671 = vadd.f32 %v634, %v657
      %v672 = vadd.f32 %v635, %v659
      %v673 = vadd.f32 %v636, %v661
      %v674 = vadd.f32 %v637, %v663
      %v675 = vadd.f32 %v638, %v665
      %v676 = vlaneseq
      %v677 = vshrl.u32 %v676, 7
      %v678 = vsub.s32 2, %v677
      %v679 = vrot.slane %v342, %v678
      %v680 = vmul.f32 %v334, %v679
      %v681 = vmul.f32 %v335, %v679
      %v682 = vmul.f32 %v336, %v679
      %v683 = vmul.f32 %v337, %v679
      %v684 = vmul.f32 %v338, %v679
      %v685 = vmul.f32 %v339, %v679
      %v692 = vrot.slane %v680, 2
      %v693 = vrot.slane %v681, 2
      %v694 = vsel %vm413, %v692, %v693
      %v695 = vrot.slane %v682, 2
      %v696 = vsel %vm413, %v693, %v695
      %v697 = vrot.slane %v683, 2
      %v698 = vsel %vm413, %v695, %v697
      %v699 = vrot.slane %v684, 2
      %v700 = vsel %vm413, %v697, %v699
      %v701 = vrot.slane %v685, 2
      %v702 = vsel %vm413, %v699, %v701
      %v708 = vadd.f32 %v671, %v694
      %v709 = vadd.f32 %v672, %v696
      %v710 = vadd.f32 %v673, %v698
      %v711 = vadd.f32 %v674, %v700
      %v712 = vadd.f32 %v675, %v702
      %v713 = vlaneseq
      %v714 = vshrl.u32 %v713, 7
      %v715 = vsub.s32 3, %v714
      %v716 = vrot.slane %v342, %v715
      %v717 = vmul.f32 %v334, %v716
      %v718 = vmul.f32 %v335, %v716
      %v719 = vmul.f32 %v336, %v716
      %v720 = vmul.f32 %v337, %v716
      %v721 = vmul.f32 %v338, %v716
      %v722 = vmul.f32 %v339, %v716
      %v729 = vrot.slane %v717, 3
      %v730 = vrot.slane %v718, 3
      %v731 = vsel %vm451, %v729, %v730
      %v732 = vrot.slane %v719, 3
      %v733 = vsel %vm451, %v730, %v732
      %v734 = vrot.slane %v720, 3
      %v735 = vsel %vm451, %v732, %v734
      %v736 = vrot.slane %v721, 3
      %v737 = vsel %vm451, %v734, %v736
      %v738 = vrot.slane %v722, 3
      %v739 = vsel %vm451, %v736, %v738
      %v745 = vadd.f32 %v708, %v731
      %v746 = vadd.f32 %v709, %v733
      %v747 = vadd.f32 %v710, %v735
      %v748 = vadd.f32 %v711, %v737
      %v749 = vadd.f32 %v712, %v739
      %v750 = vlaneseq
      %v751 = vshrl.u32 %v750, 7
      %v752 = vsub.s32 4, %v751
      %v753 = vrot.slane %v342, %v752
      %v754 = vmul.f32 %v334, %v753
      %v755 = vmul.f32 %v335, %v753
      %v756 = vmul.f32 %v336, %v753
      %v757 = vmul.f32 %v337, %v753
      %v758 = vmul.f32 %v338, %v753
      %v759 = vmul.f32 %v339, %v753
      %v766 = vrot.slane %v754, 4
      %v767 = vrot.slane %v755, 4
      %v768 = vsel %vm489, %v766, %v767
      %v769 = vrot.slane %v756, 4
      %v770 = vsel %vm489, %v767, %v769
      %v771 = vrot.slane %v757, 4
      %v772 = vsel %vm489, %v769, %v771
      %v773 = vrot.slane %v758, 4
      %v774 = vsel %vm489, %v771, %v773
      %v775 = vrot.slane %v759, 4
      %v776 = vsel %vm489, %v773, %v775
      %v782 = vadd.f32 %v745, %v768
      %v783 = vadd.f32 %v746, %v770
      %v784 = vadd.f32 %v747, %v772
      %v785 = vadd.f32 %v748, %v774
      %v786 = vadd.f32 %v749, %v776
      %v787 = vlaneseq
      %v788 = vshrl.u32 %v787, 7
      %v789 = vsub.s32 5, %v788
      %v790 = vrot.slane %v342, %v789
      %v791 = vmul.f32 %v334, %v790
      %v792 = vmul.f32 %v335, %v790
      %v793 = vmul.f32 %v336, %v790
      %v794 = vmul.f32 %v337, %v790
      %v795 = vmul.f32 %v338, %v790
      %v796 = vmul.f32 %v339, %v790
      %v803 = vrot.slane %v791, 5
      %v804 = vrot.slane %v792, 5
      %v805 = vsel %vm527, %v803, %v804
      %v806 = vrot.slane %v793, 5
      %v807 = vsel %vm527, %v804, %v806
      %v808 = vrot.slane %v794, 5
      %v809 = vsel %vm527, %v806, %v808
      %v810 = vrot.slane %v795, 5
      %v811 = vsel %vm527, %v808, %v810
      %v812 = vrot.slane %v796, 5
      %v813 = vsel %vm527, %v810, %v812
      %v819 = vadd.f32 %v782, %v805
      %v820 = vadd.f32 %v783, %v807
      %v821 = vadd.f32 %v784, %v809
      %v822 = vadd.f32 %v785, %v811
      %v823 = vadd.f32 %v786, %v813
      %v824 = vlaneseq
      %v825 = vshrl.u32 %v824, 7
      %v826 = vsub.s32 6, %v825
      %v827 = vrot.slane %v342, %v826
      %v828 = vmul.f32 %v334, %v827
      %v829 = vmul.f32 %v335, %v827
      %v830 = vmul.f32 %v336, %v827
      %v831 = vmul.f32 %v337, %v827
      %v832 = vmul.f32 %v338, %v827
      %v833 = vmul.f32 %v339, %v827
      %v840 = vrot.slane %v828, 6
      %v841 = vrot.slane %v829, 6
      %v842 = vsel %vm565, %v840, %v841
      %v843 = vrot.slane %v830, 6
      %v844 = vsel %vm565, %v841, %v843
      %v845 = vrot.slane %v831, 6
      %v846 = vsel %vm565, %v843, %v845
      %v847 = vrot.slane %v832, 6
      %v848 = vsel %vm565, %v845, %v847
      %v849 = vrot.slane %v833, 6
      %v850 = vsel %vm565, %v847, %v849
      %v856 = vadd.f32 %v819, %v842
      %v857 = vadd.f32 %v820, %v844
      %v858 = vadd.f32 %v821, %v846
      %v859 = vadd.f32 %v822, %v848
      %v860 = vadd.f32 %v823, %v850
      %v861 = vlaneseq
      %v862 = vshrl.u32 %v861, 7
      %v863 = vsub.s32 7, %v862
      %v864 = vrot.slane %v342, %v863
      %v865 = vmul.f32 %v334, %v864
      %v866 = vmul.f32 %v335, %v864
      %v867 = vmul.f32 %v336, %v864
      %v868 = vmul.f32 %v337, %v864
      %v869 = vmul.f32 %v338, %v864
      %v870 = vmul.f32 %v339, %v864
      %v877 = vrot.slane %v865, 7
      %v878 = vrot.slane %v866, 7
      %v879 = vsel %vm603, %v877, %v878
      %v880 = vrot.slane %v867, 7
      %v881 = vsel %vm603, %v878, %v880
      %v882 = vrot.slane %v868, 7
      %v883 = vsel %vm603, %v880, %v882
      %v884 = vrot.slane %v869, 7
      %v885 = vsel %vm603, %v882, %v884
      %v886 = vrot.slane %v870, 7
      %v887 = vsel %vm603, %v884, %v886
      %v893 = vadd.f32 %v856, %v879
      %v894 = vadd.f32 %v857, %v881
      %v895 = vadd.f32 %v858, %v883
      %v896 = vadd.f32 %v859, %v885
      %v897 = vadd.f32 %v860, %v887
      %v898 = vlaneseq
      %v899 = vshrl.u32 %v898, 7
      %v900 = vsub.s32 0, %v899
      %v901 = vrot.slane %v343, %v900
      %v902 = vmul.f32 %v335, %v901
      %v903 = vmul.f32 %v336, %v901
      %v904 = vmul.f32 %v337, %v901
      %v905 = vmul.f32 %v338, %v901
      %v906 = vmul.f32 %v339, %v901
      %v907 = vadd.f32 %v893, %v902
      %v908 = vadd.f32 %v894, %v903
      %v909 = vadd.f32 %v895, %v904
      %v910 = vadd.f32 %v896, %v905
      %v911 = vadd.f32 %v897, %v906
      %v912 = vlaneseq
      %v913 = vshrl.u32 %v912, 7
      %v914 = vsub.s32 1, %v913
      %v915 = vrot.slane %v343, %v914
      %v916 = vmul.f32 %v335, %v915
      %v917 = vmul.f32 %v336, %v915
      %v918 = vmul.f32 %v337, %v915
      %v919 = vmul.f32 %v338, %v915
      %v920 = vmul.f32 %v339, %v915
      %v921 = vmul.f32 %v340, %v915
      %v928 = vrot.slane %v916, 1
      %v929 = vrot.slane %v917, 1
      %v930 = vsel %vm375, %v928, %v929
      %v931 = vrot.slane %v918, 1
      %v932 = vsel %vm375, %v929, %v931
      %v933 = vrot.slane %v919, 1
      %v934 = vsel %vm375, %v931, %v933
      %v935 = vrot.slane %v920, 1
      %v936 = vsel %vm375, %v933, %v935
      %v937 = vrot.slane %v921, 1
      %v938 = vsel %vm375, %v935, %v937
      %v944 = vadd.f32 %v907, %v930
      %v945 = vadd.f32 %v908, %v932
      %v946 = vadd.f32 %v909, %v934
      %v947 = vadd.f32 %v910, %v936
      %v948 = vadd.f32 %v911, %v938
      %v949 = vlaneseq
      %v950 = vshrl.u32 %v949, 7
      %v951 = vsub.s32 2, %v950
      %v952 = vrot.slane %v343, %v951
      %v953 = vmul.f32 %v335, %v952
      %v954 = vmul.f32 %v336, %v952
      %v955 = vmul.f32 %v337, %v952
      %v956 = vmul.f32 %v338, %v952
      %v957 = vmul.f32 %v339, %v952
      %v958 = vmul.f32 %v340, %v952
      %v965 = vrot.slane %v953, 2
      %v966 = vrot.slane %v954, 2
      %v967 = vsel %vm413, %v965, %v966
      %v968 = vrot.slane %v955, 2
      %v969 = vsel %vm413, %v966, %v968
      %v970 = vrot.slane %v956, 2
      %v971 = vsel %vm413, %v968, %v970
      %v972 = vrot.slane %v957, 2
      %v973 = vsel %vm413, %v970, %v972
      %v974 = vrot.slane %v958, 2
      %v975 = vsel %vm413, %v972, %v974
      %v981 = vadd.f32 %v944, %v967
      %v982 = vadd.f32 %v945, %v969
      %v983 = vadd.f32 %v946, %v971
      %v984 = vadd.f32 %v947, %v973
      %v985 = vadd.f32 %v948, %v975
      %v986 = vlaneseq
      %v987 = vshrl.u32 %v986, 7
      %v988 = vsub.s32 3, %v987
      %v989 = vrot.slane %v343, %v988
      %v990 = vmul.f32 %v335, %v989
      %v991 = vmul.f32 %v336, %v989
      %v992 = vmul.f32 %v337, %v989
      %v993 = vmul.f32 %v338, %v989
      %v994 = vmul.f32 %v339, %v989
      %v995 = vmul.f32 %v340, %v989
      %v1002 = vrot.slane %v990, 3
      %v1003 = vrot.slane %v991, 3
      %v1004 = vsel %vm451, %v1002, %v1003
      %v1005 = vrot.slane %v992, 3
      %v1006 = vsel %vm451, %v1003, %v1005
      %v1007 = vrot.slane %v993, 3
      %v1008 = vsel %vm451, %v1005, %v1007
      %v1009 = vrot.slane %v994, 3
      %v1010 = vsel %vm451, %v1007, %v1009
      %v1011 = vrot.slane %v995, 3
      %v1012 = vsel %vm451, %v1009, %v1011
      %v1018 = vadd.f32 %v981, %v1004
      %v1019 = vadd.f32 %v982, %v1006
      %v1020 = vadd.f32 %v983, %v1008
      %v1021 = vadd.f32 %v984, %v1010
      %v1022 = vadd.f32 %v985, %v1012
      %v1023 = vlaneseq
      %v1024 = vshrl.u32 %v1023, 7
      %v1025 = vsub.s32 4, %v1024
      %v1026 = vrot.slane %v343, %v1025
      %v1027 = vmul.f32 %v335, %v1026
      %v1028 = vmul.f32 %v336, %v1026
      %v1029 = vmul.f32 %v337, %v1026
      %v1030 = vmul.f32 %v338, %v1026
      %v1031 = vmul.f32 %v339, %v1026
      %v1032 = vmul.f32 %v340, %v1026
      %v1039 = vrot.slane %v1027, 4
      %v1040 = vrot.slane %v1028, 4
      %v1041 = vsel %vm489, %v1039, %v1040
      %v1042 = vrot.slane %v1029, 4
      %v1043 = vsel %vm489, %v1040, %v1042
      %v1044 = vrot.slane %v1030, 4
      %v1045 = vsel %vm489, %v1042, %v1044
      %v1046 = vrot.slane %v1031, 4
      %v1047 = vsel %vm489, %v1044, %v1046
      %v1048 = vrot.slane %v1032, 4
      %v1049 = vsel %vm489, %v1046, %v1048
      %v1055 = vadd.f32 %v1018, %v1041
      %v1056 = vadd.f32 %v1019, %v1043
      %v1057 = vadd.f32 %v1020, %v1045
      %v1058 = vadd.f32 %v1021, %v1047
      %v1059 = vadd.f32 %v1022, %v1049
      %v1060 = vlaneseq
      %v1061 = vshrl.u32 %v1060, 7
      %v1062 = vsub.s32 5, %v1061
      %v1063 = vrot.slane %v343, %v1062
      %v1064 = vmul.f32 %v335, %v1063
      %v1065 = vmul.f32 %v336, %v1063
      %v1066 = vmul.f32 %v337, %v1063
      %v1067 = vmul.f32 %v338, %v1063
      %v1068 = vmul.f32 %v339, %v1063
      %v1069 = vmul.f32 %v340, %v1063
      %v1076 = vrot.slane %v1064, 5
      %v1077 = vrot.slane %v1065, 5
      %v1078 = vsel %vm527, %v1076, %v1077
      %v1079 = vrot.slane %v1066, 5
      %v1080 = vsel %vm527, %v1077, %v1079
      %v1081 = vrot.slane %v1067, 5
      %v1082 = vsel %vm527, %v1079, %v1081
      %v1083 = vrot.slane %v1068, 5
      %v1084 = vsel %vm527, %v1081, %v1083
      %v1085 = vrot.slane %v1069, 5
      %v1086 = vsel %vm527, %v1083, %v1085
      %v1092 = vadd.f32 %v1055, %v1078
      %v1093 = vadd.f32 %v1056, %v1080
      %v1094 = vadd.f32 %v1057, %v1082
      %v1095 = vadd.f32 %v1058, %v1084
      %v1096 = vadd.f32 %v1059, %v1086
      %v1097 = vlaneseq
      %v1098 = vshrl.u32 %v1097, 7
      %v1099 = vsub.s32 6, %v1098
      %v1100 = vrot.slane %v343, %v1099
      %v1101 = vmul.f32 %v335, %v1100
      %v1102 = vmul.f32 %v336, %v1100
      %v1103 = vmul.f32 %v337, %v1100
      %v1104 = vmul.f32 %v338, %v1100
      %v1105 = vmul.f32 %v339, %v1100
      %v1106 = vmul.f32 %v340, %v1100
      %v1113 = vrot.slane %v1101, 6
      %v1114 = vrot.slane %v1102, 6
      %v1115 = vsel %vm565, %v1113, %v1114
      %v1116 = vrot.slane %v1103, 6
      %v1117 = vsel %vm565, %v1114, %v1116
      %v1118 = vrot.slane %v1104, 6
      %v1119 = vsel %vm565, %v1116, %v1118
      %v1120 = vrot.slane %v1105, 6
      %v1121 = vsel %vm565, %v1118, %v1120
      %v1122 = vrot.slane %v1106, 6
      %v1123 = vsel %vm565, %v1120, %v1122
      %v1129 = vadd.f32 %v1092, %v1115
      %v1130 = vadd.f32 %v1093, %v1117
      %v1131 = vadd.f32 %v1094, %v1119
      %v1132 = vadd.f32 %v1095, %v1121
      %v1133 = vadd.f32 %v1096, %v1123
      %v1134 = vlaneseq
      %v1135 = vshrl.u32 %v1134, 7
      %v1136 = vsub.s32 7, %v1135
      %v1137 = vrot.slane %v343, %v1136
      %v1138 = vmul.f32 %v335, %v1137
      %v1139 = vmul.f32 %v336, %v1137
      %v1140 = vmul.f32 %v337, %v1137
      %v1141 = vmul.f32 %v338, %v1137
      %v1142 = vmul.f32 %v339, %v1137
      %v1143 = vmul.f32 %v340, %v1137
      %v1150 = vrot.slane %v1138, 7
      %v1151 = vrot.slane %v1139, 7
      %v1152 = vsel %vm603, %v1150, %v1151
      %v1153 = vrot.slane %v1140, 7
      %v1154 = vsel %vm603, %v1151, %v1153
      %v1155 = vrot.slane %v1141, 7
      %v1156 = vsel %vm603, %v1153, %v1155
      %v1157 = vrot.slane %v1142, 7
      %v1158 = vsel %vm603, %v1155, %v1157
      %v1159 = vrot.slane %v1143, 7
      %v1160 = vsel %vm603, %v1157, %v1159
      %v1166 = vadd.f32 %v1129, %v1152
      %v1167 = vadd.f32 %v1130, %v1154
      %v1168 = vadd.f32 %v1131, %v1156
      %v1169 = vadd.f32 %v1132, %v1158
      %v1170 = vadd.f32 %v1133, %v1160
      %v1171 = vlaneseq
      %v1172 = vshrl.u32 %v1171, 7
      %v1173 = vsub.s32 0, %v1172
      %v1174 = vrot.slane %v344, %v1173
      %v1175 = vmul.f32 %v336, %v1174
      %v1176 = vmul.f32 %v337, %v1174
      %v1177 = vmul.f32 %v338, %v1174
      %v1178 = vmul.f32 %v339, %v1174
      %v1179 = vmul.f32 %v340, %v1174
      %v1180 = vadd.f32 %v1166, %v1175
      %v1181 = vadd.f32 %v1167, %v1176
      %v1182 = vadd.f32 %v1168, %v1177
      %v1183 = vadd.f32 %v1169, %v1178
      %v1184 = vadd.f32 %v1170, %v1179
      %v1185 = vld [vmem:[%s2] sm:$0x1]
      %v1187 = vlaneseq
      %v1188 = vshrl.u32 %v1187, 7
      %v1189 = vsub.s32 0, %v1188
      %v1190 = vrot.slane %v1185, %v1189
      %v1192 = vadd.f32 %v1180, %v1190
      %v1193 = vadd.f32 %v1181, %v1190
      %v1194 = vadd.f32 %v1182, %v1190
      %v1195 = vadd.f32 %v1183, %v1190
      %v1196 = vadd.f32 %v1184, %v1190
      %v1197 = vlaneseq
      %v1198 = vand.u32 %v1197, 127
      %vm1199 = vcmp.lt.s32.totalorder %v1198, 80
      %v1200 = vsel %vm1199, 1, 0
      %v1201 = vcvt.s32.f32 %v1200
      %1202 = vadd.xlane.f32.xlu0 %v1192
      %v1203 = vpop.xlane.xlu0 %1202
      %1204 = vadd.xlane.f32.xlu0 %v1193
      %v1205 = vpop.xlane.xlu0 %1204
      %1206 = vadd.xlane.f32.xlu0 %v1194
      %v1207 = vpop.xlane.xlu0 %1206
      %1208 = vadd.xlane.f32.xlu0 %v1195
      %v1209 = vpop.xlane.xlu0 %1208
      %1210 = vadd.xlane.f32.xlu0 %v1196
      %v1211 = vpop.xlane.xlu0 %1210
      %v1212 = vmul.f32 %v1203, 0.0125
      %v1213 = vmul.f32 %v1205, 0.0125
      %v1214 = vmul.f32 %v1207, 0.0125
      %v1215 = vmul.f32 %v1209, 0.0125
      %v1216 = vmul.f32 %v1211, 0.0125
      %v1217 = vsub.f32 %v1192, %v1212
      %v1218 = vsub.f32 %v1193, %v1213
      %v1219 = vsub.f32 %v1194, %v1214
      %v1220 = vsub.f32 %v1195, %v1215
      %v1221 = vsub.f32 %v1196, %v1216
      %v1222 = vmul.f32 %v1217, %v1201
      %v1223 = vmul.f32 %v1218, %v1201
      %v1224 = vmul.f32 %v1219, %v1201
      %v1225 = vmul.f32 %v1220, %v1201
      %v1226 = vmul.f32 %v1221, %v1201
      %v1227 = vmul.f32 %v1222, %v1222
      %v1228 = vmul.f32 %v1223, %v1223
      %v1229 = vmul.f32 %v1224, %v1224
      %v1230 = vmul.f32 %v1225, %v1225
      %v1231 = vmul.f32 %v1226, %v1226
      %1232 = vadd.xlane.f32.xlu0 %v1227
      %v1233 = vpop.xlane.xlu0 %1232
      %1234 = vadd.xlane.f32.xlu0 %v1228
      %v1235 = vpop.xlane.xlu0 %1234
      %1236 = vadd.xlane.f32.xlu0 %v1229
      %v1237 = vpop.xlane.xlu0 %1236
      %1238 = vadd.xlane.f32.xlu0 %v1230
      %v1239 = vpop.xlane.xlu0 %1238
      %1240 = vadd.xlane.f32.xlu0 %v1231
      %v1241 = vpop.xlane.xlu0 %1240
      %v1242 = vmul.f32 %v1233, 0.0125
      %v1243 = vmul.f32 %v1235, 0.0125
      %v1244 = vmul.f32 %v1237, 0.0125
      %v1245 = vmul.f32 %v1239, 0.0125
      %v1246 = vmul.f32 %v1241, 0.0125
      %v1247 = vadd.f32 %v1242, 1e-05
      %v1248 = vadd.f32 %v1243, 1e-05
      %v1249 = vadd.f32 %v1244, 1e-05
      %v1250 = vadd.f32 %v1245, 1e-05
      %v1251 = vadd.f32 %v1246, 1e-05
      %v1252 = vrsqrt.pop %v1247
      %v1253 = vrsqrt.pop %v1248
      %v1254 = vrsqrt.pop %v1249
      %v1255 = vrsqrt.pop %v1250
      %v1256 = vrsqrt.pop %v1251
      %v1257 = vmul.f32 %v1222, %v1252
      %v1258 = vmul.f32 %v1223, %v1253
      %v1259 = vmul.f32 %v1224, %v1254
      %v1260 = vmul.f32 %v1225, %v1255
      %v1261 = vmul.f32 %v1226, %v1256
      %v1262 = vld [vmem:[%s3] sm:$0x1]
      %v1264 = vlaneseq
      %v1265 = vshrl.u32 %v1264, 7
      %v1266 = vsub.s32 0, %v1265
      %v1267 = vrot.slane %v1262, %v1266
      %v1269 = vmul.f32 %v1257, %v1267
      %v1270 = vmul.f32 %v1258, %v1267
      %v1271 = vmul.f32 %v1259, %v1267
      %v1272 = vmul.f32 %v1260, %v1267
      %v1273 = vmul.f32 %v1261, %v1267
      %v1274 = vld [vmem:[%s4] sm:$0x1]
      %v1276 = vlaneseq
      %v1277 = vshrl.u32 %v1276, 7
      %v1278 = vsub.s32 0, %v1277
      %v1279 = vrot.slane %v1274, %v1278
      %v1281 = vadd.f32 %v1269, %v1279
      %v1282 = vadd.f32 %v1270, %v1279
      %v1283 = vadd.f32 %v1271, %v1279
      %v1284 = vadd.f32 %v1272, %v1279
      %v1285 = vadd.f32 %v1273, %v1279
      %v1286 = vmax.f32 %v1281, 0.0
      %v1287 = vmax.f32 %v1282, 0.0
      %v1288 = vmax.f32 %v1283, 0.0
      %v1289 = vmax.f32 %v1284, 0.0
      %v1290 = vmax.f32 %v1285, 0.0
      %1291 = vrot.lane.b32.xlu0 %v1286, 1
      %v1292 = vpop.permute.xlu0 %1291
      %1293 = vrot.lane.b32.xlu0 %v1287, 1
      %v1294 = vpop.permute.xlu0 %1293
      %1295 = vrot.lane.b32.xlu0 %v1288, 1
      %v1296 = vpop.permute.xlu0 %1295
      %1297 = vrot.lane.b32.xlu0 %v1289, 1
      %v1298 = vpop.permute.xlu0 %1297
      %1299 = vrot.lane.b32.xlu0 %v1290, 1
      %v1300 = vpop.permute.xlu0 %1299
      %1301 = vrot.lane.b32.xlu0 %v1286, 127
      %v1302 = vpop.permute.xlu0 %1301
      %1303 = vrot.lane.b32.xlu0 %v1287, 127
      %v1304 = vpop.permute.xlu0 %1303
      %1305 = vrot.lane.b32.xlu0 %v1288, 127
      %v1306 = vpop.permute.xlu0 %1305
      %1307 = vrot.lane.b32.xlu0 %v1289, 127
      %v1308 = vpop.permute.xlu0 %1307
      %1309 = vrot.lane.b32.xlu0 %v1290, 127
      %v1310 = vpop.permute.xlu0 %1309
      %v1311 = vadd.f32 %v1286, %v1292
      %v1312 = vadd.f32 %v1287, %v1294
      %v1313 = vadd.f32 %v1288, %v1296
      %v1314 = vadd.f32 %v1289, %v1298
      %v1315 = vadd.f32 %v1290, %v1300
      %v1316 = vadd.f32 %v1311, %v1302
      %v1317 = vadd.f32 %v1312, %v1304
      %v1318 = vadd.f32 %v1313, %v1306
      %v1319 = vadd.f32 %v1314, %v1308
      %v1320 = vadd.f32 %v1315, %v1310
      %v1321 = vmul.f32 %v1201, 0.33333334
      %v1322 = vmul.f32 %v1316, %v1321
      %v1323 = vmul.f32 %v1317, %v1321
      %v1324 = vmul.f32 %v1318, %v1321
      %v1325 = vmul.f32 %v1319, %v1321
      %v1326 = vmul.f32 %v1320, %v1321
      %v1327 = vlaneseq
      %v1328 = vshrl.u32 %v1327, 7
      %v1329 = vadd.s32 %v1328, 8
      %v1330 = vadd.s32 %v1328, 16
      %v1331 = vadd.s32 %v1328, 24
      %v1332 = vadd.s32 %v1328, 32
      %vm1333 = vcmp.ge.s32.totalorder %v1328, 12
      %vm1334 = vcmp.ge.s32.totalorder %v1329, 12
      %vm1335 = vcmp.ge.s32.totalorder %v1330, 12
      %vm1336 = vcmp.ge.s32.totalorder %v1331, 12
      %vm1337 = vcmp.ge.s32.totalorder %v1332, 12
      %vm1338 = vcmp.lt.s32.totalorder %v1328, 28
      %vm1339 = vcmp.lt.s32.totalorder %v1329, 28
      %vm1340 = vcmp.lt.s32.totalorder %v1330, 28
      %vm1341 = vcmp.lt.s32.totalorder %v1331, 28
      %vm1342 = vcmp.lt.s32.totalorder %v1332, 28
      %vm1343 = vmand %vm1333, %vm1338
      %vm1344 = vmand %vm1334, %vm1339
      %vm1345 = vmand %vm1335, %vm1340
      %vm1346 = vmand %vm1336, %vm1341
      %vm1347 = vmand %vm1337, %vm1342
      %v1348 = vsel %vm1343, 1, 0
      %v1349 = vsel %vm1344, 1, 0
      %v1350 = vsel %vm1345, 1, 0
      %v1351 = vsel %vm1346, 1, 0
      %v1352 = vsel %vm1347, 1, 0
      %v1353 = vcvt.s32.f32 %v1348
      %v1354 = vcvt.s32.f32 %v1349
      %v1355 = vcvt.s32.f32 %v1350
      %v1356 = vcvt.s32.f32 %v1351
      %v1357 = vcvt.s32.f32 %v1352
      %v1358 = vmul.f32 %v1322, %v1353
      %v1359 = vmul.f32 %v1323, %v1354
      %v1360 = vmul.f32 %v1324, %v1355
      %v1361 = vmul.f32 %v1325, %v1356
      %v1362 = vmul.f32 %v1326, %v1357
      %1363 = vst [vmem:[#allocation2] sm:$0xff] %v1358
      %1364 = vst [vmem:[#allocation2 + $0xc8] sm:$0xff] %v1359
      %v1368 = vrot.slane %v1358, 1
      %v1369 = vrot.slane %v1359, 1
      %v1370 = vsel %vm375, %v1368, %v1369
      %v1371 = vrot.slane %v1360, 1
      %v1372 = vsel %vm375, %v1369, %v1371
      %1375 = vst [vmem:[#allocation2 + $0x8] sm:$0xff] %v1370
      %1376 = vst [vmem:[#allocation2 + $0xd0] sm:$0xff] %v1372
      %v1377 = vrot.slane %v1358, 2
      %v1378 = vrot.slane %v1359, 2
      %v1379 = vsel %vm413, %v1377, %v1378
      %v1380 = vrot.slane %v1360, 2
      %v1381 = vsel %vm413, %v1378, %v1380
      %1384 = vst [vmem:[#allocation2 + $0x10] sm:$0xff] %v1379
      %1385 = vst [vmem:[#allocation2 + $0xd8] sm:$0xff] %v1381
      %v1386 = vrot.slane %v1358, 3
      %v1387 = vrot.slane %v1359, 3
      %v1388 = vsel %vm451, %v1386, %v1387
      %v1389 = vrot.slane %v1360, 3
      %v1390 = vsel %vm451, %v1387, %v1389
      %1393 = vst [vmem:[#allocation2 + $0x18] sm:$0xff] %v1388
      %1394 = vst [vmem:[#allocation2 + $0xe0] sm:$0xff] %v1390
      %v1395 = vrot.slane %v1358, 4
      %v1396 = vrot.slane %v1359, 4
      %v1397 = vsel %vm489, %v1395, %v1396
      %v1398 = vrot.slane %v1360, 4
      %v1399 = vsel %vm489, %v1396, %v1398
      %1402 = vst [vmem:[#allocation2 + $0x20] sm:$0xff] %v1397
      %1403 = vst [vmem:[#allocation2 + $0xe8] sm:$0xff] %v1399
      %v1404 = vrot.slane %v1358, 5
      %v1405 = vrot.slane %v1359, 5
      %v1406 = vsel %vm527, %v1404, %v1405
      %v1407 = vrot.slane %v1360, 5
      %v1408 = vsel %vm527, %v1405, %v1407
      %1411 = vst [vmem:[#allocation2 + $0x28] sm:$0xff] %v1406
      %1412 = vst [vmem:[#allocation2 + $0xf0] sm:$0xff] %v1408
      %v1413 = vrot.slane %v1358, 6
      %v1414 = vrot.slane %v1359, 6
      %v1415 = vsel %vm565, %v1413, %v1414
      %v1416 = vrot.slane %v1360, 6
      %v1417 = vsel %vm565, %v1414, %v1416
      %1420 = vst [vmem:[#allocation2 + $0x30] sm:$0xff] %v1415
      %1421 = vst [vmem:[#allocation2 + $0xf8] sm:$0xff] %v1417
      %v1422 = vrot.slane %v1358, 7
      %v1423 = vrot.slane %v1359, 7
      %v1424 = vsel %vm603, %v1422, %v1423
      %v1425 = vrot.slane %v1360, 7
      %v1426 = vsel %vm603, %v1423, %v1425
      %1429 = vst [vmem:[#allocation2 + $0x38] sm:$0xff] %v1424
      %1430 = vst [vmem:[#allocation2 + $0x100] sm:$0xff] %v1426
      %1431 = vst [vmem:[#allocation2 + $0x40] sm:$0xff] %v1359
      %1432 = vst [vmem:[#allocation2 + $0x108] sm:$0xff] %v1360
      %v1434 = vrot.slane %v1361, 1
      %v1435 = vsel %vm375, %v1371, %v1434
      %1437 = vst [vmem:[#allocation2 + $0x48] sm:$0xff] %v1372
      %1438 = vst [vmem:[#allocation2 + $0x110] sm:$0xff] %v1435
      %v1439 = vrot.slane %v1361, 2
      %v1440 = vsel %vm413, %v1380, %v1439
      %1442 = vst [vmem:[#allocation2 + $0x50] sm:$0xff] %v1381
      %1443 = vst [vmem:[#allocation2 + $0x118] sm:$0xff] %v1440
      %v1444 = vrot.slane %v1361, 3
      %v1445 = vsel %vm451, %v1389, %v1444
      %1447 = vst [vmem:[#allocation2 + $0x58] sm:$0xff] %v1390
      %1448 = vst [vmem:[#allocation2 + $0x120] sm:$0xff] %v1445
      %v1449 = vrot.slane %v1361, 4
      %v1450 = vsel %vm489, %v1398, %v1449
      %1452 = vst [vmem:[#allocation2 + $0x60] sm:$0xff] %v1399
      %1453 = vst [vmem:[#allocation2 + $0x128] sm:$0xff] %v1450
      %v1454 = vrot.slane %v1361, 5
      %v1455 = vsel %vm527, %v1407, %v1454
      %1457 = vst [vmem:[#allocation2 + $0x68] sm:$0xff] %v1408
      %1458 = vst [vmem:[#allocation2 + $0x130] sm:$0xff] %v1455
      %v1459 = vrot.slane %v1361, 6
      %v1460 = vsel %vm565, %v1416, %v1459
      %1462 = vst [vmem:[#allocation2 + $0x70] sm:$0xff] %v1417
      %1463 = vst [vmem:[#allocation2 + $0x138] sm:$0xff] %v1460
      %v1464 = vrot.slane %v1361, 7
      %v1465 = vsel %vm603, %v1425, %v1464
      %1467 = vst [vmem:[#allocation2 + $0x78] sm:$0xff] %v1426
      %1468 = vst [vmem:[#allocation2 + $0x140] sm:$0xff] %v1465
      %1469 = vst [vmem:[#allocation2 + $0x80] sm:$0xff] %v1360
      %1470 = vst [vmem:[#allocation2 + $0x148] sm:$0xff] %v1361
      %v1472 = vrot.slane %v1362, 1
      %v1473 = vsel %vm375, %v1434, %v1472
      %1475 = vst [vmem:[#allocation2 + $0x88] sm:$0xff] %v1435
      %1476 = vst [vmem:[#allocation2 + $0x150] sm:$0xff] %v1473
      %v1477 = vrot.slane %v1362, 2
      %v1478 = vsel %vm413, %v1439, %v1477
      %1480 = vst [vmem:[#allocation2 + $0x90] sm:$0xff] %v1440
      %1481 = vst [vmem:[#allocation2 + $0x158] sm:$0xff] %v1478
      %v1482 = vrot.slane %v1362, 3
      %v1483 = vsel %vm451, %v1444, %v1482
      %1485 = vst [vmem:[#allocation2 + $0x98] sm:$0xff] %v1445
      %1486 = vst [vmem:[#allocation2 + $0x160] sm:$0xff] %v1483
      %v1487 = vrot.slane %v1362, 4
      %v1488 = vsel %vm489, %v1449, %v1487
      %1490 = vst [vmem:[#allocation2 + $0xa0] sm:$0xff] %v1450
      %1491 = vst [vmem:[#allocation2 + $0x168] sm:$0xff] %v1488
      %v1492 = vrot.slane %v1362, 5
      %v1493 = vsel %vm527, %v1454, %v1492
      %1495 = vst [vmem:[#allocation2 + $0xa8] sm:$0xff] %v1455
      %1496 = vst [vmem:[#allocation2 + $0x170] sm:$0xff] %v1493
      %v1497 = vrot.slane %v1362, 6
      %v1498 = vsel %vm565, %v1459, %v1497
      %1500 = vst [vmem:[#allocation2 + $0xb0] sm:$0xff] %v1460
      %1501 = vst [vmem:[#allocation2 + $0x178] sm:$0xff] %v1498
      %v1502 = vrot.slane %v1362, 7
      %v1503 = vsel %vm603, %v1464, %v1502
      %1505 = vst [vmem:[#allocation2 + $0xb8] sm:$0xff] %v1465
      %1506 = vst [vmem:[#allocation2 + $0x180] sm:$0xff] %v1503
      %1507 = vst [vmem:[#allocation2 + $0xc0] sm:$0xff] %v1361
      %1508 = vst [vmem:[#allocation2 + $0x188] sm:$0xff] %v1362
      %v1509 = vld [vmem:[#allocation2] sm:$0xff]
      %v1510 = vld [vmem:[#allocation2 + $0x8] sm:$0xff]
      %v1511 = vld [vmem:[#allocation2 + $0x10] sm:$0xff]
      %v1512 = vld [vmem:[#allocation2 + $0x18] sm:$0xff]
      %v1513 = vld [vmem:[#allocation2 + $0x20] sm:$0xff]
      %v1514 = vld [vmem:[#allocation2 + $0x28] sm:$0xff]
      %v1515 = vld [vmem:[#allocation2 + $0x30] sm:$0xff]
      %v1516 = vld [vmem:[#allocation2 + $0x38] sm:$0xff]
      %v1517 = vld [vmem:[#allocation2 + $0x40] sm:$0xff]
      %v1518 = vld [vmem:[#allocation2 + $0x48] sm:$0xff]
      %v1519 = vld [vmem:[#allocation2 + $0x50] sm:$0xff]
      %v1520 = vld [vmem:[#allocation2 + $0x58] sm:$0xff]
      %v1521 = vld [vmem:[#allocation2 + $0x60] sm:$0xff]
      %v1522 = vld [vmem:[#allocation2 + $0x68] sm:$0xff]
      %v1523 = vld [vmem:[#allocation2 + $0x70] sm:$0xff]
      %v1524 = vld [vmem:[#allocation2 + $0x78] sm:$0xff]
      %v1525 = vld [vmem:[#allocation2 + $0x80] sm:$0xff]
      %v1526 = vld [vmem:[#allocation2 + $0x88] sm:$0xff]
      %v1527 = vld [vmem:[#allocation2 + $0x90] sm:$0xff]
      %v1528 = vld [vmem:[#allocation2 + $0x98] sm:$0xff]
      %v1529 = vld [vmem:[#allocation2 + $0xa0] sm:$0xff]
      %v1530 = vld [vmem:[#allocation2 + $0xa8] sm:$0xff]
      %v1531 = vld [vmem:[#allocation2 + $0xb0] sm:$0xff]
      %v1532 = vld [vmem:[#allocation2 + $0xb8] sm:$0xff]
      %v1533 = vld [vmem:[#allocation2 + $0xc0] sm:$0xff]
      %v1534 = vld [vmem:[#allocation2 + $0xc8] sm:$0xff]
      %v1535 = vld [vmem:[#allocation2 + $0xd0] sm:$0xff]
      %v1536 = vld [vmem:[#allocation2 + $0xd8] sm:$0xff]
      %v1537 = vld [vmem:[#allocation2 + $0xe0] sm:$0xff]
      %v1538 = vld [vmem:[#allocation2 + $0xe8] sm:$0xff]
      %v1539 = vld [vmem:[#allocation2 + $0xf0] sm:$0xff]
      %v1540 = vld [vmem:[#allocation2 + $0xf8] sm:$0xff]
      %v1541 = vld [vmem:[#allocation2 + $0x100] sm:$0xff]
      %v1542 = vld [vmem:[#allocation2 + $0x108] sm:$0xff]
      %v1543 = vld [vmem:[#allocation2 + $0x110] sm:$0xff]
      %v1544 = vld [vmem:[#allocation2 + $0x118] sm:$0xff]
      %v1545 = vld [vmem:[#allocation2 + $0x120] sm:$0xff]
      %v1546 = vld [vmem:[#allocation2 + $0x128] sm:$0xff]
      %v1547 = vld [vmem:[#allocation2 + $0x130] sm:$0xff]
      %v1548 = vld [vmem:[#allocation2 + $0x138] sm:$0xff]
      %v1549 = vld [vmem:[#allocation2 + $0x140] sm:$0xff]
      %v1550 = vld [vmem:[#allocation2 + $0x148] sm:$0xff]
      %v1551 = vld [vmem:[#allocation2 + $0x150] sm:$0xff]
      %v1552 = vld [vmem:[#allocation2 + $0x158] sm:$0xff]
      %v1553 = vld [vmem:[#allocation2 + $0x160] sm:$0xff]
      %v1554 = vld [vmem:[#allocation2 + $0x168] sm:$0xff]
      %v1555 = vld [vmem:[#allocation2 + $0x170] sm:$0xff]
      %v1556 = vld [vmem:[#allocation2 + $0x178] sm:$0xff]
      %v1557 = vld [vmem:[#allocation2 + $0x180] sm:$0xff]
      %v1558 = vld [vmem:[#allocation2 + $0x188] sm:$0xff]
      %v1559 = vld [vmem:[%s5] sm:$0xff]
      %v1560 = vld [vmem:[%s5 + $0x8] sm:$0xff]
      %v1561 = vld [vmem:[%s5 + $0x10] sm:$0xff]
      %v1562 = vld [vmem:[%s5 + $0x18] sm:$0xff]
      %v1563 = vld [vmem:[%s5 + $0x20] sm:$0xff]
      %v1564 = vld [vmem:[%s5 + $0x28] sm:$0xff]
      %v1565 = vld [vmem:[%s5 + $0x30] sm:$0xff]
      %v1566 = vld [vmem:[%s5 + $0x38] sm:$0xff]
      %v1567 = vld [vmem:[%s5 + $0x40] sm:$0xff]
      %v1568 = vld [vmem:[%s5 + $0x48] sm:$0xff]
      %v1569 = vld [vmem:[%s5 + $0x50] sm:$0xff]
      %v1570 = vld [vmem:[%s5 + $0x58] sm:$0xff]
      %v1571 = vld [vmem:[%s5 + $0x60] sm:$0xff]
      %v1572 = vld [vmem:[%s5 + $0x68] sm:$0xff]
      %v1573 = vld [vmem:[%s5 + $0x70] sm:$0xff]
      %v1574 = vld [vmem:[%s5 + $0x78] sm:$0xff]
      %v1575 = vld [vmem:[%s5 + $0x80] sm:$0xff]
      %v1576 = vld [vmem:[%s5 + $0x88] sm:$0xff]
      %v1577 = vld [vmem:[%s5 + $0x90] sm:$0xff]
      %v1578 = vld [vmem:[%s5 + $0x98] sm:$0xff]
      %v1579 = vld [vmem:[%s5 + $0xa0] sm:$0xff]
      %v1580 = vld [vmem:[%s5 + $0xa8] sm:$0xff]
      %v1581 = vld [vmem:[%s5 + $0xb0] sm:$0xff]
      %v1582 = vld [vmem:[%s5 + $0xb8] sm:$0xff]
      %v1583 = vld [vmem:[%s5 + $0xc0] sm:$0xff]
      %v1584 = vld [vmem:[%s5 + $0xc8] sm:$0xff]
      %v1585 = vld [vmem:[%s5 + $0xd0] sm:$0xff]
      %v1586 = vld [vmem:[%s5 + $0xd8] sm:$0xff]
      %v1587 = vld [vmem:[%s5 + $0xe0] sm:$0xff]
      %v1588 = vld [vmem:[%s5 + $0xe8] sm:$0xff]
      %v1589 = vld [vmem:[%s5 + $0xf0] sm:$0xff]
      %v1590 = vld [vmem:[%s5 + $0xf8] sm:$0xff]
      %v1591 = vld [vmem:[%s5 + $0x100] sm:$0xff]
      %v1592 = vld [vmem:[%s5 + $0x108] sm:$0xff]
      %v1593 = vld [vmem:[%s5 + $0x110] sm:$0xff]
      %v1594 = vld [vmem:[%s5 + $0x118] sm:$0xff]
      %v1595 = vld [vmem:[%s5 + $0x120] sm:$0xff]
      %v1596 = vld [vmem:[%s5 + $0x128] sm:$0xff]
      %v1597 = vld [vmem:[%s5 + $0x130] sm:$0xff]
      %v1598 = vld [vmem:[%s5 + $0x138] sm:$0xff]
      %v1599 = vld [vmem:[%s5 + $0x140] sm:$0xff]
      %v1600 = vld [vmem:[%s5 + $0x148] sm:$0xff]
      %v1601 = vld [vmem:[%s5 + $0x150] sm:$0xff]
      %v1602 = vld [vmem:[%s5 + $0x158] sm:$0xff]
      %v1603 = vld [vmem:[%s5 + $0x160] sm:$0xff]
      %v1604 = vld [vmem:[%s5 + $0x168] sm:$0xff]
      %v1605 = vld [vmem:[%s5 + $0x170] sm:$0xff]
      %v1606 = vld [vmem:[%s5 + $0x178] sm:$0xff]
      %v1607 = vld [vmem:[%s5 + $0x180] sm:$0xff]
      %v1608 = vld [vmem:[%s5 + $0x188] sm:$0xff]
      %v1609 = vld [vmem:[%s5 + $0x190] sm:$0xff]
      %v1610 = vld [vmem:[%s5 + $0x198] sm:$0xff]
      %v1611 = vld [vmem:[%s5 + $0x1a0] sm:$0xff]
      %v1612 = vld [vmem:[%s5 + $0x1a8] sm:$0xff]
      %v1613 = vld [vmem:[%s5 + $0x1b0] sm:$0xff]
      %v1614 = vld [vmem:[%s5 + $0x1b8] sm:$0xff]
      %v1615 = vld [vmem:[%s5 + $0x1c0] sm:$0xff]
      %v1616 = vld [vmem:[%s5 + $0x1c8] sm:$0xff]
      %v1617 = vld [vmem:[%s5 + $0x1d0] sm:$0xff]
      %v1618 = vld [vmem:[%s5 + $0x1d8] sm:$0xff]
      %v1619 = vld [vmem:[%s5 + $0x1e0] sm:$0xff]
      %v1620 = vld [vmem:[%s5 + $0x1e8] sm:$0xff]
      %v1621 = vld [vmem:[%s5 + $0x1f0] sm:$0xff]
      %v1622 = vld [vmem:[%s5 + $0x1f8] sm:$0xff]
      %v1623 = vld [vmem:[%s5 + $0x200] sm:$0xff]
      %v1624 = vld [vmem:[%s5 + $0x208] sm:$0xff]
      %v1625 = vld [vmem:[%s5 + $0x210] sm:$0xff]
      %v1626 = vld [vmem:[%s5 + $0x218] sm:$0xff]
      %v1627 = vld [vmem:[%s5 + $0x220] sm:$0xff]
      %v1628 = vld [vmem:[%s5 + $0x228] sm:$0xff]
      %v1629 = vld [vmem:[%s5 + $0x230] sm:$0xff]
      %v1630 = vld [vmem:[%s5 + $0x238] sm:$0xff]
      %v1631 = vld [vmem:[%s5 + $0x240] sm:$0xff]
      %v1632 = vld [vmem:[%s5 + $0x248] sm:$0xff]
      %v1633 = vld [vmem:[%s5 + $0x250] sm:$0xff]
      %v1634 = vld [vmem:[%s5 + $0x258] sm:$0xff]
      %v1635 = vld [vmem:[%s5 + $0x260] sm:$0xff]
      %v1636 = vld [vmem:[%s5 + $0x268] sm:$0xff]
      %v1637 = vld [vmem:[%s5 + $0x270] sm:$0xff]
      %v1638 = vld [vmem:[%s5 + $0x278] sm:$0xff]
      %v1639 = vld [vmem:[%s5 + $0x280] sm:$0xff]
      %v1640 = vld [vmem:[%s5 + $0x288] sm:$0xff]
      %v1641 = vld [vmem:[%s5 + $0x290] sm:$0xff]
      %v1642 = vld [vmem:[%s5 + $0x298] sm:$0xff]
      %v1643 = vld [vmem:[%s5 + $0x2a0] sm:$0xff]
      %v1644 = vld [vmem:[%s5 + $0x2a8] sm:$0xff]
      %v1645 = vld [vmem:[%s5 + $0x2b0] sm:$0xff]
      %v1646 = vld [vmem:[%s5 + $0x2b8] sm:$0xff]
      %v1647 = vld [vmem:[%s5 + $0x2c0] sm:$0xff]
      %v1648 = vld [vmem:[%s5 + $0x2c8] sm:$0xff]
      %v1649 = vld [vmem:[%s5 + $0x2d0] sm:$0xff]
      %v1650 = vld [vmem:[%s5 + $0x2d8] sm:$0xff]
      %v1651 = vld [vmem:[%s5 + $0x2e0] sm:$0xff]
      %v1652 = vld [vmem:[%s5 + $0x2e8] sm:$0xff]
      %v1653 = vld [vmem:[%s5 + $0x2f0] sm:$0xff]
      %v1654 = vld [vmem:[%s5 + $0x2f8] sm:$0xff]
      %v1655 = vld [vmem:[%s5 + $0x300] sm:$0xff]
      %v1656 = vld [vmem:[%s5 + $0x308] sm:$0xff]
      %v1657 = vld [vmem:[%s5 + $0x310] sm:$0xff]
      %v1658 = vld [vmem:[%s5 + $0x318] sm:$0xff]
      %v1659 = vld [vmem:[%s5 + $0x320] sm:$0xff]
      %v1660 = vld [vmem:[%s5 + $0x328] sm:$0xff]
      %v1661 = vld [vmem:[%s5 + $0x330] sm:$0xff]
      %v1662 = vld [vmem:[%s5 + $0x338] sm:$0xff]
      %v1663 = vld [vmem:[%s5 + $0x340] sm:$0xff]
      %v1664 = vld [vmem:[%s5 + $0x348] sm:$0xff]
      %v1665 = vld [vmem:[%s5 + $0x350] sm:$0xff]
      %v1666 = vld [vmem:[%s5 + $0x358] sm:$0xff]
      %v1667 = vld [vmem:[%s5 + $0x360] sm:$0xff]
      %v1668 = vld [vmem:[%s5 + $0x368] sm:$0xff]
      %v1669 = vld [vmem:[%s5 + $0x370] sm:$0xff]
      %v1670 = vld [vmem:[%s5 + $0x378] sm:$0xff]
      %v1671 = vld [vmem:[%s5 + $0x380] sm:$0xff]
      %v1672 = vld [vmem:[%s5 + $0x388] sm:$0xff]
      %v1673 = vld [vmem:[%s5 + $0x390] sm:$0xff]
      %v1674 = vld [vmem:[%s5 + $0x398] sm:$0xff]
      %v1675 = vld [vmem:[%s5 + $0x3a0] sm:$0xff]
      %v1676 = vld [vmem:[%s5 + $0x3a8] sm:$0xff]
      %v1677 = vld [vmem:[%s5 + $0x3b0] sm:$0xff]
      %v1678 = vld [vmem:[%s5 + $0x3b8] sm:$0xff]
      %v1679 = vld [vmem:[%s5 + $0x3c0] sm:$0xff]
      %v1680 = vld [vmem:[%s5 + $0x3c8] sm:$0xff]
      %v1681 = vld [vmem:[%s5 + $0x3d0] sm:$0xff]
      %v1682 = vld [vmem:[%s5 + $0x3d8] sm:$0xff]
      %v1683 = vld [vmem:[%s5 + $0x3e0] sm:$0xff]
      %v1684 = vld [vmem:[%s5 + $0x3e8] sm:$0xff]
      %v1685 = vld [vmem:[%s5 + $0x3f0] sm:$0xff]
      %v1686 = vld [vmem:[%s5 + $0x3f8] sm:$0xff]
      %v1687 = vld [vmem:[%s5 + $0x400] sm:$0xff]
      %v1688 = vld [vmem:[%s5 + $0x408] sm:$0xff]
      %v1689 = vld [vmem:[%s5 + $0x410] sm:$0xff]
      %v1690 = vld [vmem:[%s5 + $0x418] sm:$0xff]
      %v1691 = vld [vmem:[%s5 + $0x420] sm:$0xff]
      %v1692 = vld [vmem:[%s5 + $0x428] sm:$0xff]
      %v1693 = vld [vmem:[%s5 + $0x430] sm:$0xff]
      %v1694 = vld [vmem:[%s5 + $0x438] sm:$0xff]
      %v1695 = vld [vmem:[%s5 + $0x440] sm:$0xff]
      %v1696 = vld [vmem:[%s5 + $0x448] sm:$0xff]
      %v1697 = vld [vmem:[%s5 + $0x450] sm:$0xff]
      %v1698 = vld [vmem:[%s5 + $0x458] sm:$0xff]
      %v1699 = vld [vmem:[%s5 + $0x460] sm:$0xff]
      %v1700 = vld [vmem:[%s5 + $0x468] sm:$0xff]
      %v1701 = vld [vmem:[%s5 + $0x470] sm:$0xff]
      %v1702 = vld [vmem:[%s5 + $0x478] sm:$0xff]
      %v1703 = vld [vmem:[%s5 + $0x480] sm:$0xff]
      %v1704 = vld [vmem:[%s5 + $0x488] sm:$0xff]
      %v1705 = vld [vmem:[%s5 + $0x490] sm:$0xff]
      %v1706 = vld [vmem:[%s5 + $0x498] sm:$0xff]
      %v1707 = vld [vmem:[%s5 + $0x4a0] sm:$0xff]
      %v1708 = vld [vmem:[%s5 + $0x4a8] sm:$0xff]
      %v1709 = vld [vmem:[%s5 + $0x4b0] sm:$0xff]
      %v1710 = vld [vmem:[%s5 + $0x4b8] sm:$0xff]
      %v1711 = vld [vmem:[%s5 + $0x4c0] sm:$0xff]
      %v1712 = vld [vmem:[%s5 + $0x4c8] sm:$0xff]
      %v1713 = vld [vmem:[%s5 + $0x4d0] sm:$0xff]
      %v1714 = vld [vmem:[%s5 + $0x4d8] sm:$0xff]
      %v1715 = vld [vmem:[%s5 + $0x4e0] sm:$0xff]
      %v1716 = vld [vmem:[%s5 + $0x4e8] sm:$0xff]
      %v1717 = vld [vmem:[%s5 + $0x4f0] sm:$0xff]
      %v1718 = vld [vmem:[%s5 + $0x4f8] sm:$0xff]
      %v1719 = vld [vmem:[%s5 + $0x500] sm:$0xff]
      %v1720 = vld [vmem:[%s5 + $0x508] sm:$0xff]
      %v1721 = vld [vmem:[%s5 + $0x510] sm:$0xff]
      %v1722 = vld [vmem:[%s5 + $0x518] sm:$0xff]
      %v1723 = vld [vmem:[%s5 + $0x520] sm:$0xff]
      %v1724 = vld [vmem:[%s5 + $0x528] sm:$0xff]
      %v1725 = vld [vmem:[%s5 + $0x530] sm:$0xff]
      %v1726 = vld [vmem:[%s5 + $0x538] sm:$0xff]
      %v1727 = vld [vmem:[%s5 + $0x540] sm:$0xff]
      %v1728 = vld [vmem:[%s5 + $0x548] sm:$0xff]
      %v1729 = vld [vmem:[%s5 + $0x550] sm:$0xff]
      %v1730 = vld [vmem:[%s5 + $0x558] sm:$0xff]
      %v1731 = vld [vmem:[%s5 + $0x560] sm:$0xff]
      %v1732 = vld [vmem:[%s5 + $0x568] sm:$0xff]
      %v1733 = vld [vmem:[%s5 + $0x570] sm:$0xff]
      %v1734 = vld [vmem:[%s5 + $0x578] sm:$0xff]
      %v1735 = vld [vmem:[%s5 + $0x580] sm:$0xff]
      %v1736 = vld [vmem:[%s5 + $0x588] sm:$0xff]
      %v1737 = vld [vmem:[%s5 + $0x590] sm:$0xff]
      %v1738 = vld [vmem:[%s5 + $0x598] sm:$0xff]
      %v1739 = vld [vmem:[%s5 + $0x5a0] sm:$0xff]
      %v1740 = vld [vmem:[%s5 + $0x5a8] sm:$0xff]
      %v1741 = vld [vmem:[%s5 + $0x5b0] sm:$0xff]
      %v1742 = vld [vmem:[%s5 + $0x5b8] sm:$0xff]
      %v1743 = vld [vmem:[%s5 + $0x5c0] sm:$0xff]
      %v1744 = vld [vmem:[%s5 + $0x5c8] sm:$0xff]
      %v1745 = vld [vmem:[%s5 + $0x5d0] sm:$0xff]
      %v1746 = vld [vmem:[%s5 + $0x5d8] sm:$0xff]
      %v1747 = vld [vmem:[%s5 + $0x5e0] sm:$0xff]
      %v1748 = vld [vmem:[%s5 + $0x5e8] sm:$0xff]
      %v1749 = vld [vmem:[%s5 + $0x5f0] sm:$0xff]
      %v1750 = vld [vmem:[%s5 + $0x5f8] sm:$0xff]
      %v1751 = vld [vmem:[%s5 + $0x600] sm:$0xff]
      %v1752 = vld [vmem:[%s5 + $0x608] sm:$0xff]
      %v1753 = vld [vmem:[%s5 + $0x610] sm:$0xff]
      %v1754 = vld [vmem:[%s5 + $0x618] sm:$0xff]
      %v1755 = vld [vmem:[%s5 + $0x620] sm:$0xff]
      %v1756 = vld [vmem:[%s5 + $0x628] sm:$0xff]
      %v1757 = vld [vmem:[%s5 + $0x630] sm:$0xff]
      %v1758 = vld [vmem:[%s5 + $0x638] sm:$0xff]
      %v1759 = vld [vmem:[%s5 + $0x640] sm:$0xff]
      %v1760 = vld [vmem:[%s5 + $0x648] sm:$0xff]
      %v1761 = vld [vmem:[%s5 + $0x650] sm:$0xff]
      %v1762 = vld [vmem:[%s5 + $0x658] sm:$0xff]
      %v1763 = vld [vmem:[%s5 + $0x660] sm:$0xff]
      %v1764 = vld [vmem:[%s5 + $0x668] sm:$0xff]
      %v1765 = vld [vmem:[%s5 + $0x670] sm:$0xff]
      %v1766 = vld [vmem:[%s5 + $0x678] sm:$0xff]
      %v1767 = vld [vmem:[%s5 + $0x680] sm:$0xff]
      %v1768 = vld [vmem:[%s5 + $0x688] sm:$0xff]
      %v1769 = vld [vmem:[%s5 + $0x690] sm:$0xff]
      %v1770 = vld [vmem:[%s5 + $0x698] sm:$0xff]
      %v1771 = vld [vmem:[%s5 + $0x6a0] sm:$0xff]
      %v1772 = vld [vmem:[%s5 + $0x6a8] sm:$0xff]
      %v1773 = vld [vmem:[%s5 + $0x6b0] sm:$0xff]
      %v1774 = vld [vmem:[%s5 + $0x6b8] sm:$0xff]
      %v1775 = vld [vmem:[%s5 + $0x6c0] sm:$0xff]
      %v1776 = vld [vmem:[%s5 + $0x6c8] sm:$0xff]
      %v1777 = vld [vmem:[%s5 + $0x6d0] sm:$0xff]
      %v1778 = vld [vmem:[%s5 + $0x6d8] sm:$0xff]
      %v1779 = vld [vmem:[%s5 + $0x6e0] sm:$0xff]
      %v1780 = vld [vmem:[%s5 + $0x6e8] sm:$0xff]
      %v1781 = vld [vmem:[%s5 + $0x6f0] sm:$0xff]
      %v1782 = vld [vmem:[%s5 + $0x6f8] sm:$0xff]
      %v1783 = vld [vmem:[%s5 + $0x700] sm:$0xff]
      %v1784 = vld [vmem:[%s5 + $0x708] sm:$0xff]
      %v1785 = vld [vmem:[%s5 + $0x710] sm:$0xff]
      %v1786 = vld [vmem:[%s5 + $0x718] sm:$0xff]
      %v1787 = vld [vmem:[%s5 + $0x720] sm:$0xff]
      %v1788 = vld [vmem:[%s5 + $0x728] sm:$0xff]
      %v1789 = vld [vmem:[%s5 + $0x730] sm:$0xff]
      %v1790 = vld [vmem:[%s5 + $0x738] sm:$0xff]
      %v1791 = vld [vmem:[%s5 + $0x740] sm:$0xff]
      %v1792 = vld [vmem:[%s5 + $0x748] sm:$0xff]
      %v1793 = vld [vmem:[%s5 + $0x750] sm:$0xff]
      %v1794 = vld [vmem:[%s5 + $0x758] sm:$0xff]
      %v1795 = vld [vmem:[%s5 + $0x760] sm:$0xff]
      %v1796 = vld [vmem:[%s5 + $0x768] sm:$0xff]
      %v1797 = vld [vmem:[%s5 + $0x770] sm:$0xff]
      %v1798 = vld [vmem:[%s5 + $0x778] sm:$0xff]
      %v1799 = vld [vmem:[%s5 + $0x780] sm:$0xff]
      %v1800 = vld [vmem:[%s5 + $0x788] sm:$0xff]
      %v1801 = vld [vmem:[%s5 + $0x790] sm:$0xff]
      %v1802 = vld [vmem:[%s5 + $0x798] sm:$0xff]
      %v1803 = vld [vmem:[%s5 + $0x7a0] sm:$0xff]
      %v1804 = vld [vmem:[%s5 + $0x7a8] sm:$0xff]
      %v1805 = vld [vmem:[%s5 + $0x7b0] sm:$0xff]
      %v1806 = vld [vmem:[%s5 + $0x7b8] sm:$0xff]
      %v1807 = vld [vmem:[%s5 + $0x7c0] sm:$0xff]
      %v1808 = vld [vmem:[%s5 + $0x7c8] sm:$0xff]
      %v1809 = vld [vmem:[%s5 + $0x7d0] sm:$0xff]
      %v1810 = vld [vmem:[%s5 + $0x7d8] sm:$0xff]
      %v1811 = vld [vmem:[%s5 + $0x7e0] sm:$0xff]
      %v1812 = vld [vmem:[%s5 + $0x7e8] sm:$0xff]
      %v1813 = vld [vmem:[%s5 + $0x7f0] sm:$0xff]
      %v1814 = vld [vmem:[%s5 + $0x7f8] sm:$0xff]
      %v1815 = vld [vmem:[%s5 + $0x800] sm:$0xff]
      %v1816 = vld [vmem:[%s5 + $0x808] sm:$0xff]
      %v1817 = vld [vmem:[%s5 + $0x810] sm:$0xff]
      %v1818 = vld [vmem:[%s5 + $0x818] sm:$0xff]
      %v1819 = vld [vmem:[%s5 + $0x820] sm:$0xff]
      %v1820 = vld [vmem:[%s5 + $0x828] sm:$0xff]
      %v1821 = vld [vmem:[%s5 + $0x830] sm:$0xff]
      %v1822 = vld [vmem:[%s5 + $0x838] sm:$0xff]
      %v1823 = vld [vmem:[%s5 + $0x840] sm:$0xff]
      %v1824 = vld [vmem:[%s5 + $0x848] sm:$0xff]
      %v1825 = vld [vmem:[%s5 + $0x850] sm:$0xff]
      %v1826 = vld [vmem:[%s5 + $0x858] sm:$0xff]
      %v1827 = vld [vmem:[%s5 + $0x860] sm:$0xff]
      %v1828 = vld [vmem:[%s5 + $0x868] sm:$0xff]
      %v1829 = vld [vmem:[%s5 + $0x870] sm:$0xff]
      %v1830 = vld [vmem:[%s5 + $0x878] sm:$0xff]
      %v1831 = vld [vmem:[%s5 + $0x880] sm:$0xff]
      %v1832 = vld [vmem:[%s5 + $0x888] sm:$0xff]
      %v1833 = vld [vmem:[%s5 + $0x890] sm:$0xff]
      %v1834 = vld [vmem:[%s5 + $0x898] sm:$0xff]
      %v1835 = vld [vmem:[%s5 + $0x8a0] sm:$0xff]
      %v1836 = vld [vmem:[%s5 + $0x8a8] sm:$0xff]
      %v1837 = vld [vmem:[%s5 + $0x8b0] sm:$0xff]
      %v1838 = vld [vmem:[%s5 + $0x8b8] sm:$0xff]
      %v1839 = vld [vmem:[%s5 + $0x8c0] sm:$0xff]
      %v1840 = vld [vmem:[%s5 + $0x8c8] sm:$0xff]
      %v1841 = vld [vmem:[%s5 + $0x8d0] sm:$0xff]
      %v1842 = vld [vmem:[%s5 + $0x8d8] sm:$0xff]
      %v1843 = vld [vmem:[%s5 + $0x8e0] sm:$0xff]
      %v1844 = vld [vmem:[%s5 + $0x8e8] sm:$0xff]
      %v1845 = vld [vmem:[%s5 + $0x8f0] sm:$0xff]
      %v1846 = vld [vmem:[%s5 + $0x8f8] sm:$0xff]
      %v1847 = vld [vmem:[%s5 + $0x900] sm:$0xff]
      %v1848 = vld [vmem:[%s5 + $0x908] sm:$0xff]
      %v1849 = vld [vmem:[%s5 + $0x910] sm:$0xff]
      %v1850 = vld [vmem:[%s5 + $0x918] sm:$0xff]
      %v1851 = vld [vmem:[%s5 + $0x920] sm:$0xff]
      %v1852 = vld [vmem:[%s5 + $0x928] sm:$0xff]
      %v1853 = vld [vmem:[%s5 + $0x930] sm:$0xff]
      %v1854 = vld [vmem:[%s5 + $0x938] sm:$0xff]
      %v1855 = vld [vmem:[%s5 + $0x940] sm:$0xff]
      %v1856 = vld [vmem:[%s5 + $0x948] sm:$0xff]
      %v1857 = vld [vmem:[%s5 + $0x950] sm:$0xff]
      %v1858 = vld [vmem:[%s5 + $0x958] sm:$0xff]
      %v1859 = vld [vmem:[%s5 + $0x960] sm:$0xff]
      %v1860 = vld [vmem:[%s5 + $0x968] sm:$0xff]
      %v1861 = vld [vmem:[%s5 + $0x970] sm:$0xff]
      %v1862 = vld [vmem:[%s5 + $0x978] sm:$0xff]
      %v1863 = vld [vmem:[%s5 + $0x980] sm:$0xff]
      %v1864 = vld [vmem:[%s5 + $0x988] sm:$0xff]
      %v1865 = vld [vmem:[%s5 + $0x990] sm:$0xff]
      %v1866 = vld [vmem:[%s5 + $0x998] sm:$0xff]
      %v1867 = vld [vmem:[%s5 + $0x9a0] sm:$0xff]
      %v1868 = vld [vmem:[%s5 + $0x9a8] sm:$0xff]
      %v1869 = vld [vmem:[%s5 + $0x9b0] sm:$0xff]
      %v1870 = vld [vmem:[%s5 + $0x9b8] sm:$0xff]
      %v1871 = vld [vmem:[%s5 + $0x9c0] sm:$0xff]
      %v1872 = vld [vmem:[%s5 + $0x9c8] sm:$0xff]
      %v1873 = vld [vmem:[%s5 + $0x9d0] sm:$0xff]
      %v1874 = vld [vmem:[%s5 + $0x9d8] sm:$0xff]
      %v1875 = vld [vmem:[%s5 + $0x9e0] sm:$0xff]
      %v1876 = vld [vmem:[%s5 + $0x9e8] sm:$0xff]
      %v1877 = vld [vmem:[%s5 + $0x9f0] sm:$0xff]
      %v1878 = vld [vmem:[%s5 + $0x9f8] sm:$0xff]
      %v1879 = vld [vmem:[%s5 + $0xa00] sm:$0xff]
      %v1880 = vld [vmem:[%s5 + $0xa08] sm:$0xff]
      %v1881 = vld [vmem:[%s5 + $0xa10] sm:$0xff]
      %v1882 = vld [vmem:[%s5 + $0xa18] sm:$0xff]
      %v1883 = vld [vmem:[%s5 + $0xa20] sm:$0xff]
      %v1884 = vld [vmem:[%s5 + $0xa28] sm:$0xff]
      %v1885 = vld [vmem:[%s5 + $0xa30] sm:$0xff]
      %v1886 = vld [vmem:[%s5 + $0xa38] sm:$0xff]
      %v1887 = vld [vmem:[%s5 + $0xa40] sm:$0xff]
      %v1888 = vld [vmem:[%s5 + $0xa48] sm:$0xff]
      %v1889 = vld [vmem:[%s5 + $0xa50] sm:$0xff]
      %v1890 = vld [vmem:[%s5 + $0xa58] sm:$0xff]
      %v1891 = vld [vmem:[%s5 + $0xa60] sm:$0xff]
      %v1892 = vld [vmem:[%s5 + $0xa68] sm:$0xff]
      %v1893 = vld [vmem:[%s5 + $0xa70] sm:$0xff]
      %v1894 = vld [vmem:[%s5 + $0xa78] sm:$0xff]
      %v1895 = vld [vmem:[%s5 + $0xa80] sm:$0xff]
      %v1896 = vld [vmem:[%s5 + $0xa88] sm:$0xff]
      %v1897 = vld [vmem:[%s5 + $0xa90] sm:$0xff]
      %v1898 = vld [vmem:[%s5 + $0xa98] sm:$0xff]
      %v1899 = vld [vmem:[%s5 + $0xaa0] sm:$0xff]
      %v1900 = vld [vmem:[%s5 + $0xaa8] sm:$0xff]
      %v1901 = vld [vmem:[%s5 + $0xab0] sm:$0xff]
      %v1902 = vld [vmem:[%s5 + $0xab8] sm:$0xff]
      %v1903 = vld [vmem:[%s5 + $0xac0] sm:$0xff]
      %v1904 = vld [vmem:[%s5 + $0xac8] sm:$0xff]
      %v1905 = vld [vmem:[%s5 + $0xad0] sm:$0xff]
      %v1906 = vld [vmem:[%s5 + $0xad8] sm:$0xff]
      %v1907 = vld [vmem:[%s5 + $0xae0] sm:$0xff]
      %v1908 = vld [vmem:[%s5 + $0xae8] sm:$0xff]
      %v1909 = vld [vmem:[%s5 + $0xaf0] sm:$0xff]
      %v1910 = vld [vmem:[%s5 + $0xaf8] sm:$0xff]
      %v1911 = vld [vmem:[%s5 + $0xb00] sm:$0xff]
      %v1912 = vld [vmem:[%s5 + $0xb08] sm:$0xff]
      %v1913 = vld [vmem:[%s5 + $0xb10] sm:$0xff]
      %v1914 = vld [vmem:[%s5 + $0xb18] sm:$0xff]
      %v1915 = vld [vmem:[%s5 + $0xb20] sm:$0xff]
      %v1916 = vld [vmem:[%s5 + $0xb28] sm:$0xff]
      %v1917 = vld [vmem:[%s5 + $0xb30] sm:$0xff]
      %v1918 = vld [vmem:[%s5 + $0xb38] sm:$0xff]
      %v1919 = vld [vmem:[%s5 + $0xb40] sm:$0xff]
      %v1920 = vld [vmem:[%s5 + $0xb48] sm:$0xff]
      %v1921 = vld [vmem:[%s5 + $0xb50] sm:$0xff]
      %v1922 = vld [vmem:[%s5 + $0xb58] sm:$0xff]
      %v1923 = vld [vmem:[%s5 + $0xb60] sm:$0xff]
      %v1924 = vld [vmem:[%s5 + $0xb68] sm:$0xff]
      %v1925 = vld [vmem:[%s5 + $0xb70] sm:$0xff]
      %v1926 = vld [vmem:[%s5 + $0xb78] sm:$0xff]
      %v1927 = vld [vmem:[%s5 + $0xb80] sm:$0xff]
      %v1928 = vld [vmem:[%s5 + $0xb88] sm:$0xff]
      %v1929 = vld [vmem:[%s5 + $0xb90] sm:$0xff]
      %v1930 = vld [vmem:[%s5 + $0xb98] sm:$0xff]
      %v1931 = vld [vmem:[%s5 + $0xba0] sm:$0xff]
      %v1932 = vld [vmem:[%s5 + $0xba8] sm:$0xff]
      %v1933 = vld [vmem:[%s5 + $0xbb0] sm:$0xff]
      %v1934 = vld [vmem:[%s5 + $0xbb8] sm:$0xff]
      %v1935 = vld [vmem:[%s5 + $0xbc0] sm:$0xff]
      %v1936 = vld [vmem:[%s5 + $0xbc8] sm:$0xff]
      %v1937 = vld [vmem:[%s5 + $0xbd0] sm:$0xff]
      %v1938 = vld [vmem:[%s5 + $0xbd8] sm:$0xff]
      %v1939 = vld [vmem:[%s5 + $0xbe0] sm:$0xff]
      %v1940 = vld [vmem:[%s5 + $0xbe8] sm:$0xff]
      %v1941 = vld [vmem:[%s5 + $0xbf0] sm:$0xff]
      %v1942 = vld [vmem:[%s5 + $0xbf8] sm:$0xff]
      %v1943 = vld [vmem:[%s5 + $0xc00] sm:$0xff]
      %v1944 = vld [vmem:[%s5 + $0xc08] sm:$0xff]
      %v1945 = vld [vmem:[%s5 + $0xc10] sm:$0xff]
      %v1946 = vld [vmem:[%s5 + $0xc18] sm:$0xff]
      %v1947 = vld [vmem:[%s5 + $0xc20] sm:$0xff]
      %v1948 = vld [vmem:[%s5 + $0xc28] sm:$0xff]
      %v1949 = vld [vmem:[%s5 + $0xc30] sm:$0xff]
      %v1950 = vld [vmem:[%s5 + $0xc38] sm:$0xff]
      %v1951 = vld [vmem:[%s5 + $0xc40] sm:$0xff]
      %v1952 = vld [vmem:[%s5 + $0xc48] sm:$0xff]
      %v1953 = vld [vmem:[%s5 + $0xc50] sm:$0xff]
      %v1954 = vld [vmem:[%s5 + $0xc58] sm:$0xff]
      %v1955 = vld [vmem:[%s5 + $0xc60] sm:$0xff]
      %v1956 = vld [vmem:[%s5 + $0xc68] sm:$0xff]
      %v1957 = vld [vmem:[%s5 + $0xc70] sm:$0xff]
      %v1958 = vld [vmem:[%s5 + $0xc78] sm:$0xff]
      %v1959 = vld [vmem:[%s6] sm:$0x1]
      %v1961 = vlaneseq
      %v1962 = vshrl.u32 %v1961, 7
      %v1963 = vsub.s32 0, %v1962
      %v1964 = vrot.slane %v1959, %v1963
      %1966 = vmatprep.subr.mxu0 0.0
      %1967 = vmatpush1.msra.mxu0 %v1559
      %1968 = vmatprep.subr.mxu0 0.0
      %1969 = vmatpush1.msra.mxu0 %v1560
      %1970 = vmatprep.subr.mxu0 0.0
      %1971 = vmatpush1.msra.mxu0 %v1561
      %1972 = vmatprep.subr.mxu0 0.0
      %1973 = vmatpush1.msra.mxu0 %v1562
      %1974 = vmatprep.subr.mxu0 0.0
      %1975 = vmatpush1.msra.mxu0 %v1563
      %1976 = vmatprep.subr.mxu0 0.0
      %1977 = vmatpush1.msra.mxu0 %v1564
      %1978 = vmatprep.subr.mxu0 0.0
      %1979 = vmatpush1.msra.mxu0 %v1565
      %1980 = vmatprep.subr.mxu0 0.0
      %1981 = vmatpush1.msra.mxu0 %v1566
      %1982 = vmatprep.subr.mxu0 0.0
      %1983 = vmatpush1.msra.mxu0 %v1567
      %1984 = vmatprep.subr.mxu0 0.0
      %1985 = vmatpush1.msra.mxu0 %v1568
      %1986 = vmatprep.subr.mxu0 0.0
      %1987 = vmatpush1.msra.mxu0 %v1569
      %1988 = vmatprep.subr.mxu0 0.0
      %1989 = vmatpush1.msra.mxu0 %v1570
      %1990 = vmatprep.subr.mxu0 0.0
      %1991 = vmatpush1.msra.mxu0 %v1571
      %1992 = vmatprep.subr.mxu0 0.0
      %1993 = vmatpush1.msra.mxu0 %v1572
      %1994 = vmatprep.subr.mxu0 0.0
      %1995 = vmatpush1.msra.mxu0 %v1573
      %1996 = vmatprep.subr.mxu0 0.0
      %1997 = vmatpush1.msra.mxu0 %v1574
      %1998 = vmatprep.subr.mxu0 0.0
      %1999 = vmatpush1.msra.mxu0 %v1575
      %2000 = vmatprep.subr.mxu0 0.0
      %2001 = vmatpush1.msra.mxu0 %v1576
      %2002 = vmatprep.subr.mxu0 0.0
      %2003 = vmatpush1.msra.mxu0 %v1577
      %2004 = vmatprep.subr.mxu0 0.0
      %2005 = vmatpush1.msra.mxu0 %v1578
      %2006 = vmatprep.subr.mxu0 0.0
      %2007 = vmatpush1.msra.mxu0 %v1579
      %2008 = vmatprep.subr.mxu0 0.0
      %2009 = vmatpush1.msra.mxu0 %v1580
      %2010 = vmatprep.subr.mxu0 0.0
      %2011 = vmatpush1.msra.mxu0 %v1581
      %2012 = vmatprep.subr.mxu0 0.0
      %2013 = vmatpush1.msra.mxu0 %v1582
      %2014 = vmatprep.subr.mxu0 0.0
      %2015 = vmatpush1.msra.mxu0 %v1583
      %2016 = vmatprep.subr.mxu0 0.0
      %2017 = vmatpush1.msra.mxu0 %v1584
      %2018 = vmatprep.subr.mxu0 0.0
      %2019 = vmatpush1.msra.mxu0 %v1585
      %2020 = vmatprep.subr.mxu0 0.0
      %2021 = vmatpush1.msra.mxu0 %v1586
      %2022 = vmatprep.subr.mxu0 0.0
      %2023 = vmatpush1.msra.mxu0 %v1587
      %2024 = vmatprep.subr.mxu0 0.0
      %2025 = vmatpush1.msra.mxu0 %v1588
      %2026 = vmatprep.subr.mxu0 0.0
      %2027 = vmatpush1.msra.mxu0 %v1589
      %2028 = vmatprep.subr.mxu0 0.0
      %2029 = vmatpush1.msra.mxu0 %v1590
      %2030 = vmatprep.mubr.f32.mxu0 %v1510
      %2031 = vmatmul.mubr.f32.gmra.mrb[0].mxu0 %v1509
      %v2032 = vpop.f32.mrb[0].mxu0
      %v2033 = vadd.f32 %v1964, %v2032
      %v2034 = vpop.f32.mrb[0].mxu0
      %2035 = vmatprep.mubr.f32.mxu0 %v1535
      %2036 = vmatmul.mubr.f32.gmra.mrb[0].mxu0 %v1534
      %v2037 = vpop.f32.mrb[0].mxu0
      %v2038 = vadd.f32 %v1964, %v2037
      %v2039 = vpop.f32.mrb[0].mxu0
      %2040 = vdwg.mxu0
      %2041 = vmatprep.subr.mxu0 0.0
      %2042 = vmatpush1.msra.mxu0 %v1591
      %2043 = vmatprep.subr.mxu0 0.0
      %2044 = vmatpush1.msra.mxu0 %v1592
      %2045 = vmatprep.subr.mxu0 0.0
      %2046 = vmatpush1.msra.mxu0 %v1593
      %2047 = vmatprep.subr.mxu0 0.0
      %2048 = vmatpush1.msra.mxu0 %v1594
      %2049 = vmatprep.subr.mxu0 0.0
      %2050 = vmatpush1.msra.mxu0 %v1595
      %2051 = vmatprep.subr.mxu0 0.0
      %2052 = vmatpush1.msra.mxu0 %v1596
      %2053 = vmatprep.subr.mxu0 0.0
      %2054 = vmatpush1.msra.mxu0 %v1597
      %2055 = vmatprep.subr.mxu0 0.0
      %2056 = vmatpush1.msra.mxu0 %v1598
      %2057 = vmatprep.subr.mxu0 0.0
      %2058 = vmatpush1.msra.mxu0 %v1599
      %2059 = vmatprep.subr.mxu0 0.0
      %2060 = vmatpush1.msra.mxu0 %v1600
      %2061 = vmatprep.subr.mxu0 0.0
      %2062 = vmatpush1.msra.mxu0 %v1601
      %2063 = vmatprep.subr.mxu0 0.0
      %2064 = vmatpush1.msra.mxu0 %v1602
      %2065 = vmatprep.subr.mxu0 0.0
      %2066 = vmatpush1.msra.mxu0 %v1603
      %2067 = vmatprep.subr.mxu0 0.0
      %2068 = vmatpush1.msra.mxu0 %v1604
      %2069 = vmatprep.subr.mxu0 0.0
      %2070 = vmatpush1.msra.mxu0 %v1605
      %2071 = vmatprep.subr.mxu0 0.0
      %2072 = vmatpush1.msra.mxu0 %v1606
      %2073 = vmatprep.subr.mxu0 0.0
      %2074 = vmatpush1.msra.mxu0 %v1607
      %2075 = vmatprep.subr.mxu0 0.0
      %2076 = vmatpush1.msra.mxu0 %v1608
      %2077 = vmatprep.subr.mxu0 0.0
      %2078 = vmatpush1.msra.mxu0 %v1609
      %2079 = vmatprep.subr.mxu0 0.0
      %2080 = vmatpush1.msra.mxu0 %v1610
      %2081 = vmatprep.subr.mxu0 0.0
      %2082 = vmatpush1.msra.mxu0 %v1611
      %2083 = vmatprep.subr.mxu0 0.0
      %2084 = vmatpush1.msra.mxu0 %v1612
      %2085 = vmatprep.subr.mxu0 0.0
      %2086 = vmatpush1.msra.mxu0 %v1613
      %2087 = vmatprep.subr.mxu0 0.0
      %2088 = vmatpush1.msra.mxu0 %v1614
      %2089 = vmatprep.subr.mxu0 0.0
      %2090 = vmatpush1.msra.mxu0 %v1615
      %2091 = vmatprep.subr.mxu0 0.0
      %2092 = vmatpush1.msra.mxu0 %v1616
      %2093 = vmatprep.subr.mxu0 0.0
      %2094 = vmatpush1.msra.mxu0 %v1617
      %2095 = vmatprep.subr.mxu0 0.0
      %2096 = vmatpush1.msra.mxu0 %v1618
      %2097 = vmatprep.subr.mxu0 0.0
      %2098 = vmatpush1.msra.mxu0 %v1619
      %2099 = vmatprep.subr.mxu0 0.0
      %2100 = vmatpush1.msra.mxu0 %v1620
      %2101 = vmatprep.subr.mxu0 0.0
      %2102 = vmatpush1.msra.mxu0 %v1621
      %2103 = vmatprep.subr.mxu0 0.0
      %2104 = vmatpush1.msra.mxu0 %v1622
      %2105 = vmatprep.mubr.f32.mxu0 %v1512
      %2106 = vmatmul.mubr.f32.gmra.mrb[0].mxu0 %v1511
      %v2107 = vpop.f32.mrb[0].mxu0
      %v2108 = vadd.f32 %v2033, %v2107
      %v2109 = vpop.f32.mrb[0].mxu0
      %2110 = vmatprep.mubr.f32.mxu0 %v1537
      %2111 = vmatmul.mubr.f32.gmra.mrb[0].mxu0 %v1536
      %v2112 = vpop.f32.mrb[0].mxu0
      %v2113 = vadd.f32 %v2038, %v2112
      %v2114 = vpop.f32.mrb[0].mxu0
      %2115 = vdwg.mxu0
      %2116 = vmatprep.subr.mxu0 0.0
      %2117 = vmatpush1.msra.mxu0 %v1623
      %2118 = vmatprep.subr.mxu0 0.0
      %2119 = vmatpush1.msra.mxu0 %v1624
      %2120 = vmatprep.subr.mxu0 0.0
      %2121 = vmatpush1.msra.mxu0 %v1625
      %2122 = vmatprep.subr.mxu0 0.0
      %2123 = vmatpush1.msra.mxu0 %v1626
      %2124 = vmatprep.subr.mxu0 0.0
      %2125 = vmatpush1.msra.mxu0 %v1627
      %2126 = vmatprep.subr.mxu0 0.0
      %2127 = vmatpush1.msra.mxu0 %v1628
      %2128 = vmatprep.subr.mxu0 0.0
      %2129 = vmatpush1.msra.mxu0 %v1629
      %2130 = vmatprep.subr.mxu0 0.0
      %2131 = vmatpush1.msra.mxu0 %v1630
      %2132 = vmatprep.subr.mxu0 0.0
      %2133 = vmatpush1.msra.mxu0 %v1631
      %2134 = vmatprep.subr.mxu0 0.0
      %2135 = vmatpush1.msra.mxu0 %v1632
      %2136 = vmatprep.subr.mxu0 0.0
      %2137 = vmatpush1.msra.mxu0 %v1633
      %2138 = vmatprep.subr.mxu0 0.0
      %2139 = vmatpush1.msra.mxu0 %v1634
      %2140 = vmatprep.subr.mxu0 0.0
      %2141 = vmatpush1.msra.mxu0 %v1635
      %2142 = vmatprep.subr.mxu0 0.0
      %2143 = vmatpush1.msra.mxu0 %v1636
      %2144 = vmatprep.subr.mxu0 0.0
      %2145 = vmatpush1.msra.mxu0 %v1637
      %2146 = vmatprep.subr.mxu0 0.0
      %2147 = vmatpush1.msra.mxu0 %v1638
      %2148 = vmatprep.subr.mxu0 0.0
      %2149 = vmatpush1.msra.mxu0 %v1639
      %2150 = vmatprep.subr.mxu0 0.0
      %2151 = vmatpush1.msra.mxu0 %v1640
      %2152 = vmatprep.subr.mxu0 0.0
      %2153 = vmatpush1.msra.mxu0 %v1641
      %2154 = vmatprep.subr.mxu0 0.0
      %2155 = vmatpush1.msra.mxu0 %v1642
      %2156 = vmatprep.subr.mxu0 0.0
      %2157 = vmatpush1.msra.mxu0 %v1643
      %2158 = vmatprep.subr.mxu0 0.0
      %2159 = vmatpush1.msra.mxu0 %v1644
      %2160 = vmatprep.subr.mxu0 0.0
      %2161 = vmatpush1.msra.mxu0 %v1645
      %2162 = vmatprep.subr.mxu0 0.0
      %2163 = vmatpush1.msra.mxu0 %v1646
      %2164 = vmatprep.subr.mxu0 0.0
      %2165 = vmatpush1.msra.mxu0 %v1647
      %2166 = vmatprep.subr.mxu0 0.0
      %2167 = vmatpush1.msra.mxu0 %v1648
      %2168 = vmatprep.subr.mxu0 0.0
      %2169 = vmatpush1.msra.mxu0 %v1649
      %2170 = vmatprep.subr.mxu0 0.0
      %2171 = vmatpush1.msra.mxu0 %v1650
      %2172 = vmatprep.subr.mxu0 0.0
      %2173 = vmatpush1.msra.mxu0 %v1651
      %2174 = vmatprep.subr.mxu0 0.0
      %2175 = vmatpush1.msra.mxu0 %v1652
      %2176 = vmatprep.subr.mxu0 0.0
      %2177 = vmatpush1.msra.mxu0 %v1653
      %2178 = vmatprep.subr.mxu0 0.0
      %2179 = vmatpush1.msra.mxu0 %v1654
      %2180 = vmatprep.mubr.f32.mxu0 %v1514
      %2181 = vmatmul.mubr.f32.gmra.mrb[0].mxu0 %v1513
      %v2182 = vpop.f32.mrb[0].mxu0
      %v2183 = vadd.f32 %v2108, %v2182
      %v2184 = vpop.f32.mrb[0].mxu0
      %2185 = vmatprep.mubr.f32.mxu0 %v1539
      %2186 = vmatmul.mubr.f32.gmra.mrb[0].mxu0 %v1538
      %v2187 = vpop.f32.mrb[0].mxu0
      %v2188 = vadd.f32 %v2113, %v2187
      %v2189 = vpop.f32.mrb[0].mxu0
      %2190 = vdwg.mxu0
      %2191 = vmatprep.subr.mxu0 0.0
      %2192 = vmatpush1.msra.mxu0 %v1655
      %2193 = vmatprep.subr.mxu0 0.0
      %2194 = vmatpush1.msra.mxu0 %v1656
      %2195 = vmatprep.subr.mxu0 0.0
      %2196 = vmatpush1.msra.mxu0 %v1657
      %2197 = vmatprep.subr.mxu0 0.0
      %2198 = vmatpush1.msra.mxu0 %v1658
      %2199 = vmatprep.subr.mxu0 0.0
      %2200 = vmatpush1.msra.mxu0 %v1659
      %2201 = vmatprep.subr.mxu0 0.0
      %2202 = vmatpush1.msra.mxu0 %v1660
      %2203 = vmatprep.subr.mxu0 0.0
      %2204 = vmatpush1.msra.mxu0 %v1661
      %2205 = vmatprep.subr.mxu0 0.0
      %2206 = vmatpush1.msra.mxu0 %v1662
      %2207 = vmatprep.subr.mxu0 0.0
      %2208 = vmatpush1.msra.mxu0 %v1663
      %2209 = vmatprep.subr.mxu0 0.0
      %2210 = vmatpush1.msra.mxu0 %v1664
      %2211 = vmatprep.subr.mxu0 0.0
      %2212 = vmatpush1.msra.mxu0 %v1665
      %2213 = vmatprep.subr.mxu0 0.0
      %2214 = vmatpush1.msra.mxu0 %v1666
      %2215 = vmatprep.subr.mxu0 0.0
      %2216 = vmatpush1.msra.mxu0 %v1667
      %2217 = vmatprep.subr.mxu0 0.0
      %2218 = vmatpush1.msra.mxu0 %v1668
      %2219 = vmatprep.subr.mxu0 0.0
      %2220 = vmatpush1.msra.mxu0 %v1669
      %2221 = vmatprep.subr.mxu0 0.0
      %2222 = vmatpush1.msra.mxu0 %v1670
      %2223 = vmatprep.subr.mxu0 0.0
      %2224 = vmatpush1.msra.mxu0 %v1671
      %2225 = vmatprep.subr.mxu0 0.0
      %2226 = vmatpush1.msra.mxu0 %v1672
      %2227 = vmatprep.subr.mxu0 0.0
      %2228 = vmatpush1.msra.mxu0 %v1673
      %2229 = vmatprep.subr.mxu0 0.0
      %2230 = vmatpush1.msra.mxu0 %v1674
      %2231 = vmatprep.subr.mxu0 0.0
      %2232 = vmatpush1.msra.mxu0 %v1675
      %2233 = vmatprep.subr.mxu0 0.0
      %2234 = vmatpush1.msra.mxu0 %v1676
      %2235 = vmatprep.subr.mxu0 0.0
      %2236 = vmatpush1.msra.mxu0 %v1677
      %2237 = vmatprep.subr.mxu0 0.0
      %2238 = vmatpush1.msra.mxu0 %v1678
      %2239 = vmatprep.subr.mxu0 0.0
      %2240 = vmatpush1.msra.mxu0 %v1679
      %2241 = vmatprep.subr.mxu0 0.0
      %2242 = vmatpush1.msra.mxu0 %v1680
      %2243 = vmatprep.subr.mxu0 0.0
      %2244 = vmatpush1.msra.mxu0 %v1681
      %2245 = vmatprep.subr.mxu0 0.0
      %2246 = vmatpush1.msra.mxu0 %v1682
      %2247 = vmatprep.subr.mxu0 0.0
      %2248 = vmatpush1.msra.mxu0 %v1683
      %2249 = vmatprep.subr.mxu0 0.0
      %2250 = vmatpush1.msra.mxu0 %v1684
      %2251 = vmatprep.subr.mxu0 0.0
      %2252 = vmatpush1.msra.mxu0 %v1685
      %2253 = vmatprep.subr.mxu0 0.0
      %2254 = vmatpush1.msra.mxu0 %v1686
      %2255 = vmatprep.mubr.f32.mxu0 %v1516
      %2256 = vmatmul.mubr.f32.gmra.mrb[0].mxu0 %v1515
      %v2257 = vpop.f32.mrb[0].mxu0
      %v2258 = vadd.f32 %v2183, %v2257
      %v2259 = vpop.f32.mrb[0].mxu0
      %2260 = vmatprep.mubr.f32.mxu0 %v1541
      %2261 = vmatmul.mubr.f32.gmra.mrb[0].mxu0 %v1540
      %v2262 = vpop.f32.mrb[0].mxu0
      %v2263 = vadd.f32 %v2188, %v2262
      %v2264 = vpop.f32.mrb[0].mxu0
      %2265 = vdwg.mxu0
      %2266 = vmatprep.subr.mxu0 0.0
      %2267 = vmatpush1.msra.mxu0 %v1687
      %2268 = vmatprep.subr.mxu0 0.0
      %2269 = vmatpush1.msra.mxu0 %v1688
      %2270 = vmatprep.subr.mxu0 0.0
      %2271 = vmatpush1.msra.mxu0 %v1689
      %2272 = vmatprep.subr.mxu0 0.0
      %2273 = vmatpush1.msra.mxu0 %v1690
      %2274 = vmatprep.subr.mxu0 0.0
      %2275 = vmatpush1.msra.mxu0 %v1691
      %2276 = vmatprep.subr.mxu0 0.0
      %2277 = vmatpush1.msra.mxu0 %v1692
      %2278 = vmatprep.subr.mxu0 0.0
      %2279 = vmatpush1.msra.mxu0 %v1693
      %2280 = vmatprep.subr.mxu0 0.0
      %2281 = vmatpush1.msra.mxu0 %v1694
      %2282 = vmatprep.subr.mxu0 0.0
      %2283 = vmatpush1.msra.mxu0 %v1695
      %2284 = vmatprep.subr.mxu0 0.0
      %2285 = vmatpush1.msra.mxu0 %v1696
      %2286 = vmatprep.subr.mxu0 0.0
      %2287 = vmatpush1.msra.mxu0 %v1697
      %2288 = vmatprep.subr.mxu0 0.0
      %2289 = vmatpush1.msra.mxu0 %v1698
      %2290 = vmatprep.subr.mxu0 0.0
      %2291 = vmatpush1.msra.mxu0 %v1699
      %2292 = vmatprep.subr.mxu0 0.0
      %2293 = vmatpush1.msra.mxu0 %v1700
      %2294 = vmatprep.subr.mxu0 0.0
      %2295 = vmatpush1.msra.mxu0 %v1701
      %2296 = vmatprep.subr.mxu0 0.0
      %2297 = vmatpush1.msra.mxu0 %v1702
      %2298 = vmatprep.subr.mxu0 0.0
      %2299 = vmatpush1.msra.mxu0 %v1703
      %2300 = vmatprep.subr.mxu0 0.0
      %2301 = vmatpush1.msra.mxu0 %v1704
      %2302 = vmatprep.subr.mxu0 0.0
      %2303 = vmatpush1.msra.mxu0 %v1705
      %2304 = vmatprep.subr.mxu0 0.0
      %2305 = vmatpush1.msra.mxu0 %v1706
      %2306 = vmatprep.subr.mxu0 0.0
      %2307 = vmatpush1.msra.mxu0 %v1707
      %2308 = vmatprep.subr.mxu0 0.0
      %2309 = vmatpush1.msra.mxu0 %v1708
      %2310 = vmatprep.subr.mxu0 0.0
      %2311 = vmatpush1.msra.mxu0 %v1709
      %2312 = vmatprep.subr.mxu0 0.0
      %2313 = vmatpush1.msra.mxu0 %v1710
      %2314 = vmatprep.subr.mxu0 0.0
      %2315 = vmatpush1.msra.mxu0 %v1711
      %2316 = vmatprep.subr.mxu0 0.0
      %2317 = vmatpush1.msra.mxu0 %v1712
      %2318 = vmatprep.subr.mxu0 0.0
      %2319 = vmatpush1.msra.mxu0 %v1713
      %2320 = vmatprep.subr.mxu0 0.0
      %2321 = vmatpush1.msra.mxu0 %v1714
      %2322 = vmatprep.subr.mxu0 0.0
      %2323 = vmatpush1.msra.mxu0 %v1715
      %2324 = vmatprep.subr.mxu0 0.0
      %2325 = vmatpush1.msra.mxu0 %v1716
      %2326 = vmatprep.subr.mxu0 0.0
      %2327 = vmatpush1.msra.mxu0 %v1717
      %2328 = vmatprep.subr.mxu0 0.0
      %2329 = vmatpush1.msra.mxu0 %v1718
      %2330 = vmatprep.mubr.f32.mxu0 %v1518
      %2331 = vmatmul.mubr.f32.gmra.mrb[0].mxu0 %v1517
      %v2332 = vpop.f32.mrb[0].mxu0
      %v2333 = vadd.f32 %v2258, %v2332
      %v2334 = vpop.f32.mrb[0].mxu0
      %2335 = vmatprep.mubr.f32.mxu0 %v1543
      %2336 = vmatmul.mubr.f32.gmra.mrb[0].mxu0 %v1542
      %v2337 = vpop.f32.mrb[0].mxu0
      %v2338 = vadd.f32 %v2263, %v2337
      %v2339 = vpop.f32.mrb[0].mxu0
      %2340 = vdwg.mxu0
      %2341 = vmatprep.subr.mxu0 0.0
      %2342 = vmatpush1.msra.mxu0 %v1719
      %2343 = vmatprep.subr.mxu0 0.0
      %2344 = vmatpush1.msra.mxu0 %v1720
      %2345 = vmatprep.subr.mxu0 0.0
      %2346 = vmatpush1.msra.mxu0 %v1721
      %2347 = vmatprep.subr.mxu0 0.0
      %2348 = vmatpush1.msra.mxu0 %v1722
      %2349 = vmatprep.subr.mxu0 0.0
      %2350 = vmatpush1.msra.mxu0 %v1723
      %2351 = vmatprep.subr.mxu0 0.0
      %2352 = vmatpush1.msra.mxu0 %v1724
      %2353 = vmatprep.subr.mxu0 0.0
      %2354 = vmatpush1.msra.mxu0 %v1725
      %2355 = vmatprep.subr.mxu0 0.0
      %2356 = vmatpush1.msra.mxu0 %v1726
      %2357 = vmatprep.subr.mxu0 0.0
      %2358 = vmatpush1.msra.mxu0 %v1727
      %2359 = vmatprep.subr.mxu0 0.0
      %2360 = vmatpush1.msra.mxu0 %v1728
      %2361 = vmatprep.subr.mxu0 0.0
      %2362 = vmatpush1.msra.mxu0 %v1729
      %2363 = vmatprep.subr.mxu0 0.0
      %2364 = vmatpush1.msra.mxu0 %v1730
      %2365 = vmatprep.subr.mxu0 0.0
      %2366 = vmatpush1.msra.mxu0 %v1731
      %2367 = vmatprep.subr.mxu0 0.0
      %2368 = vmatpush1.msra.mxu0 %v1732
      %2369 = vmatprep.subr.mxu0 0.0
      %2370 = vmatpush1.msra.mxu0 %v1733
      %2371 = vmatprep.subr.mxu0 0.0
      %2372 = vmatpush1.msra.mxu0 %v1734
      %2373 = vmatprep.subr.mxu0 0.0
      %2374 = vmatpush1.msra.mxu0 %v1735
      %2375 = vmatprep.subr.mxu0 0.0
      %2376 = vmatpush1.msra.mxu0 %v1736
      %2377 = vmatprep.subr.mxu0 0.0
      %2378 = vmatpush1.msra.mxu0 %v1737
      %2379 = vmatprep.subr.mxu0 0.0
      %2380 = vmatpush1.msra.mxu0 %v1738
      %2381 = vmatprep.subr.mxu0 0.0
      %2382 = vmatpush1.msra.mxu0 %v1739
      %2383 = vmatprep.subr.mxu0 0.0
      %2384 = vmatpush1.msra.mxu0 %v1740
      %2385 = vmatprep.subr.mxu0 0.0
      %2386 = vmatpush1.msra.mxu0 %v1741
      %2387 = vmatprep.subr.mxu0 0.0
      %2388 = vmatpush1.msra.mxu0 %v1742
      %2389 = vmatprep.subr.mxu0 0.0
      %2390 = vmatpush1.msra.mxu0 %v1743
      %2391 = vmatprep.subr.mxu0 0.0
      %2392 = vmatpush1.msra.mxu0 %v1744
      %2393 = vmatprep.subr.mxu0 0.0
      %2394 = vmatpush1.msra.mxu0 %v1745
      %2395 = vmatprep.subr.mxu0 0.0
      %2396 = vmatpush1.msra.mxu0 %v1746
      %2397 = vmatprep.subr.mxu0 0.0
      %2398 = vmatpush1.msra.mxu0 %v1747
      %2399 = vmatprep.subr.mxu0 0.0
      %2400 = vmatpush1.msra.mxu0 %v1748
      %2401 = vmatprep.subr.mxu0 0.0
      %2402 = vmatpush1.msra.mxu0 %v1749
      %2403 = vmatprep.subr.mxu0 0.0
      %2404 = vmatpush1.msra.mxu0 %v1750
      %2405 = vmatprep.mubr.f32.mxu0 %v1520
      %2406 = vmatmul.mubr.f32.gmra.mrb[0].mxu0 %v1519
      %v2407 = vpop.f32.mrb[0].mxu0
      %v2408 = vadd.f32 %v2333, %v2407
      %v2409 = vpop.f32.mrb[0].mxu0
      %2410 = vmatprep.mubr.f32.mxu0 %v1545
      %2411 = vmatmul.mubr.f32.gmra.mrb[0].mxu0 %v1544
      %v2412 = vpop.f32.mrb[0].mxu0
      %v2413 = vadd.f32 %v2338, %v2412
      %v2414 = vpop.f32.mrb[0].mxu0
      %2415 = vdwg.mxu0
      %2416 = vmatprep.subr.mxu0 0.0
      %2417 = vmatpush1.msra.mxu0 %v1751
      %2418 = vmatprep.subr.mxu0 0.0
      %2419 = vmatpush1.msra.mxu0 %v1752
      %2420 = vmatprep.subr.mxu0 0.0
      %2421 = vmatpush1.msra.mxu0 %v1753
      %2422 = vmatprep.subr.mxu0 0.0
      %2423 = vmatpush1.msra.mxu0 %v1754
      %2424 = vmatprep.subr.mxu0 0.0
      %2425 = vmatpush1.msra.mxu0 %v1755
      %2426 = vmatprep.subr.mxu0 0.0
      %2427 = vmatpush1.msra.mxu0 %v1756
      %2428 = vmatprep.subr.mxu0 0.0
      %2429 = vmatpush1.msra.mxu0 %v1757
      %2430 = vmatprep.subr.mxu0 0.0
      %2431 = vmatpush1.msra.mxu0 %v1758
      %2432 = vmatprep.subr.mxu0 0.0
      %2433 = vmatpush1.msra.mxu0 %v1759
      %2434 = vmatprep.subr.mxu0 0.0
      %2435 = vmatpush1.msra.mxu0 %v1760
      %2436 = vmatprep.subr.mxu0 0.0
      %2437 = vmatpush1.msra.mxu0 %v1761
      %2438 = vmatprep.subr.mxu0 0.0
      %2439 = vmatpush1.msra.mxu0 %v1762
      %2440 = vmatprep.subr.mxu0 0.0
      %2441 = vmatpush1.msra.mxu0 %v1763
      %2442 = vmatprep.subr.mxu0 0.0
      %2443 = vmatpush1.msra.mxu0 %v1764
      %2444 = vmatprep.subr.mxu0 0.0
      %2445 = vmatpush1.msra.mxu0 %v1765
      %2446 = vmatprep.subr.mxu0 0.0
      %2447 = vmatpush1.msra.mxu0 %v1766
      %2448 = vmatprep.subr.mxu0 0.0
      %2449 = vmatpush1.msra.mxu0 %v1767
      %2450 = vmatprep.subr.mxu0 0.0
      %2451 = vmatpush1.msra.mxu0 %v1768
      %2452 = vmatprep.subr.mxu0 0.0
      %2453 = vmatpush1.msra.mxu0 %v1769
      %2454 = vmatprep.subr.mxu0 0.0
      %2455 = vmatpush1.msra.mxu0 %v1770
      %2456 = vmatprep.subr.mxu0 0.0
      %2457 = vmatpush1.msra.mxu0 %v1771
      %2458 = vmatprep.subr.mxu0 0.0
      %2459 = vmatpush1.msra.mxu0 %v1772
      %2460 = vmatprep.subr.mxu0 0.0
      %2461 = vmatpush1.msra.mxu0 %v1773
      %2462 = vmatprep.subr.mxu0 0.0
      %2463 = vmatpush1.msra.mxu0 %v1774
      %2464 = vmatprep.subr.mxu0 0.0
      %2465 = vmatpush1.msra.mxu0 %v1775
      %2466 = vmatprep.subr.mxu0 0.0
      %2467 = vmatpush1.msra.mxu0 %v1776
      %2468 = vmatprep.subr.mxu0 0.0
      %2469 = vmatpush1.msra.mxu0 %v1777
      %2470 = vmatprep.subr.mxu0 0.0
      %2471 = vmatpush1.msra.mxu0 %v1778
      %2472 = vmatprep.subr.mxu0 0.0
      %2473 = vmatpush1.msra.mxu0 %v1779
      %2474 = vmatprep.subr.mxu0 0.0
      %2475 = vmatpush1.msra.mxu0 %v1780
      %2476 = vmatprep.subr.mxu0 0.0
      %2477 = vmatpush1.msra.mxu0 %v1781
      %2478 = vmatprep.subr.mxu0 0.0
      %2479 = vmatpush1.msra.mxu0 %v1782
      %2480 = vmatprep.mubr.f32.mxu0 %v1522
      %2481 = vmatmul.mubr.f32.gmra.mrb[0].mxu0 %v1521
      %v2482 = vpop.f32.mrb[0].mxu0
      %v2483 = vadd.f32 %v2408, %v2482
      %v2484 = vpop.f32.mrb[0].mxu0
      %2485 = vmatprep.mubr.f32.mxu0 %v1547
      %2486 = vmatmul.mubr.f32.gmra.mrb[0].mxu0 %v1546
      %v2487 = vpop.f32.mrb[0].mxu0
      %v2488 = vadd.f32 %v2413, %v2487
      %v2489 = vpop.f32.mrb[0].mxu0
      %2490 = vdwg.mxu0
      %2491 = vmatprep.subr.mxu0 0.0
      %2492 = vmatpush1.msra.mxu0 %v1783
      %2493 = vmatprep.subr.mxu0 0.0
      %2494 = vmatpush1.msra.mxu0 %v1784
      %2495 = vmatprep.subr.mxu0 0.0
      %2496 = vmatpush1.msra.mxu0 %v1785
      %2497 = vmatprep.subr.mxu0 0.0
      %2498 = vmatpush1.msra.mxu0 %v1786
      %2499 = vmatprep.subr.mxu0 0.0
      %2500 = vmatpush1.msra.mxu0 %v1787
      %2501 = vmatprep.subr.mxu0 0.0
      %2502 = vmatpush1.msra.mxu0 %v1788
      %2503 = vmatprep.subr.mxu0 0.0
      %2504 = vmatpush1.msra.mxu0 %v1789
      %2505 = vmatprep.subr.mxu0 0.0
      %2506 = vmatpush1.msra.mxu0 %v1790
      %2507 = vmatprep.subr.mxu0 0.0
      %2508 = vmatpush1.msra.mxu0 %v1791
      %2509 = vmatprep.subr.mxu0 0.0
      %2510 = vmatpush1.msra.mxu0 %v1792
      %2511 = vmatprep.subr.mxu0 0.0
      %2512 = vmatpush1.msra.mxu0 %v1793
      %2513 = vmatprep.subr.mxu0 0.0
      %2514 = vmatpush1.msra.mxu0 %v1794
      %2515 = vmatprep.subr.mxu0 0.0
      %2516 = vmatpush1.msra.mxu0 %v1795
      %2517 = vmatprep.subr.mxu0 0.0
      %2518 = vmatpush1.msra.mxu0 %v1796
      %2519 = vmatprep.subr.mxu0 0.0
      %2520 = vmatpush1.msra.mxu0 %v1797
      %2521 = vmatprep.subr.mxu0 0.0
      %2522 = vmatpush1.msra.mxu0 %v1798
      %2523 = vmatprep.subr.mxu0 0.0
      %2524 = vmatpush1.msra.mxu0 %v1799
      %2525 = vmatprep.subr.mxu0 0.0
      %2526 = vmatpush1.msra.mxu0 %v1800
      %2527 = vmatprep.subr.mxu0 0.0
      %2528 = vmatpush1.msra.mxu0 %v1801
      %2529 = vmatprep.subr.mxu0 0.0
      %2530 = vmatpush1.msra.mxu0 %v1802
      %2531 = vmatprep.subr.mxu0 0.0
      %2532 = vmatpush1.msra.mxu0 %v1803
      %2533 = vmatprep.subr.mxu0 0.0
      %2534 = vmatpush1.msra.mxu0 %v1804
      %2535 = vmatprep.subr.mxu0 0.0
      %2536 = vmatpush1.msra.mxu0 %v1805
      %2537 = vmatprep.subr.mxu0 0.0
      %2538 = vmatpush1.msra.mxu0 %v1806
      %2539 = vmatprep.subr.mxu0 0.0
      %2540 = vmatpush1.msra.mxu0 %v1807
      %2541 = vmatprep.subr.mxu0 0.0
      %2542 = vmatpush1.msra.mxu0 %v1808
      %2543 = vmatprep.subr.mxu0 0.0
      %2544 = vmatpush1.msra.mxu0 %v1809
      %2545 = vmatprep.subr.mxu0 0.0
      %2546 = vmatpush1.msra.mxu0 %v1810
      %2547 = vmatprep.subr.mxu0 0.0
      %2548 = vmatpush1.msra.mxu0 %v1811
      %2549 = vmatprep.subr.mxu0 0.0
      %2550 = vmatpush1.msra.mxu0 %v1812
      %2551 = vmatprep.subr.mxu0 0.0
      %2552 = vmatpush1.msra.mxu0 %v1813
      %2553 = vmatprep.subr.mxu0 0.0
      %2554 = vmatpush1.msra.mxu0 %v1814
      %2555 = vmatprep.mubr.f32.mxu0 %v1524
      %2556 = vmatmul.mubr.f32.gmra.mrb[0].mxu0 %v1523
      %v2557 = vpop.f32.mrb[0].mxu0
      %v2558 = vadd.f32 %v2483, %v2557
      %v2559 = vpop.f32.mrb[0].mxu0
      %2560 = vmatprep.mubr.f32.mxu0 %v1549
      %2561 = vmatmul.mubr.f32.gmra.mrb[0].mxu0 %v1548
      %v2562 = vpop.f32.mrb[0].mxu0
      %v2563 = vadd.f32 %v2488, %v2562
      %v2564 = vpop.f32.mrb[0].mxu0
      %2565 = vdwg.mxu0
      %2566 = vmatprep.subr.mxu0 0.0
      %2567 = vmatpush1.msra.mxu0 %v1815
      %2568 = vmatprep.subr.mxu0 0.0
      %2569 = vmatpush1.msra.mxu0 %v1816
      %2570 = vmatprep.subr.mxu0 0.0
      %2571 = vmatpush1.msra.mxu0 %v1817
      %2572 = vmatprep.subr.mxu0 0.0
      %2573 = vmatpush1.msra.mxu0 %v1818
      %2574 = vmatprep.subr.mxu0 0.0
      %2575 = vmatpush1.msra.mxu0 %v1819
      %2576 = vmatprep.subr.mxu0 0.0
      %2577 = vmatpush1.msra.mxu0 %v1820
      %2578 = vmatprep.subr.mxu0 0.0
      %2579 = vmatpush1.msra.mxu0 %v1821
      %2580 = vmatprep.subr.mxu0 0.0
      %2581 = vmatpush1.msra.mxu0 %v1822
      %2582 = vmatprep.subr.mxu0 0.0
      %2583 = vmatpush1.msra.mxu0 %v1823
      %2584 = vmatprep.subr.mxu0 0.0
      %2585 = vmatpush1.msra.mxu0 %v1824
      %2586 = vmatprep.subr.mxu0 0.0
      %2587 = vmatpush1.msra.mxu0 %v1825
      %2588 = vmatprep.subr.mxu0 0.0
      %2589 = vmatpush1.msra.mxu0 %v1826
      %2590 = vmatprep.subr.mxu0 0.0
      %2591 = vmatpush1.msra.mxu0 %v1827
      %2592 = vmatprep.subr.mxu0 0.0
      %2593 = vmatpush1.msra.mxu0 %v1828
      %2594 = vmatprep.subr.mxu0 0.0
      %2595 = vmatpush1.msra.mxu0 %v1829
      %2596 = vmatprep.subr.mxu0 0.0
      %2597 = vmatpush1.msra.mxu0 %v1830
      %2598 = vmatprep.subr.mxu0 0.0
      %2599 = vmatpush1.msra.mxu0 %v1831
      %2600 = vmatprep.subr.mxu0 0.0
      %2601 = vmatpush1.msra.mxu0 %v1832
      %2602 = vmatprep.subr.mxu0 0.0
      %2603 = vmatpush1.msra.mxu0 %v1833
      %2604 = vmatprep.subr.mxu0 0.0
      %2605 = vmatpush1.msra.mxu0 %v1834
      %2606 = vmatprep.subr.mxu0 0.0
      %2607 = vmatpush1.msra.mxu0 %v1835
      %2608 = vmatprep.subr.mxu0 0.0
      %2609 = vmatpush1.msra.mxu0 %v1836
      %2610 = vmatprep.subr.mxu0 0.0
      %2611 = vmatpush1.msra.mxu0 %v1837
      %2612 = vmatprep.subr.mxu0 0.0
      %2613 = vmatpush1.msra.mxu0 %v1838
      %2614 = vmatprep.subr.mxu0 0.0
      %2615 = vmatpush1.msra.mxu0 %v1839
      %2616 = vmatprep.subr.mxu0 0.0
      %2617 = vmatpush1.msra.mxu0 %v1840
      %2618 = vmatprep.subr.mxu0 0.0
      %2619 = vmatpush1.msra.mxu0 %v1841
      %2620 = vmatprep.subr.mxu0 0.0
      %2621 = vmatpush1.msra.mxu0 %v1842
      %2622 = vmatprep.subr.mxu0 0.0
      %2623 = vmatpush1.msra.mxu0 %v1843
      %2624 = vmatprep.subr.mxu0 0.0
      %2625 = vmatpush1.msra.mxu0 %v1844
      %2626 = vmatprep.subr.mxu0 0.0
      %2627 = vmatpush1.msra.mxu0 %v1845
      %2628 = vmatprep.subr.mxu0 0.0
      %2629 = vmatpush1.msra.mxu0 %v1846
      %2630 = vmatprep.mubr.f32.mxu0 %v1526
      %2631 = vmatmul.mubr.f32.gmra.mrb[0].mxu0 %v1525
      %v2632 = vpop.f32.mrb[0].mxu0
      %v2633 = vadd.f32 %v2558, %v2632
      %v2634 = vpop.f32.mrb[0].mxu0
      %2635 = vmatprep.mubr.f32.mxu0 %v1551
      %2636 = vmatmul.mubr.f32.gmra.mrb[0].mxu0 %v1550
      %v2637 = vpop.f32.mrb[0].mxu0
      %v2638 = vadd.f32 %v2563, %v2637
      %v2639 = vpop.f32.mrb[0].mxu0
      %2640 = vdwg.mxu0
      %2641 = vmatprep.subr.mxu0 0.0
      %2642 = vmatpush1.msra.mxu0 %v1847
      %2643 = vmatprep.subr.mxu0 0.0
      %2644 = vmatpush1.msra.mxu0 %v1848
      %2645 = vmatprep.subr.mxu0 0.0
      %2646 = vmatpush1.msra.mxu0 %v1849
      %2647 = vmatprep.subr.mxu0 0.0
      %2648 = vmatpush1.msra.mxu0 %v1850
      %2649 = vmatprep.subr.mxu0 0.0
      %2650 = vmatpush1.msra.mxu0 %v1851
      %2651 = vmatprep.subr.mxu0 0.0
      %2652 = vmatpush1.msra.mxu0 %v1852
      %2653 = vmatprep.subr.mxu0 0.0
      %2654 = vmatpush1.msra.mxu0 %v1853
      %2655 = vmatprep.subr.mxu0 0.0
      %2656 = vmatpush1.msra.mxu0 %v1854
      %2657 = vmatprep.subr.mxu0 0.0
      %2658 = vmatpush1.msra.mxu0 %v1855
      %2659 = vmatprep.subr.mxu0 0.0
      %2660 = vmatpush1.msra.mxu0 %v1856
      %2661 = vmatprep.subr.mxu0 0.0
      %2662 = vmatpush1.msra.mxu0 %v1857
      %2663 = vmatprep.subr.mxu0 0.0
      %2664 = vmatpush1.msra.mxu0 %v1858
      %2665 = vmatprep.subr.mxu0 0.0
      %2666 = vmatpush1.msra.mxu0 %v1859
      %2667 = vmatprep.subr.mxu0 0.0
      %2668 = vmatpush1.msra.mxu0 %v1860
      %2669 = vmatprep.subr.mxu0 0.0
      %2670 = vmatpush1.msra.mxu0 %v1861
      %2671 = vmatprep.subr.mxu0 0.0
      %2672 = vmatpush1.msra.mxu0 %v1862
      %2673 = vmatprep.subr.mxu0 0.0
      %2674 = vmatpush1.msra.mxu0 %v1863
      %2675 = vmatprep.subr.mxu0 0.0
      %2676 = vmatpush1.msra.mxu0 %v1864
      %2677 = vmatprep.subr.mxu0 0.0
      %2678 = vmatpush1.msra.mxu0 %v1865
      %2679 = vmatprep.subr.mxu0 0.0
      %2680 = vmatpush1.msra.mxu0 %v1866
      %2681 = vmatprep.subr.mxu0 0.0
      %2682 = vmatpush1.msra.mxu0 %v1867
      %2683 = vmatprep.subr.mxu0 0.0
      %2684 = vmatpush1.msra.mxu0 %v1868
      %2685 = vmatprep.subr.mxu0 0.0
      %2686 = vmatpush1.msra.mxu0 %v1869
      %2687 = vmatprep.subr.mxu0 0.0
      %2688 = vmatpush1.msra.mxu0 %v1870
      %2689 = vmatprep.subr.mxu0 0.0
      %2690 = vmatpush1.msra.mxu0 %v1871
      %2691 = vmatprep.subr.mxu0 0.0
      %2692 = vmatpush1.msra.mxu0 %v1872
      %2693 = vmatprep.subr.mxu0 0.0
      %2694 = vmatpush1.msra.mxu0 %v1873
      %2695 = vmatprep.subr.mxu0 0.0
      %2696 = vmatpush1.msra.mxu0 %v1874
      %2697 = vmatprep.subr.mxu0 0.0
      %2698 = vmatpush1.msra.mxu0 %v1875
      %2699 = vmatprep.subr.mxu0 0.0
      %2700 = vmatpush1.msra.mxu0 %v1876
      %2701 = vmatprep.subr.mxu0 0.0
      %2702 = vmatpush1.msra.mxu0 %v1877
      %2703 = vmatprep.subr.mxu0 0.0
      %2704 = vmatpush1.msra.mxu0 %v1878
      %2705 = vmatprep.mubr.f32.mxu0 %v1528
      %2706 = vmatmul.mubr.f32.gmra.mrb[0].mxu0 %v1527
      %v2707 = vpop.f32.mrb[0].mxu0
      %v2708 = vadd.f32 %v2633, %v2707
      %v2709 = vpop.f32.mrb[0].mxu0
      %2710 = vmatprep.mubr.f32.mxu0 %v1553
      %2711 = vmatmul.mubr.f32.gmra.mrb[0].mxu0 %v1552
      %v2712 = vpop.f32.mrb[0].mxu0
      %v2713 = vadd.f32 %v2638, %v2712
      %v2714 = vpop.f32.mrb[0].mxu0
      %2715 = vdwg.mxu0
      %2716 = vmatprep.subr.mxu0 0.0
      %2717 = vmatpush1.msra.mxu0 %v1879
      %2718 = vmatprep.subr.mxu0 0.0
      %2719 = vmatpush1.msra.mxu0 %v1880
      %2720 = vmatprep.subr.mxu0 0.0
      %2721 = vmatpush1.msra.mxu0 %v1881
      %2722 = vmatprep.subr.mxu0 0.0
      %2723 = vmatpush1.msra.mxu0 %v1882
      %2724 = vmatprep.subr.mxu0 0.0
      %2725 = vmatpush1.msra.mxu0 %v1883
      %2726 = vmatprep.subr.mxu0 0.0
      %2727 = vmatpush1.msra.mxu0 %v1884
      %2728 = vmatprep.subr.mxu0 0.0
      %2729 = vmatpush1.msra.mxu0 %v1885
      %2730 = vmatprep.subr.mxu0 0.0
      %2731 = vmatpush1.msra.mxu0 %v1886
      %2732 = vmatprep.subr.mxu0 0.0
      %2733 = vmatpush1.msra.mxu0 %v1887
      %2734 = vmatprep.subr.mxu0 0.0
      %2735 = vmatpush1.msra.mxu0 %v1888
      %2736 = vmatprep.subr.mxu0 0.0
      %2737 = vmatpush1.msra.mxu0 %v1889
      %2738 = vmatprep.subr.mxu0 0.0
      %2739 = vmatpush1.msra.mxu0 %v1890
      %2740 = vmatprep.subr.mxu0 0.0
      %2741 = vmatpush1.msra.mxu0 %v1891
      %2742 = vmatprep.subr.mxu0 0.0
      %2743 = vmatpush1.msra.mxu0 %v1892
      %2744 = vmatprep.subr.mxu0 0.0
      %2745 = vmatpush1.msra.mxu0 %v1893
      %2746 = vmatprep.subr.mxu0 0.0
      %2747 = vmatpush1.msra.mxu0 %v1894
      %2748 = vmatprep.subr.mxu0 0.0
      %2749 = vmatpush1.msra.mxu0 %v1895
      %2750 = vmatprep.subr.mxu0 0.0
      %2751 = vmatpush1.msra.mxu0 %v1896
      %2752 = vmatprep.subr.mxu0 0.0
      %2753 = vmatpush1.msra.mxu0 %v1897
      %2754 = vmatprep.subr.mxu0 0.0
      %2755 = vmatpush1.msra.mxu0 %v1898
      %2756 = vmatprep.subr.mxu0 0.0
      %2757 = vmatpush1.msra.mxu0 %v1899
      %2758 = vmatprep.subr.mxu0 0.0
      %2759 = vmatpush1.msra.mxu0 %v1900
      %2760 = vmatprep.subr.mxu0 0.0
      %2761 = vmatpush1.msra.mxu0 %v1901
      %2762 = vmatprep.subr.mxu0 0.0
      %2763 = vmatpush1.msra.mxu0 %v1902
      %2764 = vmatprep.subr.mxu0 0.0
      %2765 = vmatpush1.msra.mxu0 %v1903
      %2766 = vmatprep.subr.mxu0 0.0
      %2767 = vmatpush1.msra.mxu0 %v1904
      %2768 = vmatprep.subr.mxu0 0.0
      %2769 = vmatpush1.msra.mxu0 %v1905
      %2770 = vmatprep.subr.mxu0 0.0
      %2771 = vmatpush1.msra.mxu0 %v1906
      %2772 = vmatprep.subr.mxu0 0.0
      %2773 = vmatpush1.msra.mxu0 %v1907
      %2774 = vmatprep.subr.mxu0 0.0
      %2775 = vmatpush1.msra.mxu0 %v1908
      %2776 = vmatprep.subr.mxu0 0.0
      %2777 = vmatpush1.msra.mxu0 %v1909
      %2778 = vmatprep.subr.mxu0 0.0
      %2779 = vmatpush1.msra.mxu0 %v1910
      %2780 = vmatprep.mubr.f32.mxu0 %v1530
      %2781 = vmatmul.mubr.f32.gmra.mrb[0].mxu0 %v1529
      %v2782 = vpop.f32.mrb[0].mxu0
      %v2783 = vadd.f32 %v2708, %v2782
      %v2784 = vpop.f32.mrb[0].mxu0
      %2785 = vmatprep.mubr.f32.mxu0 %v1555
      %2786 = vmatmul.mubr.f32.gmra.mrb[0].mxu0 %v1554
      %v2787 = vpop.f32.mrb[0].mxu0
      %v2788 = vadd.f32 %v2713, %v2787
      %v2789 = vpop.f32.mrb[0].mxu0
      %2790 = vdwg.mxu0
      %2791 = vmatprep.subr.mxu0 0.0
      %2792 = vmatpush1.msra.mxu0 %v1911
      %2793 = vmatprep.subr.mxu0 0.0
      %2794 = vmatpush1.msra.mxu0 %v1912
      %2795 = vmatprep.subr.mxu0 0.0
      %2796 = vmatpush1.msra.mxu0 %v1913
      %2797 = vmatprep.subr.mxu0 0.0
      %2798 = vmatpush1.msra.mxu0 %v1914
      %2799 = vmatprep.subr.mxu0 0.0
      %2800 = vmatpush1.msra.mxu0 %v1915
      %2801 = vmatprep.subr.mxu0 0.0
      %2802 = vmatpush1.msra.mxu0 %v1916
      %2803 = vmatprep.subr.mxu0 0.0
      %2804 = vmatpush1.msra.mxu0 %v1917
      %2805 = vmatprep.subr.mxu0 0.0
      %2806 = vmatpush1.msra.mxu0 %v1918
      %2807 = vmatprep.subr.mxu0 0.0
      %2808 = vmatpush1.msra.mxu0 %v1919
      %2809 = vmatprep.subr.mxu0 0.0
      %2810 = vmatpush1.msra.mxu0 %v1920
      %2811 = vmatprep.subr.mxu0 0.0
      %2812 = vmatpush1.msra.mxu0 %v1921
      %2813 = vmatprep.subr.mxu0 0.0
      %2814 = vmatpush1.msra.mxu0 %v1922
      %2815 = vmatprep.subr.mxu0 0.0
      %2816 = vmatpush1.msra.mxu0 %v1923
      %2817 = vmatprep.subr.mxu0 0.0
      %2818 = vmatpush1.msra.mxu0 %v1924
      %2819 = vmatprep.subr.mxu0 0.0
      %2820 = vmatpush1.msra.mxu0 %v1925
      %2821 = vmatprep.subr.mxu0 0.0
      %2822 = vmatpush1.msra.mxu0 %v1926
      %2823 = vmatprep.subr.mxu0 0.0
      %2824 = vmatpush1.msra.mxu0 %v1927
      %2825 = vmatprep.subr.mxu0 0.0
      %2826 = vmatpush1.msra.mxu0 %v1928
      %2827 = vmatprep.subr.mxu0 0.0
      %2828 = vmatpush1.msra.mxu0 %v1929
      %2829 = vmatprep.subr.mxu0 0.0
      %2830 = vmatpush1.msra.mxu0 %v1930
      %2831 = vmatprep.subr.mxu0 0.0
      %2832 = vmatpush1.msra.mxu0 %v1931
      %2833 = vmatprep.subr.mxu0 0.0
      %2834 = vmatpush1.msra.mxu0 %v1932
      %2835 = vmatprep.subr.mxu0 0.0
      %2836 = vmatpush1.msra.mxu0 %v1933
      %2837 = vmatprep.subr.mxu0 0.0
      %2838 = vmatpush1.msra.mxu0 %v1934
      %2839 = vmatprep.subr.mxu0 0.0
      %2840 = vmatpush1.msra.mxu0 %v1935
      %2841 = vmatprep.subr.mxu0 0.0
      %2842 = vmatpush1.msra.mxu0 %v1936
      %2843 = vmatprep.subr.mxu0 0.0
      %2844 = vmatpush1.msra.mxu0 %v1937
      %2845 = vmatprep.subr.mxu0 0.0
      %2846 = vmatpush1.msra.mxu0 %v1938
      %2847 = vmatprep.subr.mxu0 0.0
      %2848 = vmatpush1.msra.mxu0 %v1939
      %2849 = vmatprep.subr.mxu0 0.0
      %2850 = vmatpush1.msra.mxu0 %v1940
      %2851 = vmatprep.subr.mxu0 0.0
      %2852 = vmatpush1.msra.mxu0 %v1941
      %2853 = vmatprep.subr.mxu0 0.0
      %2854 = vmatpush1.msra.mxu0 %v1942
      %2855 = vmatprep.mubr.f32.mxu0 %v1532
      %2856 = vmatmul.mubr.f32.gmra.mrb[0].mxu0 %v1531
      %v2857 = vpop.f32.mrb[0].mxu0
      %v2858 = vadd.f32 %v2783, %v2857
      %v2859 = vpop.f32.mrb[0].mxu0
      %2860 = vmatprep.mubr.f32.mxu0 %v1557
      %2861 = vmatmul.mubr.f32.gmra.mrb[0].mxu0 %v1556
      %v2862 = vpop.f32.mrb[0].mxu0
      %v2863 = vadd.f32 %v2788, %v2862
      %v2864 = vpop.f32.mrb[0].mxu0
      %2865 = vdwg.mxu0
      %2866 = vmatprep.subr.mxu0 0.0
      %2867 = vmatpush1.msra.mxu0 %v1943
      %2868 = vmatprep.subr.mxu0 0.0
      %2869 = vmatpush1.msra.mxu0 %v1944
      %2870 = vmatprep.subr.mxu0 0.0
      %2871 = vmatpush1.msra.mxu0 %v1945
      %2872 = vmatprep.subr.mxu0 0.0
      %2873 = vmatpush1.msra.mxu0 %v1946
      %2874 = vmatprep.subr.mxu0 0.0
      %2875 = vmatpush1.msra.mxu0 %v1947
      %2876 = vmatprep.subr.mxu0 0.0
      %2877 = vmatpush1.msra.mxu0 %v1948
      %2878 = vmatprep.subr.mxu0 0.0
      %2879 = vmatpush1.msra.mxu0 %v1949
      %2880 = vmatprep.subr.mxu0 0.0
      %2881 = vmatpush1.msra.mxu0 %v1950
      %2882 = vmatprep.subr.mxu0 0.0
      %2883 = vmatpush1.msra.mxu0 %v1951
      %2884 = vmatprep.subr.mxu0 0.0
      %2885 = vmatpush1.msra.mxu0 %v1952
      %2886 = vmatprep.subr.mxu0 0.0
      %2887 = vmatpush1.msra.mxu0 %v1953
      %2888 = vmatprep.subr.mxu0 0.0
      %2889 = vmatpush1.msra.mxu0 %v1954
      %2890 = vmatprep.subr.mxu0 0.0
      %2891 = vmatpush1.msra.mxu0 %v1955
      %2892 = vmatprep.subr.mxu0 0.0
      %2893 = vmatpush1.msra.mxu0 %v1956
      %2894 = vmatprep.subr.mxu0 0.0
      %2895 = vmatpush1.msra.mxu0 %v1957
      %2896 = vmatprep.subr.mxu0 0.0
      %2897 = vmatpush1.msra.mxu0 %v1958
      %2898 = vmatprep.subr.mxu0 0.0
      %2899 = vmatpush1.msra.mxu0 0.0
      %2900 = vmatprep.subr.mxu0 0.0
      %2901 = vmatpush1.msra.mxu0 0.0
      %2902 = vmatprep.subr.mxu0 0.0
      %2903 = vmatpush1.msra.mxu0 0.0
      %2904 = vmatprep.subr.mxu0 0.0
      %2905 = vmatpush1.msra.mxu0 0.0
      %2906 = vmatprep.subr.mxu0 0.0
      %2907 = vmatpush1.msra.mxu0 0.0
      %2908 = vmatprep.subr.mxu0 0.0
      %2909 = vmatpush1.msra.mxu0 0.0
      %2910 = vmatprep.subr.mxu0 0.0
      %2911 = vmatpush1.msra.mxu0 0.0
      %2912 = vmatprep.subr.mxu0 0.0
      %2913 = vmatpush1.msra.mxu0 0.0
      %2914 = vmatprep.subr.mxu0 0.0
      %2915 = vmatpush1.msra.mxu0 0.0
      %2916 = vmatprep.subr.mxu0 0.0
      %2917 = vmatpush1.msra.mxu0 0.0
      %2918 = vmatprep.subr.mxu0 0.0
      %2919 = vmatpush1.msra.mxu0 0.0
      %2920 = vmatprep.subr.mxu0 0.0
      %2921 = vmatpush1.msra.mxu0 0.0
      %2922 = vmatprep.subr.mxu0 0.0
      %2923 = vmatpush1.msra.mxu0 0.0
      %2924 = vmatprep.subr.mxu0 0.0
      %2925 = vmatpush1.msra.mxu0 0.0
      %2926 = vmatprep.subr.mxu0 0.0
      %2927 = vmatpush1.msra.mxu0 0.0
      %2928 = vmatprep.subr.mxu0 0.0
      %2929 = vmatpush1.msra.mxu0 0.0
      %2930 = vmatprep.mubr.f32.mxu0 0.0
      %2931 = vmatmul.mubr.f32.gmra.mrb[0].mxu0 %v1533
      %v2932 = vpop.f32.mrb[0].mxu0
      %v2933 = vadd.f32 %v2858, %v2932
      %v2934 = vpop.f32.mrb[0].mxu0
      %2935 = vmatprep.mubr.f32.mxu0 0.0
      %2936 = vmatmul.mubr.f32.gmra.mrb[0].mxu0 %v1558
      %v2937 = vpop.f32.mrb[0].mxu0
      %v2938 = vadd.f32 %v2863, %v2937
      %v2939 = vpop.f32.mrb[0].mxu0
      %2940 = vdwg.mxu0
      %vm2941 = vcmask 261120
      %v2942 = vsel %vm2941, %v2933, 0.0
      %2943 = vadd.xlane.f32.xlu0 %v2942
      %v2944 = vpop.xlane.xlu0 %2943
      %v2945 = vsel %vm2941, %v2938, 0.0
      %2946 = vadd.xlane.f32.xlu0 %v2945
      %v2947 = vpop.xlane.xlu0 %2946
      %v2948 = vrcp.pop 32.0
      %v2949 = vmul.f32 %v2944, %v2948
      %v2950 = vmul.f32 %v2947, %v2948
      %v2951 = vsub.f32 %v2933, %v2949
      %v2952 = vsub.f32 %v2938, %v2950
      %v2953 = vmul.f32 %v2951, %v2951
      %v2954 = vmul.f32 %v2952, %v2952
      %v2955 = vsel %vm2941, %v2953, 0.0
      %2956 = vadd.xlane.f32.xlu0 %v2955
      %v2957 = vpop.xlane.xlu0 %2956
      %v2958 = vsel %vm2941, %v2954, 0.0
      %2959 = vadd.xlane.f32.xlu0 %v2958
      %v2960 = vpop.xlane.xlu0 %2959
      %v2961 = vmul.f32 %v2957, %v2948
      %v2962 = vmul.f32 %v2960, %v2948
      %v2963 = vadd.f32 %v2961, 1e-05
      %v2964 = vadd.f32 %v2962, 1e-05
      %v2965 = vrsqrt.pop %v2963
      %v2966 = vrsqrt.pop %v2964
      %v2967 = vmul.f32 %v2951, %v2965
      %v2968 = vmul.f32 %v2952, %v2966
      %v2969 = vld [vmem:[%s7] sm:$0x1]
      %v2971 = vlaneseq
      %v2972 = vshrl.u32 %v2971, 7
      %v2973 = vsub.s32 0, %v2972
      %v2974 = vrot.slane %v2969, %v2973
      %v2976 = vmul.f32 %v2967, %v2974
      %v2977 = vmul.f32 %v2968, %v2974
      %v2978 = vld [vmem:[%s8] sm:$0x1]
      %v2980 = vlaneseq
      %v2981 = vshrl.u32 %v2980, 7
      %v2982 = vsub.s32 0, %v2981
      %v2983 = vrot.slane %v2978, %v2982
      %v2985 = vadd.f32 %v2976, %v2983
      %v2986 = vadd.f32 %v2977, %v2983
      %v2987 = vxor.u32 %v2985, 2147483648
      %v2988 = vxor.u32 %v2986, 2147483648
      %v2989 = vmul.f32 %v2987, 1.442695
      %v2990 = vpow.pop %v2989
      %v2991 = vmul.f32 %v2988, 1.442695
      %v2992 = vpow.pop %v2991
      %v2993 = vadd.f32 %v2990, 1.0
      %v2994 = vadd.f32 %v2992, 1.0
      %v2995 = vrcp.pop %v2993
      %v2996 = vmul.f32 1.0, %v2995
      %v2997 = vrcp.pop %v2994
      %v2998 = vmul.f32 1.0, %v2997
      %v3001 = vrot.slane %v2996, 4
      %v3002 = vrot.slane %v2998, 4
      %v3003 = vsel %vm489, %v3001, %v3002
      %3004 = vrot.lane.b32.xlu0 %v3001, 80
      %v3005 = vpop.permute.xlu0 %3004
      %3006 = vrot.lane.b32.xlu0 %v3003, 80
      %v3007 = vpop.permute.xlu0 %3006
      %3008 = vrot.lane.b32.xlu0 %v3002, 80
      %v3009 = vpop.permute.xlu0 %3008
      %vm3013 = vcmask 654336
      %v3014 = vsel %vm3013, %v1359, %v3005
      %v3015 = vsel %vm3013, %v1360, %v3007
      %v3016 = vsel %vm3013, %v1361, %v3009
      %vm3017 = vcmask 916480
      %v3018 = vsel %vm3017, %v3014, 0.0
      %v3019 = vsel %vm3017, %v3015, 0.0
      %v3020 = vsel %vm3017, %v3016, 0.0
      %3021 = vst [vmem:[%s332 - $0x4] sm:$0xf0] %v3018
      %3022 = vst [vmem:[%s332 + $0x4] sm:$0xff] %v3019
      %3023 = vst [vmem:[%s332 + $0xc] sm:$0xf] %v3020
      %p3024 = scmp.lt.s32.totalorder %s20, 1
      %s3025 = scalar_select %p3024, %s20, 1
      %s3026 = smul.addr %s3025, 2
      %s3027 = smul.addr %s3026, 8
      %s3028 = scalar_lea.vmem %s9, %s3027
      // Predicated region
      $region57: #{pose_encoder_no_pool.1} parent=55 // pred_check
        %p3029 = pneg %p232
      $region58: #{pose_encoder_no_pool.1} parent=55 // pred_check_branch
        %3031 = sbr.rel (%p3029) target = $region60
      $region59: #{pose_encoder_no_pool.1} parent=55 // pred_region
        _
      $region60: #{pose_encoder_no_pool.1} parent=55 // pred_fallthru
        _
    $region56: #{pose_encoder_no_pool.1} parent=5 // pred_fallthru
      _
    %p3032 = scmp.le.s32.totalorder 2, %s15
    // Predicated region
    $region61: #{pose_encoder_no_pool.1} parent=5 // pred_check
      %p3033 = pneg %p3032
    $region62: #{pose_encoder_no_pool.1} parent=5 // pred_check_branch
      %3035 = sbr.rel (%p3033) target = $region64
    $region63: #{pose_encoder_no_pool.1} parent=5 // pred_region
      %s3036 = ssub.s32 %s15, 2
      // Predicated region
      $region65: #{pose_encoder_no_pool.1} parent=63 // pred_check
        %p3037 = pneg %p238
      $region66: #{pose_encoder_no_pool.1} parent=63 // pred_check_branch
        %3039 = sbr.rel (%p3037) target = $region68
      $region67: #{pose_encoder_no_pool.1} parent=63 // pred_region
        %p3040 = scmp.lt.s32.totalorder %s21, 1
        %s3041 = scalar_select %p3040, %s21, 1
        %s3042 = smul.addr %s3041, 2
        %s3043 = smul.addr %s3042, 8
        %s3044 = scalar_lea.vmem %s9, %s3043
      $region68: #{pose_encoder_no_pool.1} parent=63 // pred_fallthru
        _
    $region64: #{pose_encoder_no_pool.1} parent=5 // pred_fallthru
      _
  $region6: #{pose_encoder_no_pool.1} parent=0 // loop_footer
    %s19 = sadd.s32 1, %s15
  $region7: #{pose_encoder_no_pool.1} parent=0 // loop_footer_branch
    %14 = sbr.rel target = $region3
  $region8: #{pose_encoder_no_pool.1} parent=0 // loop_exit
    _

</llo_original>
